<compile_context>
chip_gen: v6e
topology: v6e:2x2x1
jax: 0.10.0
libtpu: 0.0.40
codegen_flags: <defaults>
</compile_context>

<pallas_src>
import functools

import jax
import jax.numpy as jnp
from jax import lax
from jax.experimental import pallas as pl
from jax.experimental.pallas import tpu as pltpu


# ----------------------------- Pallas kernels -----------------------------

def _conv_relu_pool_kernel(p_ref, w_ref, b_ref, o_ref):
    # p_ref: (4, Mt, Kpad) bf16 -- im2col patches for the 4 pool phases
    # w_ref: (Kpad, Cpad)  bf16 -- resident weights (constant index_map)
    # b_ref: (1, Cpad)     f32
    # o_ref: (Mt, Cpad)    bf16 -- pooled + ReLU'd activation tile
    nph, mt, kp = p_ref.shape
    # Single phase-stacked MXU matmul (4*Mt rows), then max over the 4 phases.
    pm = jnp.dot(p_ref[...].reshape(nph * mt, kp), w_ref[...],
                 preferred_element_type=jnp.float32)
    m = jnp.maximum(jnp.maximum(pm[0:mt], pm[mt:2 * mt]),
                    jnp.maximum(pm[2 * mt:3 * mt], pm[3 * mt:4 * mt]))
    # bias after the max is equivalent (same additive shift); ReLU after the
    # max is equivalent by monotonicity.
    o_ref[...] = jnp.maximum(m + b_ref[...], 0.0).astype(o_ref.dtype)


def _tail_kernel(p_ref, w4_ref, b4_ref, w1_ref, b1_ref, w2_ref, b2_ref,
                 w3_ref, b3_ref, o_ref):
    # Fused conv4 (+bias+ReLU+pool) -> flatten -> fc1 -> ReLU -> fc2 -> ReLU -> fc3.
    # p_ref : (4*rpi*N, Kpad) bf16 -- conv4 im2col patches, rows ordered
    #         (pool-phase, spatial position (i,j) row-major, batch).
    # w4_ref: (Kpad, C4) bf16 ; b4_ref: (1, C4) f32
    # w1_ref: (rpi*C4, H1) bf16 ; w2_ref: (H1, H2) ; w3_ref: (H2, Cp) bf16
    # b*_ref: (1, *) f32 ; o_ref: (N, Cp) f32
    cw = w4_ref.shape[1]                    # conv4 output channels (128)
    rpi = w1_ref.shape[0] // cw             # pooled pixels per image
    rows = p_ref.shape[0] // 4              # rpi * N
    nb = rows // rpi                        # batch

    # conv4: one phase-stacked MXU matmul, then phase max + bias + ReLU.
    pm = jnp.dot(p_ref[...], w4_ref[...], preferred_element_type=jnp.float32)
    m = jnp.maximum(jnp.maximum(pm[0:rows], pm[rows:2 * rows]),
                    jnp.maximum(pm[2 * rows:3 * rows], pm[3 * rows:4 * rows]))
    a4 = jnp.maximum(m + b4_ref[...], 0.0)  # (rpi*nb, C4) f32, (pos, n)-ordered

    # fc1 over the flattened (pos, channel) features without any lane-merging
    # reshape: sum of per-position (Nb, C4) x (C4, H1) matmuls.  Row blocks of
    # w1 were pre-permuted offline to NHWC (pos-major, channel-minor) order.
    w1 = w1_ref[...]
    h = jnp.dot(a4[0:nb].astype(jnp.bfloat16), w1[0:cw],
                preferred_element_type=jnp.float32)
    for pos in range(1, rpi):
        h = h + jnp.dot(a4[pos * nb:(pos + 1) * nb].astype(jnp.bfloat16),
                        w1[pos * cw:(pos + 1) * cw],
                        preferred_element_type=jnp.float32)
    h = jnp.maximum(h + b1_ref[...], 0.0).astype(jnp.bfloat16)
    h = jnp.maximum(jnp.dot(h, w2_ref[...], preferred_element_type=jnp.float32)
                    + b2_ref[...], 0.0).astype(jnp.bfloat16)
    o_ref[...] = (jnp.dot(h, w3_ref[...], preferred_element_type=jnp.float32)
                  + b3_ref[...])


# ------------------------------ helpers ------------------------------------

def _round_up(x, m):
    return (x + m - 1) // m * m


def _pick_tile(m, cands=(2048, 1024, 512, 256, 128, 64, 32, 16, 8)):
    # Largest tile that divides m, preferring a grid of >=2 tiles (v7x 2 TCs).
    divs = [c for c in cands if m % c == 0]
    for c in divs:
        if m // c >= 2:
            return c
    return divs[0] if divs else m


@functools.lru_cache(maxsize=None)
def _vmem_limit_bytes():
    # Generation-aware scoped-VMEM budget: v7x has only 64 MiB physical per TC.
    try:
        kind = jax.devices()[0].device_kind.lower()
    except Exception:
        return None
    if "v7" in kind or "7x" in kind:
        return 48 * 1024 * 1024
    if "v5" in kind or "v6" in kind:
        return 64 * 1024 * 1024
    return None  # unknown generation: keep the compiler default


def _im2col_cols(x):
    # x: (N, H, W, C) -> (N, H, W, 9C): 3x3/pad=1 taps concatenated (dy,dx,c).
    N, H, W, C = x.shape
    xp = jnp.pad(x, ((0, 0), (1, 1), (1, 1), (0, 0)))
    taps = [xp[:, dy:dy + H, dx:dx + W, :] for dy in range(3) for dx in range(3)]
    return jnp.concatenate(taps, axis=-1)


def _im2col_pool_phases(x):
    # x: (N, H, W, C) bf16 -> (4, N*Hp*Wp, 9C) bf16, phase-major patches with
    # rows ordered (n, i, j).  Phase (py, px) holds the patch of conv-output
    # pixel (2i+py, 2j+px) for pooled pixel (i, j).
    N, H, W, C = x.shape
    Hp, Wp = H // 2, W // 2
    cols = _im2col_cols(x)
    phases = [cols[:, py::2, px::2, :].reshape(N * Hp * Wp, 9 * C)
              for py in (0, 1) for px in (0, 1)]
    return jnp.stack(phases, axis=0)


def _im2col_tail_patches(x):
    # x: (N, H, W, C) bf16 -> (4*Hp*Wp*N, 9C) bf16, rows ordered
    # (pool-phase, pooled position (i,j) row-major, batch) for the tail kernel.
    N, H, W, C = x.shape
    Hp, Wp = H // 2, W // 2
    cols = _im2col_cols(x)
    phases = []
    for py in (0, 1):
        for px in (0, 1):
            ph = cols[:, py::2, px::2, :]                       # (N, Hp, Wp, 9C)
            ph = jnp.transpose(ph, (1, 2, 0, 3)).reshape(Hp * Wp * N, 9 * C)
            phases.append(ph)
    return jnp.concatenate(phases, axis=0)


# ------------------------------ wrappers -----------------------------------

def conv_relu_pool(x, w_mat, b_row, cout):
    # x: (N, H, W, C) bf16; w_mat: (Kpad, Cpad) bf16; b_row: (1, Cpad) f32.
    # Returns (N, H//2, W//2, cout) bf16.
    N, H, W, C = x.shape
    Hp, Wp = H // 2, W // 2
    Kpad, Cpad = w_mat.shape
    patches = _im2col_pool_phases(x)                            # (4, M, 9C)
    K = patches.shape[-1]
    if Kpad > K:
        patches = jnp.pad(patches, ((0, 0), (0, 0), (0, Kpad - K)))
    M = N * Hp * Wp
    Mt = _pick_tile(M)

    out = pl.pallas_call(
        _conv_relu_pool_kernel,
        out_shape=jax.ShapeDtypeStruct((M, Cpad), jnp.bfloat16),
        grid_spec=pltpu.PrefetchScalarGridSpec(
            num_scalar_prefetch=0,
            grid=(M // Mt,),
            in_specs=[
                pl.BlockSpec((4, Mt, Kpad), lambda i: (0, i, 0)),
                pl.BlockSpec((Kpad, Cpad), lambda i: (0, 0)),   # resident weights
                pl.BlockSpec((1, Cpad), lambda i: (0, 0)),      # resident bias
            ],
            out_specs=pl.BlockSpec((Mt, Cpad), lambda i: (i, 0)),
        ),
        compiler_params=pltpu.CompilerParams(
            dimension_semantics=("parallel",),
            vmem_limit_bytes=_vmem_limit_bytes(),
        ),
    )(patches, w_mat, b_row)
    return out[:, :cout].reshape(N, Hp, Wp, cout)


def conv4_mlp_tail(x, conv4, fc):
    # x: (N, H, W, C) bf16 conv3 pooled output.  Fused conv4 + pool + MLP.
    w4, b4 = conv4
    N, H, W, C = x.shape
    Kpad, C4 = w4.shape
    patches = _im2col_tail_patches(x)                           # (4*rpi*N, 9C)
    K = patches.shape[-1]
    if Kpad > K:
        patches = jnp.pad(patches, ((0, 0), (0, Kpad - K)))
    R = patches.shape[0]
    feat, H1 = fc["w1"].shape
    H2 = fc["w2"].shape[1]
    Cp = fc["w3"].shape[1]

    # Single-step grid: these tail layers are launch-bound (tiny M), so the
    # whole batch is processed resident in VMEM in one step.
    return pl.pallas_call(
        _tail_kernel,
        out_shape=jax.ShapeDtypeStruct((N, Cp), jnp.float32),
        grid_spec=pltpu.PrefetchScalarGridSpec(
            num_scalar_prefetch=0,
            grid=(1,),
            in_specs=[
                pl.BlockSpec((R, Kpad), lambda i: (0, 0)),
                pl.BlockSpec((Kpad, C4), lambda i: (0, 0)),
                pl.BlockSpec((1, C4), lambda i: (0, 0)),
                pl.BlockSpec((feat, H1), lambda i: (0, 0)),
                pl.BlockSpec((1, H1), lambda i: (0, 0)),
                pl.BlockSpec((H1, H2), lambda i: (0, 0)),
                pl.BlockSpec((1, H2), lambda i: (0, 0)),
                pl.BlockSpec((H2, Cp), lambda i: (0, 0)),
                pl.BlockSpec((1, Cp), lambda i: (0, 0)),
            ],
            out_specs=pl.BlockSpec((N, Cp), lambda i: (0, 0)),
        ),
        compiler_params=pltpu.CompilerParams(
            dimension_semantics=("arbitrary",),
            vmem_limit_bytes=_vmem_limit_bytes(),
        ),
    )(patches, w4, b4, fc["w1"], fc["b1"], fc["w2"], fc["b2"], fc["w3"], fc["b3"])


def vgg4_forward(x_nchw, kp, *, meta):
    # x_nchw: (N, 3, img, img) like PyTorch; internally NHWC bf16.
    x = jnp.transpose(x_nchw, (0, 2, 3, 1)).astype(jnp.bfloat16)
    for (w_mat, b_row), cout in zip(kp["conv"][:3], meta["couts"][:3]):
        x = conv_relu_pool(x, w_mat, b_row, cout)
    logits = conv4_mlp_tail(x, kp["conv"][3], kp["fc"])
    return logits[:, :meta["num_classes"]]


# ----------------- one-time (outside jit) parameter preparation -------------

def prepare_params(params, img_size):
    conv_prepped, couts = [], []
    for (w, b) in params["conv"]:
        cout, cin = int(w.shape[0]), int(w.shape[1])
        k = 9 * cin
        kpad = _round_up(k, 16)                   # bf16 packs 16 sublanes
        cpad = _round_up(max(cout, 128), 128)     # lane-dense output slab
        # (Cout, Cin, 3, 3) -> (3, 3, Cin, Cout) -> (9*Cin, Cout); row index =
        # (dy*3+dx)*Cin + cin, matching the im2col tap/channel ordering.
        w_mat = jnp.transpose(w, (2, 3, 1, 0)).reshape(k, cout)
        w_mat = jnp.pad(w_mat, ((0, kpad - k), (0, cpad - cout))).astype(jnp.bfloat16)
        b_row = jnp.pad(b, (0, cpad - cout)).reshape(1, cpad).astype(jnp.float32)
        conv_prepped.append((w_mat, b_row))
        couts.append(cout)

    (w1, b1), (w2, b2), (w3, b3) = params["fc"]
    c_last = couts[-1]
    hp = img_size // 16
    ncls = int(w3.shape[0])
    ncls_pad = _round_up(max(ncls, 128), 128)
    h2 = int(w2.shape[0])
    h2_pad = _round_up(max(h2, 128), 128)         # lane-dense hidden dim
    # Permute fc1 input dim from torch NCHW-flatten order to NHWC-flatten order
    # (spatial-position-major, channel-minor): row = (i*hp + j)*c_last + c.
    w1p = jnp.transpose(w1.reshape(w1.shape[0], c_last, hp, hp), (0, 2, 3, 1))
    w1p = w1p.reshape(w1.shape[0], -1)
    fc_prepped = {
        "w1": w1p.T.astype(jnp.bfloat16),                                      # (hp*hp*c_last, 128)
        "b1": b1.reshape(1, -1).astype(jnp.float32),
        "w2": jnp.pad(w2.T, ((0, 0), (0, h2_pad - h2))).astype(jnp.bfloat16),  # (128, 128)
        "b2": jnp.pad(b2, (0, h2_pad - h2)).reshape(1, h2_pad).astype(jnp.float32),
        "w3": jnp.pad(w3.T, ((0, h2_pad - h2), (0, ncls_pad - ncls))).astype(jnp.bfloat16),
        "b3": jnp.pad(b3, (0, ncls_pad - ncls)).reshape(1, ncls_pad).astype(jnp.float32),
    }
    meta = {"couts": tuple(couts), "num_classes": ncls}
    return {"conv": conv_prepped, "fc": fc_prepped}, meta


# ----------------------- deterministic parameter init ----------------------

def init_params(key, num_classes, img_size):
    convs = [(3, 16), (16, 32), (32, 64), (64, 128)]
    feat = 128 * (img_size // 16) * (img_size // 16)
    fcs = [(feat, 128), (128, 64), (64, num_classes)]
    keys = jax.random.split(key, len(convs) + len(fcs))
    params = {"conv": [], "fc": []}
    for i, (cin, cout) in enumerate(convs):
        w = jax.random.normal(keys[i], (cout, cin, 3, 3), jnp.float32) * 0.1
        b = jnp.linspace(-0.05, 0.05, cout, dtype=jnp.float32)
        params["conv"].append((w, b))
    for i, (fin, fout) in enumerate(fcs):
        w = jax.random.normal(keys[len(convs) + i], (fout, fin), jnp.float32) * (1.0 / (fin ** 0.5))
        b = jnp.linspace(-0.05, 0.05, fout, dtype=jnp.float32)
        params["fc"].append((w, b))
    return params


# ------------------------------ pure-JAX ref --------------------------------
# Same math at matching precision (bf16 operands, f32 accumulation), using the
# ORIGINAL torch-layout params and torch's NCHW flatten, to validate both the
# fused kernels and the offline weight permutation / padding.

def vgg4_reference(x_nchw, params):
    x = jnp.transpose(x_nchw, (0, 2, 3, 1)).astype(jnp.bfloat16)
    for w, b in params["conv"]:
        w_hwio = jnp.transpose(w, (2, 3, 1, 0)).astype(jnp.bfloat16)
        y = lax.conv_general_dilated(
            x, w_hwio, window_strides=(1, 1), padding="SAME",
            dimension_numbers=("NHWC", "HWIO", "NHWC"),
            preferred_element_type=jnp.float32)
        y = jnp.maximum(y + b, 0.0)
        y = lax.reduce_window(y, -jnp.inf, lax.max, (1, 2, 2, 1), (1, 2, 2, 1), "VALID")
        x = y.astype(jnp.bfloat16)
    N = x.shape[0]
    x = jnp.transpose(x, (0, 3, 1, 2)).reshape(N, -1)       # torch NCHW flatten
    (w1, b1), (w2, b2), (w3, b3) = params["fc"]
    h = jnp.dot(x, w1.T.astype(jnp.bfloat16), preferred_element_type=jnp.float32) + b1
    h = jnp.maximum(h, 0.0).astype(jnp.bfloat16)
    h = jnp.dot(h, w2.T.astype(jnp.bfloat16), preferred_element_type=jnp.float32) + b2
    h = jnp.maximum(h, 0.0).astype(jnp.bfloat16)
    return jnp.dot(h, w3.T.astype(jnp.bfloat16), preferred_element_type=jnp.float32) + b3


# ---------------------------------- main ------------------------------------

if __name__ == "__main__":
    num_classes, img_size, batch = 10, 32, 2
    key = jax.random.PRNGKey(0)
    pkey, xkey = jax.random.split(key)
    params = init_params(pkey, num_classes, img_size)
    kparams, meta = prepare_params(params, img_size)        # once, outside jit
    x = jax.random.normal(xkey, (batch, 3, img_size, img_size), jnp.float32)

    fwd = jax.jit(functools.partial(vgg4_forward, meta=meta))
    out = jax.block_until_ready(fwd(x, kparams))

    ref = vgg4_reference(x, params)
    assert out.shape == (batch, num_classes), out.shape
    max_err = float(jnp.max(jnp.abs(out - ref)))
    assert jnp.allclose(out, ref, rtol=1e-2, atol=1e-2), max_err

    print("KERNEL_OK")
</pallas_src>

<mosaic_0001>
module attributes {stable_mosaic.version = 11 : i64} {
  func.func @_conv_relu_pool_kernel(%arg0: i32, %arg1: memref<4x256x32xbf16, #tpu.memory_space<vmem>>, %arg2: memref<32x128xbf16, #tpu.memory_space<vmem>>, %arg3: memref<1x128xf32, #tpu.memory_space<vmem>>, %arg4: memref<256x128xbf16, #tpu.memory_space<vmem>>) attributes {dimension_semantics = [#tpu.dimension_semantics<parallel>], iteration_bounds = array<i64: 2>, scalar_prefetch = 0 : i64, scratch_operands = 0 : i64, tpu.core_type = #tpu.core_type<tc>, window_params = [{transform_indices = @transform_0, window_bounds = array<i64: 4, 256, 32>}, {pipeline_mode = #tpu.pipeline_mode<synchronous>, transform_indices = @transform_1, window_bounds = array<i64: 32, 128>}, {pipeline_mode = #tpu.pipeline_mode<synchronous>, transform_indices = @transform_2, window_bounds = array<i64: 1, 128>}, {transform_indices = @transform_3, window_bounds = array<i64: 256, 128>}]} {
    %c0 = arith.constant 0 : index
    %c0_0 = arith.constant 0 : index
    %c0_1 = arith.constant 0 : index
    %0 = vector.load %arg1[%c0, %c0_0, %c0_1] : memref<4x256x32xbf16, #tpu.memory_space<vmem>>, vector<4x256x32xbf16>
    %1 = vector.shape_cast %0 : vector<4x256x32xbf16> to vector<1024x32xbf16>
    %c0_2 = arith.constant 0 : index
    %c0_3 = arith.constant 0 : index
    %2 = vector.load %arg2[%c0_2, %c0_3] : memref<32x128xbf16, #tpu.memory_space<vmem>>, vector<32x128xbf16>
    %cst = arith.constant dense<0.000000e+00> : vector<1024x128xf32>
    %3 = tpu.matmul %1, %2, %cst {dimension_numbers = #tpu.dot_dimension_numbers<[1], [0], [0], [1], [0, 0, 1, 1], [], []>} : vector<1024x32xbf16>, vector<32x128xbf16>, vector<1024x128xf32> -> vector<1024x128xf32>
    %4 = vector.extract_strided_slice %3 {offsets = [0, 0], sizes = [256, 128], strides = [1, 1]} : vector<1024x128xf32> to vector<256x128xf32>
    %5 = vector.extract_strided_slice %3 {offsets = [256, 0], sizes = [256, 128], strides = [1, 1]} : vector<1024x128xf32> to vector<256x128xf32>
    %6 = arith.maximumf %4, %5 : vector<256x128xf32>
    %7 = vector.extract_strided_slice %3 {offsets = [512, 0], sizes = [256, 128], strides = [1, 1]} : vector<1024x128xf32> to vector<256x128xf32>
    %8 = vector.extract_strided_slice %3 {offsets = [768, 0], sizes = [256, 128], strides = [1, 1]} : vector<1024x128xf32> to vector<256x128xf32>
    %9 = arith.maximumf %7, %8 : vector<256x128xf32>
    %10 = arith.maximumf %6, %9 : vector<256x128xf32>
    %c0_4 = arith.constant 0 : index
    %c0_5 = arith.constant 0 : index
    %11 = vector.load %arg3[%c0_4, %c0_5] : memref<1x128xf32, #tpu.memory_space<vmem>>, vector<1x128xf32>
    %12 = vector.broadcast %11 : vector<1x128xf32> to vector<256x128xf32>
    %13 = arith.addf %10, %12 : vector<256x128xf32>
    %cst_6 = arith.constant 0.000000e+00 : f32
    %14 = vector.broadcast %cst_6 : f32 to vector<256x128xf32>
    %15 = arith.maximumf %13, %14 : vector<256x128xf32>
    %16 = arith.truncf %15 : vector<256x128xf32> to vector<256x128xbf16>
    %c0_7 = arith.constant 0 : index
    %c0_8 = arith.constant 0 : index
    %17 = vector.load %arg4[%c0_7, %c0_8] : memref<256x128xbf16, #tpu.memory_space<vmem>>, vector<256x128xbf16>
    tpu.vector_store %arg4[%c0_7, %c0_8], %16 {strides = array<i32>} : memref<256x128xbf16, #tpu.memory_space<vmem>>, vector<256x128xbf16>,
    return
  }
  func.func @transform_0(%arg0: i32) -> (i32, i32, i32) {
    %c0_i32 = arith.constant 0 : i32
    %c0_i32_0 = arith.constant 0 : i32
    %c0_i32_1 = arith.constant 0 : i32
    return %c0_i32, %arg0, %c0_i32_0 : i32, i32, i32
  }
  func.func @transform_1(%arg0: i32) -> (i32, i32) {
    %c0_i32 = arith.constant 0 : i32
    %c0_i32_0 = arith.constant 0 : i32
    %c0_i32_1 = arith.constant 0 : i32
    return %c0_i32, %c0_i32_0 : i32, i32
  }
  func.func @transform_2(%arg0: i32) -> (i32, i32) {
    %c0_i32 = arith.constant 0 : i32
    %c0_i32_0 = arith.constant 0 : i32
    %c0_i32_1 = arith.constant 0 : i32
    return %c0_i32, %c0_i32_0 : i32, i32
  }
  func.func @transform_3(%arg0: i32) -> (i32, i32) {
    %c0_i32 = arith.constant 0 : i32
    %c0_i32_0 = arith.constant 0 : i32
    return %arg0, %c0_i32 : i32, i32
  }
}

module attributes {stable_mosaic.version = 11 : i64} {
  func.func @_conv_relu_pool_kernel(%arg0: i32, %arg1: memref<4x64x144xbf16, #tpu.memory_space<vmem>>, %arg2: memref<144x128xbf16, #tpu.memory_space<vmem>>, %arg3: memref<1x128xf32, #tpu.memory_space<vmem>>, %arg4: memref<64x128xbf16, #tpu.memory_space<vmem>>) attributes {dimension_semantics = [#tpu.dimension_semantics<parallel>], iteration_bounds = array<i64: 2>, scalar_prefetch = 0 : i64, scratch_operands = 0 : i64, tpu.core_type = #tpu.core_type<tc>, window_params = [{transform_indices = @transform_0, window_bounds = array<i64: 4, 64, 144>}, {pipeline_mode = #tpu.pipeline_mode<synchronous>, transform_indices = @transform_1, window_bounds = array<i64: 144, 128>}, {pipeline_mode = #tpu.pipeline_mode<synchronous>, transform_indices = @transform_2, window_bounds = array<i64: 1, 128>}, {transform_indices = @transform_3, window_bounds = array<i64: 64, 128>}]} {
    %c0 = arith.constant 0 : index
    %c0_0 = arith.constant 0 : index
    %c0_1 = arith.constant 0 : index
    %0 = vector.load %arg1[%c0, %c0_0, %c0_1] : memref<4x64x144xbf16, #tpu.memory_space<vmem>>, vector<4x64x144xbf16>
    %1 = vector.shape_cast %0 : vector<4x64x144xbf16> to vector<256x144xbf16>
    %c0_2 = arith.constant 0 : index
    %c0_3 = arith.constant 0 : index
    %2 = vector.load %arg2[%c0_2, %c0_3] : memref<144x128xbf16, #tpu.memory_space<vmem>>, vector<144x128xbf16>
    %cst = arith.constant dense<0.000000e+00> : vector<256x128xf32>
    %3 = tpu.matmul %1, %2, %cst {dimension_numbers = #tpu.dot_dimension_numbers<[1], [0], [0], [1], [0, 0, 1, 1], [], []>} : vector<256x144xbf16>, vector<144x128xbf16>, vector<256x128xf32> -> vector<256x128xf32>
    %4 = vector.extract_strided_slice %3 {offsets = [0, 0], sizes = [64, 128], strides = [1, 1]} : vector<256x128xf32> to vector<64x128xf32>
    %5 = vector.extract_strided_slice %3 {offsets = [64, 0], sizes = [64, 128], strides = [1, 1]} : vector<256x128xf32> to vector<64x128xf32>
    %6 = arith.maximumf %4, %5 : vector<64x128xf32>
    %7 = vector.extract_strided_slice %3 {offsets = [128, 0], sizes = [64, 128], strides = [1, 1]} : vector<256x128xf32> to vector<64x128xf32>
    %8 = vector.extract_strided_slice %3 {offsets = [192, 0], sizes = [64, 128], strides = [1, 1]} : vector<256x128xf32> to vector<64x128xf32>
    %9 = arith.maximumf %7, %8 : vector<64x128xf32>
    %10 = arith.maximumf %6, %9 : vector<64x128xf32>
    %c0_4 = arith.constant 0 : index
    %c0_5 = arith.constant 0 : index
    %11 = vector.load %arg3[%c0_4, %c0_5] : memref<1x128xf32, #tpu.memory_space<vmem>>, vector<1x128xf32>
    %12 = vector.broadcast %11 : vector<1x128xf32> to vector<64x128xf32>
    %13 = arith.addf %10, %12 : vector<64x128xf32>
    %cst_6 = arith.constant 0.000000e+00 : f32
    %14 = vector.broadcast %cst_6 : f32 to vector<64x128xf32>
    %15 = arith.maximumf %13, %14 : vector<64x128xf32>
    %16 = arith.truncf %15 : vector<64x128xf32> to vector<64x128xbf16>
    %c0_7 = arith.constant 0 : index
    %c0_8 = arith.constant 0 : index
    %17 = vector.load %arg4[%c0_7, %c0_8] : memref<64x128xbf16, #tpu.memory_space<vmem>>, vector<64x128xbf16>
    tpu.vector_store %arg4[%c0_7, %c0_8], %16 {strides = array<i32>} : memref<64x128xbf16, #tpu.memory_space<vmem>>, vector<64x128xbf16>,
    return
  }
  func.func @transform_0(%arg0: i32) -> (i32, i32, i32) {
    %c0_i32 = arith.constant 0 : i32
    %c0_i32_0 = arith.constant 0 : i32
    %c0_i32_1 = arith.constant 0 : i32
    return %c0_i32, %arg0, %c0_i32_0 : i32, i32, i32
  }
  func.func @transform_1(%arg0: i32) -> (i32, i32) {
    %c0_i32 = arith.constant 0 : i32
    %c0_i32_0 = arith.constant 0 : i32
    %c0_i32_1 = arith.constant 0 : i32
    return %c0_i32, %c0_i32_0 : i32, i32
  }
  func.func @transform_2(%arg0: i32) -> (i32, i32) {
    %c0_i32 = arith.constant 0 : i32
    %c0_i32_0 = arith.constant 0 : i32
    %c0_i32_1 = arith.constant 0 : i32
    return %c0_i32, %c0_i32_0 : i32, i32
  }
  func.func @transform_3(%arg0: i32) -> (i32, i32) {
    %c0_i32 = arith.constant 0 : i32
    %c0_i32_0 = arith.constant 0 : i32
    return %arg0, %c0_i32 : i32, i32
  }
}

module attributes {stable_mosaic.version = 11 : i64} {
  func.func @_conv_relu_pool_kernel(%arg0: i32, %arg1: memref<4x16x288xbf16, #tpu.memory_space<vmem>>, %arg2: memref<288x128xbf16, #tpu.memory_space<vmem>>, %arg3: memref<1x128xf32, #tpu.memory_space<vmem>>, %arg4: memref<16x128xbf16, #tpu.memory_space<vmem>>) attributes {dimension_semantics = [#tpu.dimension_semantics<parallel>], iteration_bounds = array<i64: 2>, scalar_prefetch = 0 : i64, scratch_operands = 0 : i64, tpu.core_type = #tpu.core_type<tc>, window_params = [{transform_indices = @transform_0, window_bounds = array<i64: 4, 16, 288>}, {pipeline_mode = #tpu.pipeline_mode<synchronous>, transform_indices = @transform_1, window_bounds = array<i64: 288, 128>}, {pipeline_mode = #tpu.pipeline_mode<synchronous>, transform_indices = @transform_2, window_bounds = array<i64: 1, 128>}, {transform_indices = @transform_3, window_bounds = array<i64: 16, 128>}]} {
    %c0 = arith.constant 0 : index
    %c0_0 = arith.constant 0 : index
    %c0_1 = arith.constant 0 : index
    %0 = vector.load %arg1[%c0, %c0_0, %c0_1] : memref<4x16x288xbf16, #tpu.memory_space<vmem>>, vector<4x16x288xbf16>
    %1 = vector.shape_cast %0 : vector<4x16x288xbf16> to vector<64x288xbf16>
    %c0_2 = arith.constant 0 : index
    %c0_3 = arith.constant 0 : index
    %2 = vector.load %arg2[%c0_2, %c0_3] : memref<288x128xbf16, #tpu.memory_space<vmem>>, vector<288x128xbf16>
    %cst = arith.constant dense<0.000000e+00> : vector<64x128xf32>
    %3 = tpu.matmul %1, %2, %cst {dimension_numbers = #tpu.dot_dimension_numbers<[1], [0], [0], [1], [0, 0, 1, 1], [], []>} : vector<64x288xbf16>, vector<288x128xbf16>, vector<64x128xf32> -> vector<64x128xf32>
    %4 = vector.extract_strided_slice %3 {offsets = [0, 0], sizes = [16, 128], strides = [1, 1]} : vector<64x128xf32> to vector<16x128xf32>
    %5 = vector.extract_strided_slice %3 {offsets = [16, 0], sizes = [16, 128], strides = [1, 1]} : vector<64x128xf32> to vector<16x128xf32>
    %6 = arith.maximumf %4, %5 : vector<16x128xf32>
    %7 = vector.extract_strided_slice %3 {offsets = [32, 0], sizes = [16, 128], strides = [1, 1]} : vector<64x128xf32> to vector<16x128xf32>
    %8 = vector.extract_strided_slice %3 {offsets = [48, 0], sizes = [16, 128], strides = [1, 1]} : vector<64x128xf32> to vector<16x128xf32>
    %9 = arith.maximumf %7, %8 : vector<16x128xf32>
    %10 = arith.maximumf %6, %9 : vector<16x128xf32>
    %c0_4 = arith.constant 0 : index
    %c0_5 = arith.constant 0 : index
    %11 = vector.load %arg3[%c0_4, %c0_5] : memref<1x128xf32, #tpu.memory_space<vmem>>, vector<1x128xf32>
    %12 = vector.broadcast %11 : vector<1x128xf32> to vector<16x128xf32>
    %13 = arith.addf %10, %12 : vector<16x128xf32>
    %cst_6 = arith.constant 0.000000e+00 : f32
    %14 = vector.broadcast %cst_6 : f32 to vector<16x128xf32>
    %15 = arith.maximumf %13, %14 : vector<16x128xf32>
    %16 = arith.truncf %15 : vector<16x128xf32> to vector<16x128xbf16>
    %c0_7 = arith.constant 0 : index
    %c0_8 = arith.constant 0 : index
    %17 = vector.load %arg4[%c0_7, %c0_8] : memref<16x128xbf16, #tpu.memory_space<vmem>>, vector<16x128xbf16>
    tpu.vector_store %arg4[%c0_7, %c0_8], %16 {strides = array<i32>} : memref<16x128xbf16, #tpu.memory_space<vmem>>, vector<16x128xbf16>,
    return
  }
  func.func @transform_0(%arg0: i32) -> (i32, i32, i32) {
    %c0_i32 = arith.constant 0 : i32
    %c0_i32_0 = arith.constant 0 : i32
    %c0_i32_1 = arith.constant 0 : i32
    return %c0_i32, %arg0, %c0_i32_0 : i32, i32, i32
  }
  func.func @transform_1(%arg0: i32) -> (i32, i32) {
    %c0_i32 = arith.constant 0 : i32
    %c0_i32_0 = arith.constant 0 : i32
    %c0_i32_1 = arith.constant 0 : i32
    return %c0_i32, %c0_i32_0 : i32, i32
  }
  func.func @transform_2(%arg0: i32) -> (i32, i32) {
    %c0_i32 = arith.constant 0 : i32
    %c0_i32_0 = arith.constant 0 : i32
    %c0_i32_1 = arith.constant 0 : i32
    return %c0_i32, %c0_i32_0 : i32, i32
  }
  func.func @transform_3(%arg0: i32) -> (i32, i32) {
    %c0_i32 = arith.constant 0 : i32
    %c0_i32_0 = arith.constant 0 : i32
    return %arg0, %c0_i32 : i32, i32
  }
}

module attributes {stable_mosaic.version = 11 : i64} {
  func.func @_tail_kernel(%arg0: i32, %arg1: memref<32x576xbf16, #tpu.memory_space<vmem>>, %arg2: memref<576x128xbf16, #tpu.memory_space<vmem>>, %arg3: memref<1x128xf32, #tpu.memory_space<vmem>>, %arg4: memref<512x128xbf16, #tpu.memory_space<vmem>>, %arg5: memref<1x128xf32, #tpu.memory_space<vmem>>, %arg6: memref<128x128xbf16, #tpu.memory_space<vmem>>, %arg7: memref<1x128xf32, #tpu.memory_space<vmem>>, %arg8: memref<128x128xbf16, #tpu.memory_space<vmem>>, %arg9: memref<1x128xf32, #tpu.memory_space<vmem>>, %arg10: memref<2x128xf32, #tpu.memory_space<vmem>>) attributes {dimension_semantics = [#tpu.dimension_semantics<arbitrary>], iteration_bounds = array<i64: 1>, scalar_prefetch = 0 : i64, scratch_operands = 0 : i64, tpu.core_type = #tpu.core_type<tc>, window_params = [{pipeline_mode = #tpu.pipeline_mode<synchronous>, transform_indices = @transform_0, window_bounds = array<i64: 32, 576>}, {pipeline_mode = #tpu.pipeline_mode<synchronous>, transform_indices = @transform_1, window_bounds = array<i64: 576, 128>}, {pipeline_mode = #tpu.pipeline_mode<synchronous>, transform_indices = @transform_2, window_bounds = array<i64: 1, 128>}, {pipeline_mode = #tpu.pipeline_mode<synchronous>, transform_indices = @transform_3, window_bounds = array<i64: 512, 128>}, {pipeline_mode = #tpu.pipeline_mode<synchronous>, transform_indices = @transform_4, window_bounds = array<i64: 1, 128>}, {pipeline_mode = #tpu.pipeline_mode<synchronous>, transform_indices = @transform_5, window_bounds = array<i64: 128, 128>}, {pipeline_mode = #tpu.pipeline_mode<synchronous>, transform_indices = @transform_6, window_bounds = array<i64: 1, 128>}, {pipeline_mode = #tpu.pipeline_mode<synchronous>, transform_indices = @transform_7, window_bounds = array<i64: 128, 128>}, {pipeline_mode = #tpu.pipeline_mode<synchronous>, transform_indices = @transform_8, window_bounds = array<i64: 1, 128>}, {pipeline_mode = #tpu.pipeline_mode<synchronous>, transform_indices = @transform_9, window_bounds = array<i64: 2, 128>}]} {
    %c0 = arith.constant 0 : index
    %c0_0 = arith.constant 0 : index
    %0 = vector.load %arg1[%c0, %c0_0] : memref<32x576xbf16, #tpu.memory_space<vmem>>, vector<32x576xbf16>
    %c0_1 = arith.constant 0 : index
    %c0_2 = arith.constant 0 : index
    %1 = vector.load %arg2[%c0_1, %c0_2] : memref<576x128xbf16, #tpu.memory_space<vmem>>, vector<576x128xbf16>
    %cst = arith.constant dense<0.000000e+00> : vector<32x128xf32>
    %2 = tpu.matmul %0, %1, %cst {dimension_numbers = #tpu.dot_dimension_numbers<[1], [0], [0], [1], [0, 0, 1, 1], [], []>} : vector<32x576xbf16>, vector<576x128xbf16>, vector<32x128xf32> -> vector<32x128xf32>
    %3 = vector.extract_strided_slice %2 {offsets = [0, 0], sizes = [8, 128], strides = [1, 1]} : vector<32x128xf32> to vector<8x128xf32>
    %4 = vector.extract_strided_slice %2 {offsets = [8, 0], sizes = [8, 128], strides = [1, 1]} : vector<32x128xf32> to vector<8x128xf32>
    %5 = arith.maximumf %3, %4 : vector<8x128xf32>
    %6 = vector.extract_strided_slice %2 {offsets = [16, 0], sizes = [8, 128], strides = [1, 1]} : vector<32x128xf32> to vector<8x128xf32>
    %7 = vector.extract_strided_slice %2 {offsets = [24, 0], sizes = [8, 128], strides = [1, 1]} : vector<32x128xf32> to vector<8x128xf32>
    %8 = arith.maximumf %6, %7 : vector<8x128xf32>
    %9 = arith.maximumf %5, %8 : vector<8x128xf32>
    %c0_3 = arith.constant 0 : index
    %c0_4 = arith.constant 0 : index
    %10 = vector.load %arg3[%c0_3, %c0_4] : memref<1x128xf32, #tpu.memory_space<vmem>>, vector<1x128xf32>
    %11 = vector.broadcast %10 : vector<1x128xf32> to vector<8x128xf32>
    %12 = arith.addf %9, %11 : vector<8x128xf32>
    %cst_5 = arith.constant 0.000000e+00 : f32
    %13 = vector.broadcast %cst_5 : f32 to vector<8x128xf32>
    %14 = arith.maximumf %12, %13 : vector<8x128xf32>
    %c0_6 = arith.constant 0 : index
    %c0_7 = arith.constant 0 : index
    %15 = vector.load %arg4[%c0_6, %c0_7] : memref<512x128xbf16, #tpu.memory_space<vmem>>, vector<512x128xbf16>
    %16 = vector.extract_strided_slice %14 {offsets = [0, 0], sizes = [2, 128], strides = [1, 1]} : vector<8x128xf32> to vector<2x128xf32>
    %17 = arith.truncf %16 : vector<2x128xf32> to vector<2x128xbf16>
    %18 = vector.extract_strided_slice %15 {offsets = [0, 0], sizes = [128, 128], strides = [1, 1]} : vector<512x128xbf16> to vector<128x128xbf16>
    %cst_8 = arith.constant dense<0.000000e+00> : vector<2x128xf32>
    %19 = tpu.matmul %17, %18, %cst_8 {dimension_numbers = #tpu.dot_dimension_numbers<[1], [0], [0], [1], [0, 0, 1, 1], [], []>} : vector<2x128xbf16>, vector<128x128xbf16>, vector<2x128xf32> -> vector<2x128xf32>
    %20 = vector.extract_strided_slice %14 {offsets = [2, 0], sizes = [2, 128], strides = [1, 1]} : vector<8x128xf32> to vector<2x128xf32>
    %21 = arith.truncf %20 : vector<2x128xf32> to vector<2x128xbf16>
    %22 = vector.extract_strided_slice %15 {offsets = [128, 0], sizes = [128, 128], strides = [1, 1]} : vector<512x128xbf16> to vector<128x128xbf16>
    %cst_9 = arith.constant dense<0.000000e+00> : vector<2x128xf32>
    %23 = tpu.matmul %21, %22, %cst_9 {dimension_numbers = #tpu.dot_dimension_numbers<[1], [0], [0], [1], [0, 0, 1, 1], [], []>} : vector<2x128xbf16>, vector<128x128xbf16>, vector<2x128xf32> -> vector<2x128xf32>
    %24 = arith.addf %19, %23 : vector<2x128xf32>
    %25 = vector.extract_strided_slice %14 {offsets = [4, 0], sizes = [2, 128], strides = [1, 1]} : vector<8x128xf32> to vector<2x128xf32>
    %26 = arith.truncf %25 : vector<2x128xf32> to vector<2x128xbf16>
    %27 = vector.extract_strided_slice %15 {offsets = [256, 0], sizes = [128, 128], strides = [1, 1]} : vector<512x128xbf16> to vector<128x128xbf16>
    %cst_10 = arith.constant dense<0.000000e+00> : vector<2x128xf32>
    %28 = tpu.matmul %26, %27, %cst_10 {dimension_numbers = #tpu.dot_dimension_numbers<[1], [0], [0], [1], [0, 0, 1, 1], [], []>} : vector<2x128xbf16>, vector<128x128xbf16>, vector<2x128xf32> -> vector<2x128xf32>
    %29 = arith.addf %24, %28 : vector<2x128xf32>
    %30 = vector.extract_strided_slice %14 {offsets = [6, 0], sizes = [2, 128], strides = [1, 1]} : vector<8x128xf32> to vector<2x128xf32>
    %31 = arith.truncf %30 : vector<2x128xf32> to vector<2x128xbf16>
    %32 = vector.extract_strided_slice %15 {offsets = [384, 0], sizes = [128, 128], strides = [1, 1]} : vector<512x128xbf16> to vector<128x128xbf16>
    %cst_11 = arith.constant dense<0.000000e+00> : vector<2x128xf32>
    %33 = tpu.matmul %31, %32, %cst_11 {dimension_numbers = #tpu.dot_dimension_numbers<[1], [0], [0], [1], [0, 0, 1, 1], [], []>} : vector<2x128xbf16>, vector<128x128xbf16>, vector<2x128xf32> -> vector<2x128xf32>
    %34 = arith.addf %29, %33 : vector<2x128xf32>
    %c0_12 = arith.constant 0 : index
    %c0_13 = arith.constant 0 : index
    %35 = vector.load %arg5[%c0_12, %c0_13] : memref<1x128xf32, #tpu.memory_space<vmem>>, vector<1x128xf32>
    %36 = vector.broadcast %35 : vector<1x128xf32> to vector<2x128xf32>
    %37 = arith.addf %34, %36 : vector<2x128xf32>
    %cst_14 = arith.constant 0.000000e+00 : f32
    %38 = vector.broadcast %cst_14 : f32 to vector<2x128xf32>
    %39 = arith.maximumf %37, %38 : vector<2x128xf32>
    %40 = arith.truncf %39 : vector<2x128xf32> to vector<2x128xbf16>
    %c0_15 = arith.constant 0 : index
    %c0_16 = arith.constant 0 : index
    %41 = vector.load %arg6[%c0_15, %c0_16] : memref<128x128xbf16, #tpu.memory_space<vmem>>, vector<128x128xbf16>
    %cst_17 = arith.constant dense<0.000000e+00> : vector<2x128xf32>
    %42 = tpu.matmul %40, %41, %cst_17 {dimension_numbers = #tpu.dot_dimension_numbers<[1], [0], [0], [1], [0, 0, 1, 1], [], []>} : vector<2x128xbf16>, vector<128x128xbf16>, vector<2x128xf32> -> vector<2x128xf32>
    %c0_18 = arith.constant 0 : index
    %c0_19 = arith.constant 0 : index
    %43 = vector.load %arg7[%c0_18, %c0_19] : memref<1x128xf32, #tpu.memory_space<vmem>>, vector<1x128xf32>
    %44 = vector.broadcast %43 : vector<1x128xf32> to vector<2x128xf32>
    %45 = arith.addf %42, %44 : vector<2x128xf32>
    %cst_20 = arith.constant 0.000000e+00 : f32
    %46 = vector.broadcast %cst_20 : f32 to vector<2x128xf32>
    %47 = arith.maximumf %45, %46 : vector<2x128xf32>
    %48 = arith.truncf %47 : vector<2x128xf32> to vector<2x128xbf16>
    %c0_21 = arith.constant 0 : index
    %c0_22 = arith.constant 0 : index
    %49 = vector.load %arg8[%c0_21, %c0_22] : memref<128x128xbf16, #tpu.memory_space<vmem>>, vector<128x128xbf16>
    %cst_23 = arith.constant dense<0.000000e+00> : vector<2x128xf32>
    %50 = tpu.matmul %48, %49, %cst_23 {dimension_numbers = #tpu.dot_dimension_numbers<[1], [0], [0], [1], [0, 0, 1, 1], [], []>} : vector<2x128xbf16>, vector<128x128xbf16>, vector<2x128xf32> -> vector<2x128xf32>
    %c0_24 = arith.constant 0 : index
    %c0_25 = arith.constant 0 : index
    %51 = vector.load %arg9[%c0_24, %c0_25] : memref<1x128xf32, #tpu.memory_space<vmem>>, vector<1x128xf32>
    %52 = vector.broadcast %51 : vector<1x128xf32> to vector<2x128xf32>
    %53 = arith.addf %50, %52 : vector<2x128xf32>
    %c0_26 = arith.constant 0 : index
    %c0_27 = arith.constant 0 : index
    %54 = vector.load %arg10[%c0_26, %c0_27] : memref<2x128xf32, #tpu.memory_space<vmem>>, vector<2x128xf32>
    tpu.vector_store %arg10[%c0_26, %c0_27], %53 {strides = array<i32>} : memref<2x128xf32, #tpu.memory_space<vmem>>, vector<2x128xf32>,
    return
  }
  func.func @transform_0(%arg0: i32) -> (i32, i32) {
    %c0_i32 = arith.constant 0 : i32
    %c0_i32_0 = arith.constant 0 : i32
    %c0_i32_1 = arith.constant 0 : i32
    return %c0_i32, %c0_i32_0 : i32, i32
  }
  func.func @transform_1(%arg0: i32) -> (i32, i32) {
    %c0_i32 = arith.constant 0 : i32
    %c0_i32_0 = arith.constant 0 : i32
    %c0_i32_1 = arith.constant 0 : i32
    return %c0_i32, %c0_i32_0 : i32, i32
  }
  func.func @transform_2(%arg0: i32) -> (i32, i32) {
    %c0_i32 = arith.constant 0 : i32
    %c0_i32_0 = arith.constant 0 : i32
    %c0_i32_1 = arith.constant 0 : i32
    return %c0_i32, %c0_i32_0 : i32, i32
  }
  func.func @transform_3(%arg0: i32) -> (i32, i32) {
    %c0_i32 = arith.constant 0 : i32
    %c0_i32_0 = arith.constant 0 : i32
    %c0_i32_1 = arith.constant 0 : i32
    return %c0_i32, %c0_i32_0 : i32, i32
  }
  func.func @transform_4(%arg0: i32) -> (i32, i32) {
    %c0_i32 = arith.constant 0 : i32
    %c0_i32_0 = arith.constant 0 : i32
    %c0_i32_1 = arith.constant 0 : i32
    return %c0_i32, %c0_i32_0 : i32, i32
  }
  func.func @transform_5(%arg0: i32) -> (i32, i32) {
    %c0_i32 = arith.constant 0 : i32
    %c0_i32_0 = arith.constant 0 : i32
    %c0_i32_1 = arith.constant 0 : i32
    return %c0_i32, %c0_i32_0 : i32, i32
  }
  func.func @transform_6(%arg0: i32) -> (i32, i32) {
    %c0_i32 = arith.constant 0 : i32
    %c0_i32_0 = arith.constant 0 : i32
    %c0_i32_1 = arith.constant 0 : i32
    return %c0_i32, %c0_i32_0 : i32, i32
  }
  func.func @transform_7(%arg0: i32) -> (i32, i32) {
    %c0_i32 = arith.constant 0 : i32
    %c0_i32_0 = arith.constant 0 : i32
    %c0_i32_1 = arith.constant 0 : i32
    return %c0_i32, %c0_i32_0 : i32, i32
  }
  func.func @transform_8(%arg0: i32) -> (i32, i32) {
    %c0_i32 = arith.constant 0 : i32
    %c0_i32_0 = arith.constant 0 : i32
    %c0_i32_1 = arith.constant 0 : i32
    return %c0_i32, %c0_i32_0 : i32, i32
  }
  func.func @transform_9(%arg0: i32) -> (i32, i32) {
    %c0_i32 = arith.constant 0 : i32
    %c0_i32_0 = arith.constant 0 : i32
    %c0_i32_1 = arith.constant 0 : i32
    return %c0_i32, %c0_i32_0 : i32, i32
  }
}

</mosaic_0001>

<llo_original>
// kernel: vgg4_forward.4
$region0: #{vgg4_forward.4}
  #allocation0 [shape = 'u32[]', space=smem, size = 0x4, offset = 0x4, fixed_abs, tag = 'smem constant byte address 0x4 - core index']
  #allocation1 [shape = 'u32[144,128]{1,0:T(1,128)}', space=vmem, size = 0x12000, scoped, tag = 'internal scratch']
  %s0 = inlined_call_operand.vmem [shape: bf16[4,512,32], index: 0, kind: input, shape index: {}]
  %s1 = inlined_call_operand.vmem [shape: bf16[32,128], index: 1, kind: input, shape index: {}]
  %s2 = inlined_call_operand.vmem [shape: f32[1,128], index: 2, kind: input, shape index: {}]
  %s3 = inlined_call_operand.vmem [shape: bf16[512,128], index: 3, kind: output, shape index: {}]
  %s4 = sld [smem:[#allocation0]]
  $region86: #{vgg4_forward.4} parent=0
    _
  %s6 = ssub.s32 1, %s4
  %s7 = scalar_select 0, %s6, %s4
  $region1: #{vgg4_forward.4} parent=0
    #allocation2 [shape = 'u8[524288]{0}', space=vmem, size = 0x80000, scoped, tag = 'input window, operand 0']
    loop: start=0, step=1, limit=4
    $region2: #{vgg4_forward.4} parent=1 // loop_pre_header
      _
    $region3: #{vgg4_forward.4} parent=1 // loop_header
      %s9 = sphi 0, %s13
      %p10 = scmp.ge.s32.totalorder %s9, 4
      %s19 = sphi 0, %s21
      %s22 = sphi 0, %s19
      %s23 = sphi 0, %s22
      %s39 = sphi 0, %s23
      %s43 = sphi 0, %s43
      %s45 = sphi 0, %s43
      %s46 = sphi 0, %s45
      %s60 = sphi 0, %s46
      %s64 = sphi 0, %s64
      %s66 = sphi 0, %s64
      %s67 = sphi 0, %s66
      %s81 = sphi 0, %s67
      %s87 = sphi 0, %s89
      %s90 = sphi 0, %s87
      %s91 = sphi 0, %s90
      %s107 = sphi 0, %s91
    $region4: #{vgg4_forward.4} parent=1 // loop_header_branch
      %12 = sbr.rel (%p10) target = $region8
    $region5: #{vgg4_forward.4} parent=1 // loop_body
      %s14 = ssub.s32 %s9, 1
      %s15 = ssub.s32 %s9, 2
      %s16 = sadd.s32 %s9, 1
      %s17 = ssub.s32 %s9, %s16
      %p18 = scmp.eq.s32.totalorder %s17, 0
      %s20 = sadd.s32 %s19, 1
      %s21 = scalar_select %p18, %s19, %s20
      %p24 = pneg %p18
      %p25 = scmp.eq.s32.totalorder %s9, 1
      %p26 = por %p24, %p25
      %p27 = scmp.ne.s32.totalorder %s19, %s22
      %p28 = scmp.eq.s32.totalorder %s9, 0
      %p29 = por %p27, %p28
      %p30 = scmp.ne.s32.totalorder %s19, %s22
      %p31 = scmp.eq.s32.totalorder %s14, 1
      %p32 = por %p30, %p31
      %p33 = scmp.ne.s32.totalorder %s22, %s23
      %p34 = scmp.eq.s32.totalorder %s14, 0
      %p35 = por %p33, %p34
      %p36 = scmp.ne.s32.totalorder %s22, %s23
      %p37 = scmp.eq.s32.totalorder %s15, 1
      %p38 = por %p36, %p37
      %p40 = scmp.ne.s32.totalorder %s23, %s39
      %p41 = scmp.eq.s32.totalorder %s15, 0
      %p42 = por %p40, %p41
      %s44 = sadd.s32 %s43, 1
      %p47 = scmp.eq.s32.totalorder %s9, 1
      %p48 = scmp.ne.s32.totalorder %s43, %s45
      %p49 = scmp.eq.s32.totalorder %s9, 0
      %p50 = por %p48, %p49
      %p51 = scmp.ne.s32.totalorder %s43, %s45
      %p52 = scmp.eq.s32.totalorder %s14, 1
      %p53 = por %p51, %p52
      %p54 = scmp.ne.s32.totalorder %s45, %s46
      %p55 = scmp.eq.s32.totalorder %s14, 0
      %p56 = por %p54, %p55
      %p57 = scmp.ne.s32.totalorder %s45, %s46
      %p58 = scmp.eq.s32.totalorder %s15, 1
      %p59 = por %p57, %p58
      %p61 = scmp.ne.s32.totalorder %s46, %s60
      %p62 = scmp.eq.s32.totalorder %s15, 0
      %p63 = por %p61, %p62
      %s65 = sadd.s32 %s64, 1
      %p68 = scmp.eq.s32.totalorder %s9, 1
      %p69 = scmp.ne.s32.totalorder %s64, %s66
      %p70 = scmp.eq.s32.totalorder %s9, 0
      %p71 = por %p69, %p70
      %p72 = scmp.ne.s32.totalorder %s64, %s66
      %p73 = scmp.eq.s32.totalorder %s14, 1
      %p74 = por %p72, %p73
      %p75 = scmp.ne.s32.totalorder %s66, %s67
      %p76 = scmp.eq.s32.totalorder %s14, 0
      %p77 = por %p75, %p76
      %p78 = scmp.ne.s32.totalorder %s66, %s67
      %p79 = scmp.eq.s32.totalorder %s15, 1
      %p80 = por %p78, %p79
      %p82 = scmp.ne.s32.totalorder %s67, %s81
      %p83 = scmp.eq.s32.totalorder %s15, 0
      %p84 = por %p82, %p83
      %s85 = ssub.s32 %s9, %s16
      %p86 = scmp.eq.s32.totalorder %s85, 0
      %s88 = sadd.s32 %s87, 1
      %s89 = scalar_select %p86, %s87, %s88
      %p92 = pneg %p86
      %p93 = scmp.eq.s32.totalorder %s9, 1
      %p94 = por %p92, %p93
      %p95 = scmp.ne.s32.totalorder %s87, %s90
      %p96 = scmp.eq.s32.totalorder %s9, 0
      %p97 = por %p95, %p96
      %p98 = scmp.ne.s32.totalorder %s87, %s90
      %p99 = scmp.eq.s32.totalorder %s14, 1
      %p100 = por %p98, %p99
      %p101 = scmp.ne.s32.totalorder %s90, %s91
      %p102 = scmp.eq.s32.totalorder %s14, 0
      %p103 = por %p101, %p102
      %p104 = scmp.ne.s32.totalorder %s90, %s91
      %p105 = scmp.eq.s32.totalorder %s15, 1
      %p106 = por %p104, %p105
      %p108 = scmp.ne.s32.totalorder %s91, %s107
      %p109 = scmp.eq.s32.totalorder %s15, 0
      %p110 = por %p108, %p109
      %p111 = scmp.le.s32.totalorder 1, %s9
      %p112 = scmp.lt.s32.totalorder %s9, 3
      %p113 = pnand %p111, %p112
      %p114 = pneg %p113
      // Predicated region
      $region9: #{vgg4_forward.4} parent=5 // pred_check
        _
      $region10: #{vgg4_forward.4} parent=5 // pred_check_branch
        %116 = sbr.rel (%p113) target = $region12
      $region11: #{vgg4_forward.4} parent=5 // pred_region
        %s117 = ssub.s32 %s9, 1
        // Predicated region
        $region13: #{vgg4_forward.4} parent=11 // pred_check
          %p118 = pneg %p56
        $region14: #{vgg4_forward.4} parent=11 // pred_check_branch
          %120 = sbr.rel (%p118) target = $region16
        $region15: #{vgg4_forward.4} parent=11 // pred_region
          _
        $region16: #{vgg4_forward.4} parent=11 // pred_fallthru
          _
        // Predicated region
        $region17: #{vgg4_forward.4} parent=11 // pred_check
          %p121 = pneg %p77
        $region18: #{vgg4_forward.4} parent=11 // pred_check_branch
          %123 = sbr.rel (%p121) target = $region20
        $region19: #{vgg4_forward.4} parent=11 // pred_region
          _
        $region20: #{vgg4_forward.4} parent=11 // pred_fallthru
          _
      $region12: #{vgg4_forward.4} parent=5 // pred_fallthru
        _
      %p124 = scmp.lt.s32.totalorder %s9, 2
      // Predicated region
      $region21: #{vgg4_forward.4} parent=5 // pred_check
        %p125 = pneg %p124
      $region22: #{vgg4_forward.4} parent=5 // pred_check_branch
        %127 = sbr.rel (%p125) target = $region24
      $region23: #{vgg4_forward.4} parent=5 // pred_region
        // Predicated region
        $region25: #{vgg4_forward.4} parent=23 // pred_check
          %p128 = pneg %p29
        $region26: #{vgg4_forward.4} parent=23 // pred_check_branch
          %130 = sbr.rel (%p128) target = $region28
        $region27: #{vgg4_forward.4} parent=23 // pred_region
          %s131 = sand.u32 %s19, 1
          %s132 = sand.u32 %s19, 1
          %s133 = smul.addr %s132, 512
          %s134 = scalar_lea.vmem [#allocation2], %s133
          %s135 = smul.u32 32, %s9
          %s136 = smul.addr %s135, 4
          %s137 = scalar_lea.vmem %s0, %s136
          // Predicated region
          $region29: #{vgg4_forward.4} parent=27 // pred_check
            _
          $region30: #{vgg4_forward.4} parent=27 // pred_check_branch
            %139 = sbr.rel (0) target = $region32
          $region31: #{vgg4_forward.4} parent=27 // pred_region
            // Predicated region
            $region33: #{vgg4_forward.4} parent=31 // pred_check
              _
            $region34: #{vgg4_forward.4} parent=31 // pred_check_branch
              %141 = sbr.rel target = $region36
            $region35: #{vgg4_forward.4} parent=31 // pred_region
              // Predicated region
              $region48: #{vgg4_forward.4} parent=35 // pred_check
                _
              $region49: #{vgg4_forward.4} parent=35 // pred_check_branch
                %411 = sbr.rel (0) target = $region51
              $region50: #{vgg4_forward.4} parent=35 // pred_region
                loop: start=0, step=1, limit=1
                $region52: #{vgg4_forward.4} parent=50 // loop_pre_header
                  _
                $region53: #{vgg4_forward.4} parent=50 // loop_header
                  %s413 = sphi 0, %s417
                  %p414 = scmp.ge.s32.totalorder %s413, 1
                  %s418 = sphi %s137, %s137
                  %s419 = sphi %s134, %s134
                $region54: #{vgg4_forward.4} parent=50 // loop_header_branch
                  %416 = sbr.rel (%p414) target = $region58
                $region55: #{vgg4_forward.4} parent=50 // loop_body
                  _
                $region56: #{vgg4_forward.4} parent=50 // loop_footer
                  %s417 = sadd.s32 1, %s413
                $region57: #{vgg4_forward.4} parent=50 // loop_footer_branch
                  %412 = sbr.rel target = $region53
                $region58: #{vgg4_forward.4} parent=50 // loop_exit
                  _
                %s421 = ssub.s32 16, 1
                loop: start=0, step=1, limit=1
                $region59: #{vgg4_forward.4} parent=50 // loop_pre_header
                  _
                $region60: #{vgg4_forward.4} parent=50 // loop_header
                  %s423 = sphi 0, %s427
                  %p424 = scmp.ge.s32.totalorder %s423, 1
                  %s428 = sphi %s137, %s137
                  %s429 = sphi %s134, %s134
                $region61: #{vgg4_forward.4} parent=50 // loop_header_branch
                  %426 = sbr.rel (%p424) target = $region65
                $region62: #{vgg4_forward.4} parent=50 // loop_body
                  %v430 = vld [vmem:[%s428] sm:%s421]
                  %431 = vst [vmem:[%s429] sm:%s421] %v430
                  %v432 = vld [vmem:[%s428 + $0x4] sm:%s421]
                  %433 = vst [vmem:[%s429 + $0x4] sm:%s421] %v432
                  %v434 = vld [vmem:[%s428 + $0x8] sm:%s421]
                  %435 = vst [vmem:[%s429 + $0x8] sm:%s421] %v434
                  %v436 = vld [vmem:[%s428 + $0xc] sm:%s421]
                  %437 = vst [vmem:[%s429 + $0xc] sm:%s421] %v436
                  %v438 = vld [vmem:[%s428 + $0x10] sm:%s421]
                  %439 = vst [vmem:[%s429 + $0x10] sm:%s421] %v438
                  %v440 = vld [vmem:[%s428 + $0x14] sm:%s421]
                  %441 = vst [vmem:[%s429 + $0x14] sm:%s421] %v440
                  %v442 = vld [vmem:[%s428 + $0x18] sm:%s421]
                  %443 = vst [vmem:[%s429 + $0x18] sm:%s421] %v442
                  %v444 = vld [vmem:[%s428 + $0x1c] sm:%s421]
                  %445 = vst [vmem:[%s429 + $0x1c] sm:%s421] %v444
                  %v446 = vld [vmem:[%s428 + $0x20] sm:%s421]
                  %447 = vst [vmem:[%s429 + $0x20] sm:%s421] %v446
                  %v448 = vld [vmem:[%s428 + $0x24] sm:%s421]
                  %449 = vst [vmem:[%s429 + $0x24] sm:%s421] %v448
                  %v450 = vld [vmem:[%s428 + $0x28] sm:%s421]
                  %451 = vst [vmem:[%s429 + $0x28] sm:%s421] %v450
                  %v452 = vld [vmem:[%s428 + $0x2c] sm:%s421]
                  %453 = vst [vmem:[%s429 + $0x2c] sm:%s421] %v452
                  %v454 = vld [vmem:[%s428 + $0x30] sm:%s421]
                  %455 = vst [vmem:[%s429 + $0x30] sm:%s421] %v454
                  %v456 = vld [vmem:[%s428 + $0x34] sm:%s421]
                  %457 = vst [vmem:[%s429 + $0x34] sm:%s421] %v456
                  %v458 = vld [vmem:[%s428 + $0x38] sm:%s421]
                  %459 = vst [vmem:[%s429 + $0x38] sm:%s421] %v458
                  %v460 = vld [vmem:[%s428 + $0x3c] sm:%s421]
                  %461 = vst [vmem:[%s429 + $0x3c] sm:%s421] %v460
                  %v462 = vld [vmem:[%s428 + $0x40] sm:%s421]
                  %463 = vst [vmem:[%s429 + $0x40] sm:%s421] %v462
                  %v464 = vld [vmem:[%s428 + $0x44] sm:%s421]
                  %465 = vst [vmem:[%s429 + $0x44] sm:%s421] %v464
                  %v466 = vld [vmem:[%s428 + $0x48] sm:%s421]
                  %467 = vst [vmem:[%s429 + $0x48] sm:%s421] %v466
                  %v468 = vld [vmem:[%s428 + $0x4c] sm:%s421]
                  %469 = vst [vmem:[%s429 + $0x4c] sm:%s421] %v468
                  %v470 = vld [vmem:[%s428 + $0x50] sm:%s421]
                  %471 = vst [vmem:[%s429 + $0x50] sm:%s421] %v470
                  %v472 = vld [vmem:[%s428 + $0x54] sm:%s421]
                  %473 = vst [vmem:[%s429 + $0x54] sm:%s421] %v472
                  %v474 = vld [vmem:[%s428 + $0x58] sm:%s421]
                  %475 = vst [vmem:[%s429 + $0x58] sm:%s421] %v474
                  %v476 = vld [vmem:[%s428 + $0x5c] sm:%s421]
                  %477 = vst [vmem:[%s429 + $0x5c] sm:%s421] %v476
                  %v478 = vld [vmem:[%s428 + $0x60] sm:%s421]
                  %479 = vst [vmem:[%s429 + $0x60] sm:%s421] %v478
                  %v480 = vld [vmem:[%s428 + $0x64] sm:%s421]
                  %481 = vst [vmem:[%s429 + $0x64] sm:%s421] %v480
                  %v482 = vld [vmem:[%s428 + $0x68] sm:%s421]
                  %483 = vst [vmem:[%s429 + $0x68] sm:%s421] %v482
                  %v484 = vld [vmem:[%s428 + $0x6c] sm:%s421]
                  %485 = vst [vmem:[%s429 + $0x6c] sm:%s421] %v484
                  %v486 = vld [vmem:[%s428 + $0x70] sm:%s421]
                  %487 = vst [vmem:[%s429 + $0x70] sm:%s421] %v486
                  %v488 = vld [vmem:[%s428 + $0x74] sm:%s421]
                  %489 = vst [vmem:[%s429 + $0x74] sm:%s421] %v488
                  %v490 = vld [vmem:[%s428 + $0x78] sm:%s421]
                  %491 = vst [vmem:[%s429 + $0x78] sm:%s421] %v490
                  %v492 = vld [vmem:[%s428 + $0x7c] sm:%s421]
                  %493 = vst [vmem:[%s429 + $0x7c] sm:%s421] %v492
                  %v494 = vld [vmem:[%s428 + $0x100] sm:%s421]
                  %495 = vst [vmem:[%s429 + $0x80] sm:%s421] %v494
                  %v496 = vld [vmem:[%s428 + $0x104] sm:%s421]
                  %497 = vst [vmem:[%s429 + $0x84] sm:%s421] %v496
                  %v498 = vld [vmem:[%s428 + $0x108] sm:%s421]
                  %499 = vst [vmem:[%s429 + $0x88] sm:%s421] %v498
                  %v500 = vld [vmem:[%s428 + $0x10c] sm:%s421]
                  %501 = vst [vmem:[%s429 + $0x8c] sm:%s421] %v500
                  %v502 = vld [vmem:[%s428 + $0x110] sm:%s421]
                  %503 = vst [vmem:[%s429 + $0x90] sm:%s421] %v502
                  %v504 = vld [vmem:[%s428 + $0x114] sm:%s421]
                  %505 = vst [vmem:[%s429 + $0x94] sm:%s421] %v504
                  %v506 = vld [vmem:[%s428 + $0x118] sm:%s421]
                  %507 = vst [vmem:[%s429 + $0x98] sm:%s421] %v506
                  %v508 = vld [vmem:[%s428 + $0x11c] sm:%s421]
                  %509 = vst [vmem:[%s429 + $0x9c] sm:%s421] %v508
                  %v510 = vld [vmem:[%s428 + $0x120] sm:%s421]
                  %511 = vst [vmem:[%s429 + $0xa0] sm:%s421] %v510
                  %v512 = vld [vmem:[%s428 + $0x124] sm:%s421]
                  %513 = vst [vmem:[%s429 + $0xa4] sm:%s421] %v512
                  %v514 = vld [vmem:[%s428 + $0x128] sm:%s421]
                  %515 = vst [vmem:[%s429 + $0xa8] sm:%s421] %v514
                  %v516 = vld [vmem:[%s428 + $0x12c] sm:%s421]
                  %517 = vst [vmem:[%s429 + $0xac] sm:%s421] %v516
                  %v518 = vld [vmem:[%s428 + $0x130] sm:%s421]
                  %519 = vst [vmem:[%s429 + $0xb0] sm:%s421] %v518
                  %v520 = vld [vmem:[%s428 + $0x134] sm:%s421]
                  %521 = vst [vmem:[%s429 + $0xb4] sm:%s421] %v520
                  %v522 = vld [vmem:[%s428 + $0x138] sm:%s421]
                  %523 = vst [vmem:[%s429 + $0xb8] sm:%s421] %v522
                  %v524 = vld [vmem:[%s428 + $0x13c] sm:%s421]
                  %525 = vst [vmem:[%s429 + $0xbc] sm:%s421] %v524
                  %v526 = vld [vmem:[%s428 + $0x140] sm:%s421]
                  %527 = vst [vmem:[%s429 + $0xc0] sm:%s421] %v526
                  %v528 = vld [vmem:[%s428 + $0x144] sm:%s421]
                  %529 = vst [vmem:[%s429 + $0xc4] sm:%s421] %v528
                  %v530 = vld [vmem:[%s428 + $0x148] sm:%s421]
                  %531 = vst [vmem:[%s429 + $0xc8] sm:%s421] %v530
                  %v532 = vld [vmem:[%s428 + $0x14c] sm:%s421]
                  %533 = vst [vmem:[%s429 + $0xcc] sm:%s421] %v532
                  %v534 = vld [vmem:[%s428 + $0x150] sm:%s421]
                  %535 = vst [vmem:[%s429 + $0xd0] sm:%s421] %v534
                  %v536 = vld [vmem:[%s428 + $0x154] sm:%s421]
                  %537 = vst [vmem:[%s429 + $0xd4] sm:%s421] %v536
                  %v538 = vld [vmem:[%s428 + $0x158] sm:%s421]
                  %539 = vst [vmem:[%s429 + $0xd8] sm:%s421] %v538
                  %v540 = vld [vmem:[%s428 + $0x15c] sm:%s421]
                  %541 = vst [vmem:[%s429 + $0xdc] sm:%s421] %v540
                  %v542 = vld [vmem:[%s428 + $0x160] sm:%s421]
                  %543 = vst [vmem:[%s429 + $0xe0] sm:%s421] %v542
                  %v544 = vld [vmem:[%s428 + $0x164] sm:%s421]
                  %545 = vst [vmem:[%s429 + $0xe4] sm:%s421] %v544
                  %v546 = vld [vmem:[%s428 + $0x168] sm:%s421]
                  %547 = vst [vmem:[%s429 + $0xe8] sm:%s421] %v546
                  %v548 = vld [vmem:[%s428 + $0x16c] sm:%s421]
                  %549 = vst [vmem:[%s429 + $0xec] sm:%s421] %v548
                  %v550 = vld [vmem:[%s428 + $0x170] sm:%s421]
                  %551 = vst [vmem:[%s429 + $0xf0] sm:%s421] %v550
                  %v552 = vld [vmem:[%s428 + $0x174] sm:%s421]
                  %553 = vst [vmem:[%s429 + $0xf4] sm:%s421] %v552
                  %v554 = vld [vmem:[%s428 + $0x178] sm:%s421]
                  %555 = vst [vmem:[%s429 + $0xf8] sm:%s421] %v554
                  %v556 = vld [vmem:[%s428 + $0x17c] sm:%s421]
                  %557 = vst [vmem:[%s429 + $0xfc] sm:%s421] %v556
                  %v558 = vld [vmem:[%s428 + $0x200] sm:%s421]
                  %559 = vst [vmem:[%s429 + $0x100] sm:%s421] %v558
                  %v560 = vld [vmem:[%s428 + $0x204] sm:%s421]
                  %561 = vst [vmem:[%s429 + $0x104] sm:%s421] %v560
                  %v562 = vld [vmem:[%s428 + $0x208] sm:%s421]
                  %563 = vst [vmem:[%s429 + $0x108] sm:%s421] %v562
                  %v564 = vld [vmem:[%s428 + $0x20c] sm:%s421]
                  %565 = vst [vmem:[%s429 + $0x10c] sm:%s421] %v564
                  %v566 = vld [vmem:[%s428 + $0x210] sm:%s421]
                  %567 = vst [vmem:[%s429 + $0x110] sm:%s421] %v566
                  %v568 = vld [vmem:[%s428 + $0x214] sm:%s421]
                  %569 = vst [vmem:[%s429 + $0x114] sm:%s421] %v568
                  %v570 = vld [vmem:[%s428 + $0x218] sm:%s421]
                  %571 = vst [vmem:[%s429 + $0x118] sm:%s421] %v570
                  %v572 = vld [vmem:[%s428 + $0x21c] sm:%s421]
                  %573 = vst [vmem:[%s429 + $0x11c] sm:%s421] %v572
                  %v574 = vld [vmem:[%s428 + $0x220] sm:%s421]
                  %575 = vst [vmem:[%s429 + $0x120] sm:%s421] %v574
                  %v576 = vld [vmem:[%s428 + $0x224] sm:%s421]
                  %577 = vst [vmem:[%s429 + $0x124] sm:%s421] %v576
                  %v578 = vld [vmem:[%s428 + $0x228] sm:%s421]
                  %579 = vst [vmem:[%s429 + $0x128] sm:%s421] %v578
                  %v580 = vld [vmem:[%s428 + $0x22c] sm:%s421]
                  %581 = vst [vmem:[%s429 + $0x12c] sm:%s421] %v580
                  %v582 = vld [vmem:[%s428 + $0x230] sm:%s421]
                  %583 = vst [vmem:[%s429 + $0x130] sm:%s421] %v582
                  %v584 = vld [vmem:[%s428 + $0x234] sm:%s421]
                  %585 = vst [vmem:[%s429 + $0x134] sm:%s421] %v584
                  %v586 = vld [vmem:[%s428 + $0x238] sm:%s421]
                  %587 = vst [vmem:[%s429 + $0x138] sm:%s421] %v586
                  %v588 = vld [vmem:[%s428 + $0x23c] sm:%s421]
                  %589 = vst [vmem:[%s429 + $0x13c] sm:%s421] %v588
                  %v590 = vld [vmem:[%s428 + $0x240] sm:%s421]
                  %591 = vst [vmem:[%s429 + $0x140] sm:%s421] %v590
                  %v592 = vld [vmem:[%s428 + $0x244] sm:%s421]
                  %593 = vst [vmem:[%s429 + $0x144] sm:%s421] %v592
                  %v594 = vld [vmem:[%s428 + $0x248] sm:%s421]
                  %595 = vst [vmem:[%s429 + $0x148] sm:%s421] %v594
                  %v596 = vld [vmem:[%s428 + $0x24c] sm:%s421]
                  %597 = vst [vmem:[%s429 + $0x14c] sm:%s421] %v596
                  %v598 = vld [vmem:[%s428 + $0x250] sm:%s421]
                  %599 = vst [vmem:[%s429 + $0x150] sm:%s421] %v598
                  %v600 = vld [vmem:[%s428 + $0x254] sm:%s421]
                  %601 = vst [vmem:[%s429 + $0x154] sm:%s421] %v600
                  %v602 = vld [vmem:[%s428 + $0x258] sm:%s421]
                  %603 = vst [vmem:[%s429 + $0x158] sm:%s421] %v602
                  %v604 = vld [vmem:[%s428 + $0x25c] sm:%s421]
                  %605 = vst [vmem:[%s429 + $0x15c] sm:%s421] %v604
                  %v606 = vld [vmem:[%s428 + $0x260] sm:%s421]
                  %607 = vst [vmem:[%s429 + $0x160] sm:%s421] %v606
                  %v608 = vld [vmem:[%s428 + $0x264] sm:%s421]
                  %609 = vst [vmem:[%s429 + $0x164] sm:%s421] %v608
                  %v610 = vld [vmem:[%s428 + $0x268] sm:%s421]
                  %611 = vst [vmem:[%s429 + $0x168] sm:%s421] %v610
                  %v612 = vld [vmem:[%s428 + $0x26c] sm:%s421]
                  %613 = vst [vmem:[%s429 + $0x16c] sm:%s421] %v612
                  %v614 = vld [vmem:[%s428 + $0x270] sm:%s421]
                  %615 = vst [vmem:[%s429 + $0x170] sm:%s421] %v614
                  %v616 = vld [vmem:[%s428 + $0x274] sm:%s421]
                  %617 = vst [vmem:[%s429 + $0x174] sm:%s421] %v616
                  %v618 = vld [vmem:[%s428 + $0x278] sm:%s421]
                  %619 = vst [vmem:[%s429 + $0x178] sm:%s421] %v618
                  %v620 = vld [vmem:[%s428 + $0x27c] sm:%s421]
                  %621 = vst [vmem:[%s429 + $0x17c] sm:%s421] %v620
                  %v622 = vld [vmem:[%s428 + $0x300] sm:%s421]
                  %623 = vst [vmem:[%s429 + $0x180] sm:%s421] %v622
                  %v624 = vld [vmem:[%s428 + $0x304] sm:%s421]
                  %625 = vst [vmem:[%s429 + $0x184] sm:%s421] %v624
                  %v626 = vld [vmem:[%s428 + $0x308] sm:%s421]
                  %627 = vst [vmem:[%s429 + $0x188] sm:%s421] %v626
                  %v628 = vld [vmem:[%s428 + $0x30c] sm:%s421]
                  %629 = vst [vmem:[%s429 + $0x18c] sm:%s421] %v628
                  %v630 = vld [vmem:[%s428 + $0x310] sm:%s421]
                  %631 = vst [vmem:[%s429 + $0x190] sm:%s421] %v630
                  %v632 = vld [vmem:[%s428 + $0x314] sm:%s421]
                  %633 = vst [vmem:[%s429 + $0x194] sm:%s421] %v632
                  %v634 = vld [vmem:[%s428 + $0x318] sm:%s421]
                  %635 = vst [vmem:[%s429 + $0x198] sm:%s421] %v634
                  %v636 = vld [vmem:[%s428 + $0x31c] sm:%s421]
                  %637 = vst [vmem:[%s429 + $0x19c] sm:%s421] %v636
                  %v638 = vld [vmem:[%s428 + $0x320] sm:%s421]
                  %639 = vst [vmem:[%s429 + $0x1a0] sm:%s421] %v638
                  %v640 = vld [vmem:[%s428 + $0x324] sm:%s421]
                  %641 = vst [vmem:[%s429 + $0x1a4] sm:%s421] %v640
                  %v642 = vld [vmem:[%s428 + $0x328] sm:%s421]
                  %643 = vst [vmem:[%s429 + $0x1a8] sm:%s421] %v642
                  %v644 = vld [vmem:[%s428 + $0x32c] sm:%s421]
                  %645 = vst [vmem:[%s429 + $0x1ac] sm:%s421] %v644
                  %v646 = vld [vmem:[%s428 + $0x330] sm:%s421]
                  %647 = vst [vmem:[%s429 + $0x1b0] sm:%s421] %v646
                  %v648 = vld [vmem:[%s428 + $0x334] sm:%s421]
                  %649 = vst [vmem:[%s429 + $0x1b4] sm:%s421] %v648
                  %v650 = vld [vmem:[%s428 + $0x338] sm:%s421]
                  %651 = vst [vmem:[%s429 + $0x1b8] sm:%s421] %v650
                  %v652 = vld [vmem:[%s428 + $0x33c] sm:%s421]
                  %653 = vst [vmem:[%s429 + $0x1bc] sm:%s421] %v652
                  %v654 = vld [vmem:[%s428 + $0x340] sm:%s421]
                  %655 = vst [vmem:[%s429 + $0x1c0] sm:%s421] %v654
                  %v656 = vld [vmem:[%s428 + $0x344] sm:%s421]
                  %657 = vst [vmem:[%s429 + $0x1c4] sm:%s421] %v656
                  %v658 = vld [vmem:[%s428 + $0x348] sm:%s421]
                  %659 = vst [vmem:[%s429 + $0x1c8] sm:%s421] %v658
                  %v660 = vld [vmem:[%s428 + $0x34c] sm:%s421]
                  %661 = vst [vmem:[%s429 + $0x1cc] sm:%s421] %v660
                  %v662 = vld [vmem:[%s428 + $0x350] sm:%s421]
                  %663 = vst [vmem:[%s429 + $0x1d0] sm:%s421] %v662
                  %v664 = vld [vmem:[%s428 + $0x354] sm:%s421]
                  %665 = vst [vmem:[%s429 + $0x1d4] sm:%s421] %v664
                  %v666 = vld [vmem:[%s428 + $0x358] sm:%s421]
                  %667 = vst [vmem:[%s429 + $0x1d8] sm:%s421] %v666
                  %v668 = vld [vmem:[%s428 + $0x35c] sm:%s421]
                  %669 = vst [vmem:[%s429 + $0x1dc] sm:%s421] %v668
                  %v670 = vld [vmem:[%s428 + $0x360] sm:%s421]
                  %671 = vst [vmem:[%s429 + $0x1e0] sm:%s421] %v670
                  %v672 = vld [vmem:[%s428 + $0x364] sm:%s421]
                  %673 = vst [vmem:[%s429 + $0x1e4] sm:%s421] %v672
                  %v674 = vld [vmem:[%s428 + $0x368] sm:%s421]
                  %675 = vst [vmem:[%s429 + $0x1e8] sm:%s421] %v674
                  %v676 = vld [vmem:[%s428 + $0x36c] sm:%s421]
                  %677 = vst [vmem:[%s429 + $0x1ec] sm:%s421] %v676
                  %v678 = vld [vmem:[%s428 + $0x370] sm:%s421]
                  %679 = vst [vmem:[%s429 + $0x1f0] sm:%s421] %v678
                  %v680 = vld [vmem:[%s428 + $0x374] sm:%s421]
                  %681 = vst [vmem:[%s429 + $0x1f4] sm:%s421] %v680
                  %v682 = vld [vmem:[%s428 + $0x378] sm:%s421]
                  %683 = vst [vmem:[%s429 + $0x1f8] sm:%s421] %v682
                  %v684 = vld [vmem:[%s428 + $0x37c] sm:%s421]
                  %685 = vst [vmem:[%s429 + $0x1fc] sm:%s421] %v684
                $region63: #{vgg4_forward.4} parent=50 // loop_footer
                  %s427 = sadd.s32 1, %s423
                $region64: #{vgg4_forward.4} parent=50 // loop_footer_branch
                  %422 = sbr.rel target = $region60
                $region65: #{vgg4_forward.4} parent=50 // loop_exit
                  _
              $region51: #{vgg4_forward.4} parent=35 // pred_fallthru
                _
            $region36: #{vgg4_forward.4} parent=31 // pred_fallthru
              _
            // Predicated region
            $region37: #{vgg4_forward.4} parent=31 // pred_check
              _
            $region38: #{vgg4_forward.4} parent=31 // pred_check_branch
              %143 = sbr.rel (0) target = $region40
            $region39: #{vgg4_forward.4} parent=31 // pred_region
              %s145 = ssub.s32 16, 1
              loop: start=0, step=1, limit=1
              $region41: #{vgg4_forward.4} parent=39 // loop_pre_header
                _
              $region42: #{vgg4_forward.4} parent=39 // loop_header
                %s147 = sphi 0, %s151
                %p148 = scmp.ge.s32.totalorder %s147, 1
                %s152 = sphi %s137, %s137
                %s153 = sphi %s134, %s134
              $region43: #{vgg4_forward.4} parent=39 // loop_header_branch
                %150 = sbr.rel (%p148) target = $region47
              $region44: #{vgg4_forward.4} parent=39 // loop_body
                %v154 = vld [vmem:[%s152] sm:%s145]
                %155 = vst [vmem:[%s153] sm:%s145] %v154
                %v156 = vld [vmem:[%s152 + $0x4] sm:%s145]
                %157 = vst [vmem:[%s153 + $0x4] sm:%s145] %v156
                %v158 = vld [vmem:[%s152 + $0x8] sm:%s145]
                %159 = vst [vmem:[%s153 + $0x8] sm:%s145] %v158
                %v160 = vld [vmem:[%s152 + $0xc] sm:%s145]
                %161 = vst [vmem:[%s153 + $0xc] sm:%s145] %v160
                %v162 = vld [vmem:[%s152 + $0x10] sm:%s145]
                %163 = vst [vmem:[%s153 + $0x10] sm:%s145] %v162
                %v164 = vld [vmem:[%s152 + $0x14] sm:%s145]
                %165 = vst [vmem:[%s153 + $0x14] sm:%s145] %v164
                %v166 = vld [vmem:[%s152 + $0x18] sm:%s145]
                %167 = vst [vmem:[%s153 + $0x18] sm:%s145] %v166
                %v168 = vld [vmem:[%s152 + $0x1c] sm:%s145]
                %169 = vst [vmem:[%s153 + $0x1c] sm:%s145] %v168
                %v170 = vld [vmem:[%s152 + $0x20] sm:%s145]
                %171 = vst [vmem:[%s153 + $0x20] sm:%s145] %v170
                %v172 = vld [vmem:[%s152 + $0x24] sm:%s145]
                %173 = vst [vmem:[%s153 + $0x24] sm:%s145] %v172
                %v174 = vld [vmem:[%s152 + $0x28] sm:%s145]
                %175 = vst [vmem:[%s153 + $0x28] sm:%s145] %v174
                %v176 = vld [vmem:[%s152 + $0x2c] sm:%s145]
                %177 = vst [vmem:[%s153 + $0x2c] sm:%s145] %v176
                %v178 = vld [vmem:[%s152 + $0x30] sm:%s145]
                %179 = vst [vmem:[%s153 + $0x30] sm:%s145] %v178
                %v180 = vld [vmem:[%s152 + $0x34] sm:%s145]
                %181 = vst [vmem:[%s153 + $0x34] sm:%s145] %v180
                %v182 = vld [vmem:[%s152 + $0x38] sm:%s145]
                %183 = vst [vmem:[%s153 + $0x38] sm:%s145] %v182
                %v184 = vld [vmem:[%s152 + $0x3c] sm:%s145]
                %185 = vst [vmem:[%s153 + $0x3c] sm:%s145] %v184
                %v186 = vld [vmem:[%s152 + $0x40] sm:%s145]
                %187 = vst [vmem:[%s153 + $0x40] sm:%s145] %v186
                %v188 = vld [vmem:[%s152 + $0x44] sm:%s145]
                %189 = vst [vmem:[%s153 + $0x44] sm:%s145] %v188
                %v190 = vld [vmem:[%s152 + $0x48] sm:%s145]
                %191 = vst [vmem:[%s153 + $0x48] sm:%s145] %v190
                %v192 = vld [vmem:[%s152 + $0x4c] sm:%s145]
                %193 = vst [vmem:[%s153 + $0x4c] sm:%s145] %v192
                %v194 = vld [vmem:[%s152 + $0x50] sm:%s145]
                %195 = vst [vmem:[%s153 + $0x50] sm:%s145] %v194
                %v196 = vld [vmem:[%s152 + $0x54] sm:%s145]
                %197 = vst [vmem:[%s153 + $0x54] sm:%s145] %v196
                %v198 = vld [vmem:[%s152 + $0x58] sm:%s145]
                %199 = vst [vmem:[%s153 + $0x58] sm:%s145] %v198
                %v200 = vld [vmem:[%s152 + $0x5c] sm:%s145]
                %201 = vst [vmem:[%s153 + $0x5c] sm:%s145] %v200
                %v202 = vld [vmem:[%s152 + $0x60] sm:%s145]
                %203 = vst [vmem:[%s153 + $0x60] sm:%s145] %v202
                %v204 = vld [vmem:[%s152 + $0x64] sm:%s145]
                %205 = vst [vmem:[%s153 + $0x64] sm:%s145] %v204
                %v206 = vld [vmem:[%s152 + $0x68] sm:%s145]
                %207 = vst [vmem:[%s153 + $0x68] sm:%s145] %v206
                %v208 = vld [vmem:[%s152 + $0x6c] sm:%s145]
                %209 = vst [vmem:[%s153 + $0x6c] sm:%s145] %v208
                %v210 = vld [vmem:[%s152 + $0x70] sm:%s145]
                %211 = vst [vmem:[%s153 + $0x70] sm:%s145] %v210
                %v212 = vld [vmem:[%s152 + $0x74] sm:%s145]
                %213 = vst [vmem:[%s153 + $0x74] sm:%s145] %v212
                %v214 = vld [vmem:[%s152 + $0x78] sm:%s145]
                %215 = vst [vmem:[%s153 + $0x78] sm:%s145] %v214
                %v216 = vld [vmem:[%s152 + $0x7c] sm:%s145]
                %217 = vst [vmem:[%s153 + $0x7c] sm:%s145] %v216
                %v218 = vld [vmem:[%s152 + $0x100] sm:%s145]
                %219 = vst [vmem:[%s153 + $0x80] sm:%s145] %v218
                %v220 = vld [vmem:[%s152 + $0x104] sm:%s145]
                %221 = vst [vmem:[%s153 + $0x84] sm:%s145] %v220
                %v222 = vld [vmem:[%s152 + $0x108] sm:%s145]
                %223 = vst [vmem:[%s153 + $0x88] sm:%s145] %v222
                %v224 = vld [vmem:[%s152 + $0x10c] sm:%s145]
                %225 = vst [vmem:[%s153 + $0x8c] sm:%s145] %v224
                %v226 = vld [vmem:[%s152 + $0x110] sm:%s145]
                %227 = vst [vmem:[%s153 + $0x90] sm:%s145] %v226
                %v228 = vld [vmem:[%s152 + $0x114] sm:%s145]
                %229 = vst [vmem:[%s153 + $0x94] sm:%s145] %v228
                %v230 = vld [vmem:[%s152 + $0x118] sm:%s145]
                %231 = vst [vmem:[%s153 + $0x98] sm:%s145] %v230
                %v232 = vld [vmem:[%s152 + $0x11c] sm:%s145]
                %233 = vst [vmem:[%s153 + $0x9c] sm:%s145] %v232
                %v234 = vld [vmem:[%s152 + $0x120] sm:%s145]
                %235 = vst [vmem:[%s153 + $0xa0] sm:%s145] %v234
                %v236 = vld [vmem:[%s152 + $0x124] sm:%s145]
                %237 = vst [vmem:[%s153 + $0xa4] sm:%s145] %v236
                %v238 = vld [vmem:[%s152 + $0x128] sm:%s145]
                %239 = vst [vmem:[%s153 + $0xa8] sm:%s145] %v238
                %v240 = vld [vmem:[%s152 + $0x12c] sm:%s145]
                %241 = vst [vmem:[%s153 + $0xac] sm:%s145] %v240
                %v242 = vld [vmem:[%s152 + $0x130] sm:%s145]
                %243 = vst [vmem:[%s153 + $0xb0] sm:%s145] %v242
                %v244 = vld [vmem:[%s152 + $0x134] sm:%s145]
                %245 = vst [vmem:[%s153 + $0xb4] sm:%s145] %v244
                %v246 = vld [vmem:[%s152 + $0x138] sm:%s145]
                %247 = vst [vmem:[%s153 + $0xb8] sm:%s145] %v246
                %v248 = vld [vmem:[%s152 + $0x13c] sm:%s145]
                %249 = vst [vmem:[%s153 + $0xbc] sm:%s145] %v248
                %v250 = vld [vmem:[%s152 + $0x140] sm:%s145]
                %251 = vst [vmem:[%s153 + $0xc0] sm:%s145] %v250
                %v252 = vld [vmem:[%s152 + $0x144] sm:%s145]
                %253 = vst [vmem:[%s153 + $0xc4] sm:%s145] %v252
                %v254 = vld [vmem:[%s152 + $0x148] sm:%s145]
                %255 = vst [vmem:[%s153 + $0xc8] sm:%s145] %v254
                %v256 = vld [vmem:[%s152 + $0x14c] sm:%s145]
                %257 = vst [vmem:[%s153 + $0xcc] sm:%s145] %v256
                %v258 = vld [vmem:[%s152 + $0x150] sm:%s145]
                %259 = vst [vmem:[%s153 + $0xd0] sm:%s145] %v258
                %v260 = vld [vmem:[%s152 + $0x154] sm:%s145]
                %261 = vst [vmem:[%s153 + $0xd4] sm:%s145] %v260
                %v262 = vld [vmem:[%s152 + $0x158] sm:%s145]
                %263 = vst [vmem:[%s153 + $0xd8] sm:%s145] %v262
                %v264 = vld [vmem:[%s152 + $0x15c] sm:%s145]
                %265 = vst [vmem:[%s153 + $0xdc] sm:%s145] %v264
                %v266 = vld [vmem:[%s152 + $0x160] sm:%s145]
                %267 = vst [vmem:[%s153 + $0xe0] sm:%s145] %v266
                %v268 = vld [vmem:[%s152 + $0x164] sm:%s145]
                %269 = vst [vmem:[%s153 + $0xe4] sm:%s145] %v268
                %v270 = vld [vmem:[%s152 + $0x168] sm:%s145]
                %271 = vst [vmem:[%s153 + $0xe8] sm:%s145] %v270
                %v272 = vld [vmem:[%s152 + $0x16c] sm:%s145]
                %273 = vst [vmem:[%s153 + $0xec] sm:%s145] %v272
                %v274 = vld [vmem:[%s152 + $0x170] sm:%s145]
                %275 = vst [vmem:[%s153 + $0xf0] sm:%s145] %v274
                %v276 = vld [vmem:[%s152 + $0x174] sm:%s145]
                %277 = vst [vmem:[%s153 + $0xf4] sm:%s145] %v276
                %v278 = vld [vmem:[%s152 + $0x178] sm:%s145]
                %279 = vst [vmem:[%s153 + $0xf8] sm:%s145] %v278
                %v280 = vld [vmem:[%s152 + $0x17c] sm:%s145]
                %281 = vst [vmem:[%s153 + $0xfc] sm:%s145] %v280
                %v282 = vld [vmem:[%s152 + $0x200] sm:%s145]
                %283 = vst [vmem:[%s153 + $0x100] sm:%s145] %v282
                %v284 = vld [vmem:[%s152 + $0x204] sm:%s145]
                %285 = vst [vmem:[%s153 + $0x104] sm:%s145] %v284
                %v286 = vld [vmem:[%s152 + $0x208] sm:%s145]
                %287 = vst [vmem:[%s153 + $0x108] sm:%s145] %v286
                %v288 = vld [vmem:[%s152 + $0x20c] sm:%s145]
                %289 = vst [vmem:[%s153 + $0x10c] sm:%s145] %v288
                %v290 = vld [vmem:[%s152 + $0x210] sm:%s145]
                %291 = vst [vmem:[%s153 + $0x110] sm:%s145] %v290
                %v292 = vld [vmem:[%s152 + $0x214] sm:%s145]
                %293 = vst [vmem:[%s153 + $0x114] sm:%s145] %v292
                %v294 = vld [vmem:[%s152 + $0x218] sm:%s145]
                %295 = vst [vmem:[%s153 + $0x118] sm:%s145] %v294
                %v296 = vld [vmem:[%s152 + $0x21c] sm:%s145]
                %297 = vst [vmem:[%s153 + $0x11c] sm:%s145] %v296
                %v298 = vld [vmem:[%s152 + $0x220] sm:%s145]
                %299 = vst [vmem:[%s153 + $0x120] sm:%s145] %v298
                %v300 = vld [vmem:[%s152 + $0x224] sm:%s145]
                %301 = vst [vmem:[%s153 + $0x124] sm:%s145] %v300
                %v302 = vld [vmem:[%s152 + $0x228] sm:%s145]
                %303 = vst [vmem:[%s153 + $0x128] sm:%s145] %v302
                %v304 = vld [vmem:[%s152 + $0x22c] sm:%s145]
                %305 = vst [vmem:[%s153 + $0x12c] sm:%s145] %v304
                %v306 = vld [vmem:[%s152 + $0x230] sm:%s145]
                %307 = vst [vmem:[%s153 + $0x130] sm:%s145] %v306
                %v308 = vld [vmem:[%s152 + $0x234] sm:%s145]
                %309 = vst [vmem:[%s153 + $0x134] sm:%s145] %v308
                %v310 = vld [vmem:[%s152 + $0x238] sm:%s145]
                %311 = vst [vmem:[%s153 + $0x138] sm:%s145] %v310
                %v312 = vld [vmem:[%s152 + $0x23c] sm:%s145]
                %313 = vst [vmem:[%s153 + $0x13c] sm:%s145] %v312
                %v314 = vld [vmem:[%s152 + $0x240] sm:%s145]
                %315 = vst [vmem:[%s153 + $0x140] sm:%s145] %v314
                %v316 = vld [vmem:[%s152 + $0x244] sm:%s145]
                %317 = vst [vmem:[%s153 + $0x144] sm:%s145] %v316
                %v318 = vld [vmem:[%s152 + $0x248] sm:%s145]
                %319 = vst [vmem:[%s153 + $0x148] sm:%s145] %v318
                %v320 = vld [vmem:[%s152 + $0x24c] sm:%s145]
                %321 = vst [vmem:[%s153 + $0x14c] sm:%s145] %v320
                %v322 = vld [vmem:[%s152 + $0x250] sm:%s145]
                %323 = vst [vmem:[%s153 + $0x150] sm:%s145] %v322
                %v324 = vld [vmem:[%s152 + $0x254] sm:%s145]
                %325 = vst [vmem:[%s153 + $0x154] sm:%s145] %v324
                %v326 = vld [vmem:[%s152 + $0x258] sm:%s145]
                %327 = vst [vmem:[%s153 + $0x158] sm:%s145] %v326
                %v328 = vld [vmem:[%s152 + $0x25c] sm:%s145]
                %329 = vst [vmem:[%s153 + $0x15c] sm:%s145] %v328
                %v330 = vld [vmem:[%s152 + $0x260] sm:%s145]
                %331 = vst [vmem:[%s153 + $0x160] sm:%s145] %v330
                %v332 = vld [vmem:[%s152 + $0x264] sm:%s145]
                %333 = vst [vmem:[%s153 + $0x164] sm:%s145] %v332
                %v334 = vld [vmem:[%s152 + $0x268] sm:%s145]
                %335 = vst [vmem:[%s153 + $0x168] sm:%s145] %v334
                %v336 = vld [vmem:[%s152 + $0x26c] sm:%s145]
                %337 = vst [vmem:[%s153 + $0x16c] sm:%s145] %v336
                %v338 = vld [vmem:[%s152 + $0x270] sm:%s145]
                %339 = vst [vmem:[%s153 + $0x170] sm:%s145] %v338
                %v340 = vld [vmem:[%s152 + $0x274] sm:%s145]
                %341 = vst [vmem:[%s153 + $0x174] sm:%s145] %v340
                %v342 = vld [vmem:[%s152 + $0x278] sm:%s145]
                %343 = vst [vmem:[%s153 + $0x178] sm:%s145] %v342
                %v344 = vld [vmem:[%s152 + $0x27c] sm:%s145]
                %345 = vst [vmem:[%s153 + $0x17c] sm:%s145] %v344
                %v346 = vld [vmem:[%s152 + $0x300] sm:%s145]
                %347 = vst [vmem:[%s153 + $0x180] sm:%s145] %v346
                %v348 = vld [vmem:[%s152 + $0x304] sm:%s145]
                %349 = vst [vmem:[%s153 + $0x184] sm:%s145] %v348
                %v350 = vld [vmem:[%s152 + $0x308] sm:%s145]
                %351 = vst [vmem:[%s153 + $0x188] sm:%s145] %v350
                %v352 = vld [vmem:[%s152 + $0x30c] sm:%s145]
                %353 = vst [vmem:[%s153 + $0x18c] sm:%s145] %v352
                %v354 = vld [vmem:[%s152 + $0x310] sm:%s145]
                %355 = vst [vmem:[%s153 + $0x190] sm:%s145] %v354
                %v356 = vld [vmem:[%s152 + $0x314] sm:%s145]
                %357 = vst [vmem:[%s153 + $0x194] sm:%s145] %v356
                %v358 = vld [vmem:[%s152 + $0x318] sm:%s145]
                %359 = vst [vmem:[%s153 + $0x198] sm:%s145] %v358
                %v360 = vld [vmem:[%s152 + $0x31c] sm:%s145]
                %361 = vst [vmem:[%s153 + $0x19c] sm:%s145] %v360
                %v362 = vld [vmem:[%s152 + $0x320] sm:%s145]
                %363 = vst [vmem:[%s153 + $0x1a0] sm:%s145] %v362
                %v364 = vld [vmem:[%s152 + $0x324] sm:%s145]
                %365 = vst [vmem:[%s153 + $0x1a4] sm:%s145] %v364
                %v366 = vld [vmem:[%s152 + $0x328] sm:%s145]
                %367 = vst [vmem:[%s153 + $0x1a8] sm:%s145] %v366
                %v368 = vld [vmem:[%s152 + $0x32c] sm:%s145]
                %369 = vst [vmem:[%s153 + $0x1ac] sm:%s145] %v368
                %v370 = vld [vmem:[%s152 + $0x330] sm:%s145]
                %371 = vst [vmem:[%s153 + $0x1b0] sm:%s145] %v370
                %v372 = vld [vmem:[%s152 + $0x334] sm:%s145]
                %373 = vst [vmem:[%s153 + $0x1b4] sm:%s145] %v372
                %v374 = vld [vmem:[%s152 + $0x338] sm:%s145]
                %375 = vst [vmem:[%s153 + $0x1b8] sm:%s145] %v374
                %v376 = vld [vmem:[%s152 + $0x33c] sm:%s145]
                %377 = vst [vmem:[%s153 + $0x1bc] sm:%s145] %v376
                %v378 = vld [vmem:[%s152 + $0x340] sm:%s145]
                %379 = vst [vmem:[%s153 + $0x1c0] sm:%s145] %v378
                %v380 = vld [vmem:[%s152 + $0x344] sm:%s145]
                %381 = vst [vmem:[%s153 + $0x1c4] sm:%s145] %v380
                %v382 = vld [vmem:[%s152 + $0x348] sm:%s145]
                %383 = vst [vmem:[%s153 + $0x1c8] sm:%s145] %v382
                %v384 = vld [vmem:[%s152 + $0x34c] sm:%s145]
                %385 = vst [vmem:[%s153 + $0x1cc] sm:%s145] %v384
                %v386 = vld [vmem:[%s152 + $0x350] sm:%s145]
                %387 = vst [vmem:[%s153 + $0x1d0] sm:%s145] %v386
                %v388 = vld [vmem:[%s152 + $0x354] sm:%s145]
                %389 = vst [vmem:[%s153 + $0x1d4] sm:%s145] %v388
                %v390 = vld [vmem:[%s152 + $0x358] sm:%s145]
                %391 = vst [vmem:[%s153 + $0x1d8] sm:%s145] %v390
                %v392 = vld [vmem:[%s152 + $0x35c] sm:%s145]
                %393 = vst [vmem:[%s153 + $0x1dc] sm:%s145] %v392
                %v394 = vld [vmem:[%s152 + $0x360] sm:%s145]
                %395 = vst [vmem:[%s153 + $0x1e0] sm:%s145] %v394
                %v396 = vld [vmem:[%s152 + $0x364] sm:%s145]
                %397 = vst [vmem:[%s153 + $0x1e4] sm:%s145] %v396
                %v398 = vld [vmem:[%s152 + $0x368] sm:%s145]
                %399 = vst [vmem:[%s153 + $0x1e8] sm:%s145] %v398
                %v400 = vld [vmem:[%s152 + $0x36c] sm:%s145]
                %401 = vst [vmem:[%s153 + $0x1ec] sm:%s145] %v400
                %v402 = vld [vmem:[%s152 + $0x370] sm:%s145]
                %403 = vst [vmem:[%s153 + $0x1f0] sm:%s145] %v402
                %v404 = vld [vmem:[%s152 + $0x374] sm:%s145]
                %405 = vst [vmem:[%s153 + $0x1f4] sm:%s145] %v404
                %v406 = vld [vmem:[%s152 + $0x378] sm:%s145]
                %407 = vst [vmem:[%s153 + $0x1f8] sm:%s145] %v406
                %v408 = vld [vmem:[%s152 + $0x37c] sm:%s145]
                %409 = vst [vmem:[%s153 + $0x1fc] sm:%s145] %v408
              $region45: #{vgg4_forward.4} parent=39 // loop_footer
                %s151 = sadd.s32 1, %s147
              $region46: #{vgg4_forward.4} parent=39 // loop_footer_branch
                %146 = sbr.rel target = $region42
              $region47: #{vgg4_forward.4} parent=39 // loop_exit
                _
            $region40: #{vgg4_forward.4} parent=31 // pred_fallthru
              _
          $region32: #{vgg4_forward.4} parent=27 // pred_fallthru
            _
          %686 = vnop
        $region28: #{vgg4_forward.4} parent=23 // pred_fallthru
          _
      $region24: #{vgg4_forward.4} parent=5 // pred_fallthru
        _
      %p687 = scmp.le.s32.totalorder 1, %s9
      %p688 = scmp.lt.s32.totalorder %s9, 3
      %p689 = pnand %p687, %p688
      %p690 = pneg %p689
      // Predicated region
      $region66: #{vgg4_forward.4} parent=5 // pred_check
        _
      $region67: #{vgg4_forward.4} parent=5 // pred_check_branch
        %692 = sbr.rel (%p689) target = $region69
      $region68: #{vgg4_forward.4} parent=5 // pred_region
        %s693 = ssub.s32 %s9, 1
        %s694 = sand.u32 %s22, 1
        %s695 = sand.u32 %s22, 1
        %s696 = smul.addr %s695, 512
        %s697 = scalar_lea.vmem [#allocation2], %s696
        // Predicated region
        $region70: #{vgg4_forward.4} parent=68 // pred_check
          %p698 = pneg %p35
        $region71: #{vgg4_forward.4} parent=68 // pred_check_branch
          %700 = sbr.rel (%p698) target = $region73
        $region72: #{vgg4_forward.4} parent=68 // pred_region
          _
        $region73: #{vgg4_forward.4} parent=68 // pred_fallthru
          _
        %s701 = sand.u32 %s22, 1
        %s702 = sand.u32 %s22, 1
        %s703 = smul.addr %s702, 512
        %s704 = scalar_lea.vmem [#allocation2], %s703
        %p705 = pneg %p35
        %p706 = pneg %p32
        %p707 = pneg %p56
        %p708 = pneg %p53
        %p709 = pneg %p77
        %p710 = pneg %p74
        %p711 = pneg %p103
        %p712 = pneg %p100
        %s713 = smul.u32 32, %s14
        %p714 = scmp.lt.s32.totalorder %s713, 63
        %s715 = scalar_select %p714, %s713, 63
        %s716 = smul.addr %s715, 4
        %s717 = scalar_lea.vmem %s3, %s716
        %s718 = smul.u32 32, %s14
        %s719 = smul.u32 32, %s14
        %p720 = scmp.lt.s32.totalorder %s719, 63
        %s721 = scalar_select %p720, %s719, 63
        %s722 = smul.addr %s721, 4
        %s723 = scalar_lea.vmem %s3, %s722
        %s724 = smul.u32 32, %s14
        %v726 = vld [vmem:[%s697] sm:$0xf]
        %v727 = vld [vmem:[%s697 + $0x4] sm:$0xf]
        %v728 = vld [vmem:[%s697 + $0x8] sm:$0xf]
        %v729 = vld [vmem:[%s697 + $0xc] sm:$0xf]
        %v730 = vld [vmem:[%s697 + $0x10] sm:$0xf]
        %v731 = vld [vmem:[%s697 + $0x14] sm:$0xf]
        %v732 = vld [vmem:[%s697 + $0x18] sm:$0xf]
        %v733 = vld [vmem:[%s697 + $0x1c] sm:$0xf]
        %v734 = vld [vmem:[%s697 + $0x20] sm:$0xf]
        %v735 = vld [vmem:[%s697 + $0x24] sm:$0xf]
        %v736 = vld [vmem:[%s697 + $0x28] sm:$0xf]
        %v737 = vld [vmem:[%s697 + $0x2c] sm:$0xf]
        %v738 = vld [vmem:[%s697 + $0x30] sm:$0xf]
        %v739 = vld [vmem:[%s697 + $0x34] sm:$0xf]
        %v740 = vld [vmem:[%s697 + $0x38] sm:$0xf]
        %v741 = vld [vmem:[%s697 + $0x3c] sm:$0xf]
        %v742 = vld [vmem:[%s697 + $0x40] sm:$0xf]
        %v743 = vld [vmem:[%s697 + $0x44] sm:$0xf]
        %v744 = vld [vmem:[%s697 + $0x48] sm:$0xf]
        %v745 = vld [vmem:[%s697 + $0x4c] sm:$0xf]
        %v746 = vld [vmem:[%s697 + $0x50] sm:$0xf]
        %v747 = vld [vmem:[%s697 + $0x54] sm:$0xf]
        %v748 = vld [vmem:[%s697 + $0x58] sm:$0xf]
        %v749 = vld [vmem:[%s697 + $0x5c] sm:$0xf]
        %v750 = vld [vmem:[%s697 + $0x60] sm:$0xf]
        %v751 = vld [vmem:[%s697 + $0x64] sm:$0xf]
        %v752 = vld [vmem:[%s697 + $0x68] sm:$0xf]
        %v753 = vld [vmem:[%s697 + $0x6c] sm:$0xf]
        %v754 = vld [vmem:[%s697 + $0x70] sm:$0xf]
        %v755 = vld [vmem:[%s697 + $0x74] sm:$0xf]
        %v756 = vld [vmem:[%s697 + $0x78] sm:$0xf]
        %v757 = vld [vmem:[%s697 + $0x7c] sm:$0xf]
        %v758 = vld [vmem:[%s697 + $0x80] sm:$0xf]
        %v759 = vld [vmem:[%s697 + $0x84] sm:$0xf]
        %v760 = vld [vmem:[%s697 + $0x88] sm:$0xf]
        %v761 = vld [vmem:[%s697 + $0x8c] sm:$0xf]
        %v762 = vld [vmem:[%s697 + $0x90] sm:$0xf]
        %v763 = vld [vmem:[%s697 + $0x94] sm:$0xf]
        %v764 = vld [vmem:[%s697 + $0x98] sm:$0xf]
        %v765 = vld [vmem:[%s697 + $0x9c] sm:$0xf]
        %v766 = vld [vmem:[%s697 + $0xa0] sm:$0xf]
        %v767 = vld [vmem:[%s697 + $0xa4] sm:$0xf]
        %v768 = vld [vmem:[%s697 + $0xa8] sm:$0xf]
        %v769 = vld [vmem:[%s697 + $0xac] sm:$0xf]
        %v770 = vld [vmem:[%s697 + $0xb0] sm:$0xf]
        %v771 = vld [vmem:[%s697 + $0xb4] sm:$0xf]
        %v772 = vld [vmem:[%s697 + $0xb8] sm:$0xf]
        %v773 = vld [vmem:[%s697 + $0xbc] sm:$0xf]
        %v774 = vld [vmem:[%s697 + $0xc0] sm:$0xf]
        %v775 = vld [vmem:[%s697 + $0xc4] sm:$0xf]
        %v776 = vld [vmem:[%s697 + $0xc8] sm:$0xf]
        %v777 = vld [vmem:[%s697 + $0xcc] sm:$0xf]
        %v778 = vld [vmem:[%s697 + $0xd0] sm:$0xf]
        %v779 = vld [vmem:[%s697 + $0xd4] sm:$0xf]
        %v780 = vld [vmem:[%s697 + $0xd8] sm:$0xf]
        %v781 = vld [vmem:[%s697 + $0xdc] sm:$0xf]
        %v782 = vld [vmem:[%s697 + $0xe0] sm:$0xf]
        %v783 = vld [vmem:[%s697 + $0xe4] sm:$0xf]
        %v784 = vld [vmem:[%s697 + $0xe8] sm:$0xf]
        %v785 = vld [vmem:[%s697 + $0xec] sm:$0xf]
        %v786 = vld [vmem:[%s697 + $0xf0] sm:$0xf]
        %v787 = vld [vmem:[%s697 + $0xf4] sm:$0xf]
        %v788 = vld [vmem:[%s697 + $0xf8] sm:$0xf]
        %v789 = vld [vmem:[%s697 + $0xfc] sm:$0xf]
        %v790 = vld [vmem:[%s697 + $0x100] sm:$0xf]
        %v791 = vld [vmem:[%s697 + $0x104] sm:$0xf]
        %v792 = vld [vmem:[%s697 + $0x108] sm:$0xf]
        %v793 = vld [vmem:[%s697 + $0x10c] sm:$0xf]
        %v794 = vld [vmem:[%s697 + $0x110] sm:$0xf]
        %v795 = vld [vmem:[%s697 + $0x114] sm:$0xf]
        %v796 = vld [vmem:[%s697 + $0x118] sm:$0xf]
        %v797 = vld [vmem:[%s697 + $0x11c] sm:$0xf]
        %v798 = vld [vmem:[%s697 + $0x120] sm:$0xf]
        %v799 = vld [vmem:[%s697 + $0x124] sm:$0xf]
        %v800 = vld [vmem:[%s697 + $0x128] sm:$0xf]
        %v801 = vld [vmem:[%s697 + $0x12c] sm:$0xf]
        %v802 = vld [vmem:[%s697 + $0x130] sm:$0xf]
        %v803 = vld [vmem:[%s697 + $0x134] sm:$0xf]
        %v804 = vld [vmem:[%s697 + $0x138] sm:$0xf]
        %v805 = vld [vmem:[%s697 + $0x13c] sm:$0xf]
        %v806 = vld [vmem:[%s697 + $0x140] sm:$0xf]
        %v807 = vld [vmem:[%s697 + $0x144] sm:$0xf]
        %v808 = vld [vmem:[%s697 + $0x148] sm:$0xf]
        %v809 = vld [vmem:[%s697 + $0x14c] sm:$0xf]
        %v810 = vld [vmem:[%s697 + $0x150] sm:$0xf]
        %v811 = vld [vmem:[%s697 + $0x154] sm:$0xf]
        %v812 = vld [vmem:[%s697 + $0x158] sm:$0xf]
        %v813 = vld [vmem:[%s697 + $0x15c] sm:$0xf]
        %v814 = vld [vmem:[%s697 + $0x160] sm:$0xf]
        %v815 = vld [vmem:[%s697 + $0x164] sm:$0xf]
        %v816 = vld [vmem:[%s697 + $0x168] sm:$0xf]
        %v817 = vld [vmem:[%s697 + $0x16c] sm:$0xf]
        %v818 = vld [vmem:[%s697 + $0x170] sm:$0xf]
        %v819 = vld [vmem:[%s697 + $0x174] sm:$0xf]
        %v820 = vld [vmem:[%s697 + $0x178] sm:$0xf]
        %v821 = vld [vmem:[%s697 + $0x17c] sm:$0xf]
        %v822 = vld [vmem:[%s697 + $0x180] sm:$0xf]
        %v823 = vld [vmem:[%s697 + $0x184] sm:$0xf]
        %v824 = vld [vmem:[%s697 + $0x188] sm:$0xf]
        %v825 = vld [vmem:[%s697 + $0x18c] sm:$0xf]
        %v826 = vld [vmem:[%s697 + $0x190] sm:$0xf]
        %v827 = vld [vmem:[%s697 + $0x194] sm:$0xf]
        %v828 = vld [vmem:[%s697 + $0x198] sm:$0xf]
        %v829 = vld [vmem:[%s697 + $0x19c] sm:$0xf]
        %v830 = vld [vmem:[%s697 + $0x1a0] sm:$0xf]
        %v831 = vld [vmem:[%s697 + $0x1a4] sm:$0xf]
        %v832 = vld [vmem:[%s697 + $0x1a8] sm:$0xf]
        %v833 = vld [vmem:[%s697 + $0x1ac] sm:$0xf]
        %v834 = vld [vmem:[%s697 + $0x1b0] sm:$0xf]
        %v835 = vld [vmem:[%s697 + $0x1b4] sm:$0xf]
        %v836 = vld [vmem:[%s697 + $0x1b8] sm:$0xf]
        %v837 = vld [vmem:[%s697 + $0x1bc] sm:$0xf]
        %v838 = vld [vmem:[%s697 + $0x1c0] sm:$0xf]
        %v839 = vld [vmem:[%s697 + $0x1c4] sm:$0xf]
        %v840 = vld [vmem:[%s697 + $0x1c8] sm:$0xf]
        %v841 = vld [vmem:[%s697 + $0x1cc] sm:$0xf]
        %v842 = vld [vmem:[%s697 + $0x1d0] sm:$0xf]
        %v843 = vld [vmem:[%s697 + $0x1d4] sm:$0xf]
        %v844 = vld [vmem:[%s697 + $0x1d8] sm:$0xf]
        %v845 = vld [vmem:[%s697 + $0x1dc] sm:$0xf]
        %v846 = vld [vmem:[%s697 + $0x1e0] sm:$0xf]
        %v847 = vld [vmem:[%s697 + $0x1e4] sm:$0xf]
        %v848 = vld [vmem:[%s697 + $0x1e8] sm:$0xf]
        %v849 = vld [vmem:[%s697 + $0x1ec] sm:$0xf]
        %v850 = vld [vmem:[%s697 + $0x1f0] sm:$0xf]
        %v851 = vld [vmem:[%s697 + $0x1f4] sm:$0xf]
        %v852 = vld [vmem:[%s697 + $0x1f8] sm:$0xf]
        %v853 = vld [vmem:[%s697 + $0x1fc] sm:$0xf]
        %v854 = vld [vmem:[%s1] sm:$0xf]
        %v855 = vld [vmem:[%s1 + $0x4] sm:$0xf]
        %v856 = vld [vmem:[%s1 + $0x8] sm:$0xf]
        %v857 = vld [vmem:[%s1 + $0xc] sm:$0xf]
        %v986 = vunpack.c.l.b16 %v726
        %v987 = vunpack.c.l.b16 %v727
        %v988 = vunpack.c.l.b16 %v728
        %v989 = vunpack.c.l.b16 %v729
        %v990 = vunpack.c.l.b16 %v730
        %v991 = vunpack.c.l.b16 %v731
        %v992 = vunpack.c.l.b16 %v732
        %v993 = vunpack.c.l.b16 %v733
        %v994 = vunpack.c.l.b16 %v734
        %v995 = vunpack.c.l.b16 %v735
        %v996 = vunpack.c.l.b16 %v736
        %v997 = vunpack.c.l.b16 %v737
        %v998 = vunpack.c.l.b16 %v738
        %v999 = vunpack.c.l.b16 %v739
        %v1000 = vunpack.c.l.b16 %v740
        %v1001 = vunpack.c.l.b16 %v741
        %v1002 = vunpack.c.l.b16 %v742
        %v1003 = vunpack.c.l.b16 %v743
        %v1004 = vunpack.c.l.b16 %v744
        %v1005 = vunpack.c.l.b16 %v745
        %v1006 = vunpack.c.l.b16 %v746
        %v1007 = vunpack.c.l.b16 %v747
        %v1008 = vunpack.c.l.b16 %v748
        %v1009 = vunpack.c.l.b16 %v749
        %v1010 = vunpack.c.l.b16 %v750
        %v1011 = vunpack.c.l.b16 %v751
        %v1012 = vunpack.c.l.b16 %v752
        %v1013 = vunpack.c.l.b16 %v753
        %v1014 = vunpack.c.l.b16 %v754
        %v1015 = vunpack.c.l.b16 %v755
        %v1016 = vunpack.c.l.b16 %v756
        %v1017 = vunpack.c.l.b16 %v757
        %v1018 = vunpack.c.l.b16 %v758
        %v1019 = vunpack.c.l.b16 %v759
        %v1020 = vunpack.c.l.b16 %v760
        %v1021 = vunpack.c.l.b16 %v761
        %v1022 = vunpack.c.l.b16 %v762
        %v1023 = vunpack.c.l.b16 %v763
        %v1024 = vunpack.c.l.b16 %v764
        %v1025 = vunpack.c.l.b16 %v765
        %v1026 = vunpack.c.l.b16 %v766
        %v1027 = vunpack.c.l.b16 %v767
        %v1028 = vunpack.c.l.b16 %v768
        %v1029 = vunpack.c.l.b16 %v769
        %v1030 = vunpack.c.l.b16 %v770
        %v1031 = vunpack.c.l.b16 %v771
        %v1032 = vunpack.c.l.b16 %v772
        %v1033 = vunpack.c.l.b16 %v773
        %v1034 = vunpack.c.l.b16 %v774
        %v1035 = vunpack.c.l.b16 %v775
        %v1036 = vunpack.c.l.b16 %v776
        %v1037 = vunpack.c.l.b16 %v777
        %v1038 = vunpack.c.l.b16 %v778
        %v1039 = vunpack.c.l.b16 %v779
        %v1040 = vunpack.c.l.b16 %v780
        %v1041 = vunpack.c.l.b16 %v781
        %v1042 = vunpack.c.l.b16 %v782
        %v1043 = vunpack.c.l.b16 %v783
        %v1044 = vunpack.c.l.b16 %v784
        %v1045 = vunpack.c.l.b16 %v785
        %v1046 = vunpack.c.l.b16 %v786
        %v1047 = vunpack.c.l.b16 %v787
        %v1048 = vunpack.c.l.b16 %v788
        %v1049 = vunpack.c.l.b16 %v789
        %v1050 = vunpack.c.l.b16 %v790
        %v1051 = vunpack.c.l.b16 %v791
        %v1052 = vunpack.c.l.b16 %v792
        %v1053 = vunpack.c.l.b16 %v793
        %v1054 = vunpack.c.l.b16 %v794
        %v1055 = vunpack.c.l.b16 %v795
        %v1056 = vunpack.c.l.b16 %v796
        %v1057 = vunpack.c.l.b16 %v797
        %v1058 = vunpack.c.l.b16 %v798
        %v1059 = vunpack.c.l.b16 %v799
        %v1060 = vunpack.c.l.b16 %v800
        %v1061 = vunpack.c.l.b16 %v801
        %v1062 = vunpack.c.l.b16 %v802
        %v1063 = vunpack.c.l.b16 %v803
        %v1064 = vunpack.c.l.b16 %v804
        %v1065 = vunpack.c.l.b16 %v805
        %v1066 = vunpack.c.l.b16 %v806
        %v1067 = vunpack.c.l.b16 %v807
        %v1068 = vunpack.c.l.b16 %v808
        %v1069 = vunpack.c.l.b16 %v809
        %v1070 = vunpack.c.l.b16 %v810
        %v1071 = vunpack.c.l.b16 %v811
        %v1072 = vunpack.c.l.b16 %v812
        %v1073 = vunpack.c.l.b16 %v813
        %v1074 = vunpack.c.l.b16 %v814
        %v1075 = vunpack.c.l.b16 %v815
        %v1076 = vunpack.c.l.b16 %v816
        %v1077 = vunpack.c.l.b16 %v817
        %v1078 = vunpack.c.l.b16 %v818
        %v1079 = vunpack.c.l.b16 %v819
        %v1080 = vunpack.c.l.b16 %v820
        %v1081 = vunpack.c.l.b16 %v821
        %v1082 = vunpack.c.l.b16 %v822
        %v1083 = vunpack.c.l.b16 %v823
        %v1084 = vunpack.c.l.b16 %v824
        %v1085 = vunpack.c.l.b16 %v825
        %v1086 = vunpack.c.l.b16 %v826
        %v1087 = vunpack.c.l.b16 %v827
        %v1088 = vunpack.c.l.b16 %v828
        %v1089 = vunpack.c.l.b16 %v829
        %v1090 = vunpack.c.l.b16 %v830
        %v1091 = vunpack.c.l.b16 %v831
        %v1092 = vunpack.c.l.b16 %v832
        %v1093 = vunpack.c.l.b16 %v833
        %v1094 = vunpack.c.l.b16 %v834
        %v1095 = vunpack.c.l.b16 %v835
        %v1096 = vunpack.c.l.b16 %v836
        %v1097 = vunpack.c.l.b16 %v837
        %v1098 = vunpack.c.l.b16 %v838
        %v1099 = vunpack.c.l.b16 %v839
        %v1100 = vunpack.c.l.b16 %v840
        %v1101 = vunpack.c.l.b16 %v841
        %v1102 = vunpack.c.l.b16 %v842
        %v1103 = vunpack.c.l.b16 %v843
        %v1104 = vunpack.c.l.b16 %v844
        %v1105 = vunpack.c.l.b16 %v845
        %v1106 = vunpack.c.l.b16 %v846
        %v1107 = vunpack.c.l.b16 %v847
        %v1108 = vunpack.c.l.b16 %v848
        %v1109 = vunpack.c.l.b16 %v849
        %v1110 = vunpack.c.l.b16 %v850
        %v1111 = vunpack.c.l.b16 %v851
        %v1112 = vunpack.c.l.b16 %v852
        %v1113 = vunpack.c.l.b16 %v853
        %v1114 = vpack.c.b16 %v987, %v986
        %v1115 = vpack.c.b16 %v989, %v988
        %v1116 = vpack.c.b16 %v991, %v990
        %v1117 = vpack.c.b16 %v993, %v992
        %v1118 = vpack.c.b16 %v995, %v994
        %v1119 = vpack.c.b16 %v997, %v996
        %v1120 = vpack.c.b16 %v999, %v998
        %v1121 = vpack.c.b16 %v1001, %v1000
        %v1122 = vpack.c.b16 %v1003, %v1002
        %v1123 = vpack.c.b16 %v1005, %v1004
        %v1124 = vpack.c.b16 %v1007, %v1006
        %v1125 = vpack.c.b16 %v1009, %v1008
        %v1126 = vpack.c.b16 %v1011, %v1010
        %v1127 = vpack.c.b16 %v1013, %v1012
        %v1128 = vpack.c.b16 %v1015, %v1014
        %v1129 = vpack.c.b16 %v1017, %v1016
        %v1130 = vpack.c.b16 %v1019, %v1018
        %v1131 = vpack.c.b16 %v1021, %v1020
        %v1132 = vpack.c.b16 %v1023, %v1022
        %v1133 = vpack.c.b16 %v1025, %v1024
        %v1134 = vpack.c.b16 %v1027, %v1026
        %v1135 = vpack.c.b16 %v1029, %v1028
        %v1136 = vpack.c.b16 %v1031, %v1030
        %v1137 = vpack.c.b16 %v1033, %v1032
        %v1138 = vpack.c.b16 %v1035, %v1034
        %v1139 = vpack.c.b16 %v1037, %v1036
        %v1140 = vpack.c.b16 %v1039, %v1038
        %v1141 = vpack.c.b16 %v1041, %v1040
        %v1142 = vpack.c.b16 %v1043, %v1042
        %v1143 = vpack.c.b16 %v1045, %v1044
        %v1144 = vpack.c.b16 %v1047, %v1046
        %v1145 = vpack.c.b16 %v1049, %v1048
        %v1146 = vpack.c.b16 %v1051, %v1050
        %v1147 = vpack.c.b16 %v1053, %v1052
        %v1148 = vpack.c.b16 %v1055, %v1054
        %v1149 = vpack.c.b16 %v1057, %v1056
        %v1150 = vpack.c.b16 %v1059, %v1058
        %v1151 = vpack.c.b16 %v1061, %v1060
        %v1152 = vpack.c.b16 %v1063, %v1062
        %v1153 = vpack.c.b16 %v1065, %v1064
        %v1154 = vpack.c.b16 %v1067, %v1066
        %v1155 = vpack.c.b16 %v1069, %v1068
        %v1156 = vpack.c.b16 %v1071, %v1070
        %v1157 = vpack.c.b16 %v1073, %v1072
        %v1158 = vpack.c.b16 %v1075, %v1074
        %v1159 = vpack.c.b16 %v1077, %v1076
        %v1160 = vpack.c.b16 %v1079, %v1078
        %v1161 = vpack.c.b16 %v1081, %v1080
        %v1162 = vpack.c.b16 %v1083, %v1082
        %v1163 = vpack.c.b16 %v1085, %v1084
        %v1164 = vpack.c.b16 %v1087, %v1086
        %v1165 = vpack.c.b16 %v1089, %v1088
        %v1166 = vpack.c.b16 %v1091, %v1090
        %v1167 = vpack.c.b16 %v1093, %v1092
        %v1168 = vpack.c.b16 %v1095, %v1094
        %v1169 = vpack.c.b16 %v1097, %v1096
        %v1170 = vpack.c.b16 %v1099, %v1098
        %v1171 = vpack.c.b16 %v1101, %v1100
        %v1172 = vpack.c.b16 %v1103, %v1102
        %v1173 = vpack.c.b16 %v1105, %v1104
        %v1174 = vpack.c.b16 %v1107, %v1106
        %v1175 = vpack.c.b16 %v1109, %v1108
        %v1176 = vpack.c.b16 %v1111, %v1110
        %v1177 = vpack.c.b16 %v1113, %v1112
        %v1182 = vunpack.c.l.b16 %v854
        %v1183 = vunpack.c.l.b16 %v855
        %v1184 = vunpack.c.l.b16 %v856
        %v1185 = vunpack.c.l.b16 %v857
        %v1186 = vpack.c.b16 %v1183, %v1182
        %v1187 = vpack.c.b16 %v1185, %v1184
        %vm1190 = vcmask 261120
        %v1192 = vsel %vm1190, %v1114, 0
        %v1195 = vsel %vm1190, %v1115, 0
        %v1198 = vsel %vm1190, %v1116, 0
        %v1201 = vsel %vm1190, %v1117, 0
        %v1204 = vsel %vm1190, %v1118, 0
        %v1207 = vsel %vm1190, %v1119, 0
        %v1210 = vsel %vm1190, %v1120, 0
        %v1213 = vsel %vm1190, %v1121, 0
        %v1216 = vsel %vm1190, %v1122, 0
        %v1219 = vsel %vm1190, %v1123, 0
        %v1222 = vsel %vm1190, %v1124, 0
        %v1225 = vsel %vm1190, %v1125, 0
        %v1228 = vsel %vm1190, %v1126, 0
        %v1231 = vsel %vm1190, %v1127, 0
        %v1234 = vsel %vm1190, %v1128, 0
        %v1237 = vsel %vm1190, %v1129, 0
        %v1240 = vsel %vm1190, %v1130, 0
        %v1243 = vsel %vm1190, %v1131, 0
        %v1246 = vsel %vm1190, %v1132, 0
        %v1249 = vsel %vm1190, %v1133, 0
        %v1252 = vsel %vm1190, %v1134, 0
        %v1255 = vsel %vm1190, %v1135, 0
        %v1258 = vsel %vm1190, %v1136, 0
        %v1261 = vsel %vm1190, %v1137, 0
        %v1264 = vsel %vm1190, %v1138, 0
        %v1267 = vsel %vm1190, %v1139, 0
        %v1270 = vsel %vm1190, %v1140, 0
        %v1273 = vsel %vm1190, %v1141, 0
        %v1276 = vsel %vm1190, %v1142, 0
        %v1279 = vsel %vm1190, %v1143, 0
        %v1282 = vsel %vm1190, %v1144, 0
        %v1285 = vsel %vm1190, %v1145, 0
        %v1288 = vsel %vm1190, %v1146, 0
        %v1291 = vsel %vm1190, %v1147, 0
        %v1294 = vsel %vm1190, %v1148, 0
        %v1297 = vsel %vm1190, %v1149, 0
        %v1300 = vsel %vm1190, %v1150, 0
        %v1303 = vsel %vm1190, %v1151, 0
        %v1306 = vsel %vm1190, %v1152, 0
        %v1309 = vsel %vm1190, %v1153, 0
        %v1312 = vsel %vm1190, %v1154, 0
        %v1315 = vsel %vm1190, %v1155, 0
        %v1318 = vsel %vm1190, %v1156, 0
        %v1321 = vsel %vm1190, %v1157, 0
        %v1324 = vsel %vm1190, %v1158, 0
        %v1327 = vsel %vm1190, %v1159, 0
        %v1330 = vsel %vm1190, %v1160, 0
        %v1333 = vsel %vm1190, %v1161, 0
        %v1336 = vsel %vm1190, %v1162, 0
        %v1339 = vsel %vm1190, %v1163, 0
        %v1342 = vsel %vm1190, %v1164, 0
        %v1345 = vsel %vm1190, %v1165, 0
        %v1348 = vsel %vm1190, %v1166, 0
        %v1351 = vsel %vm1190, %v1167, 0
        %v1354 = vsel %vm1190, %v1168, 0
        %v1357 = vsel %vm1190, %v1169, 0
        %v1360 = vsel %vm1190, %v1170, 0
        %v1363 = vsel %vm1190, %v1171, 0
        %v1366 = vsel %vm1190, %v1172, 0
        %v1369 = vsel %vm1190, %v1173, 0
        %v1372 = vsel %vm1190, %v1174, 0
        %v1375 = vsel %vm1190, %v1175, 0
        %v1378 = vsel %vm1190, %v1176, 0
        %v1381 = vsel %vm1190, %v1177, 0
        %1383 = vmatprep.subr.bf16.mxu0 0
        %1384 = vmatpush1.bf16.msra.mxu0 0
        %1385 = vmatprep.subr.bf16.mxu0 0
        %1386 = vmatpush1.bf16.msra.mxu0 0
        %1387 = vmatprep.subr.bf16.mxu0 0
        %1388 = vmatpush1.bf16.msra.mxu0 0
        %1389 = vmatprep.subr.bf16.mxu0 0
        %1390 = vmatpush1.bf16.msra.mxu0 0
        %1391 = vmatprep.subr.bf16.mxu0 0
        %1392 = vmatpush1.bf16.msra.mxu0 0
        %1393 = vmatprep.subr.bf16.mxu0 0
        %1394 = vmatpush1.bf16.msra.mxu0 0
        %1395 = vmatprep.subr.bf16.mxu0 0
        %1396 = vmatpush1.bf16.msra.mxu0 %v1187
        %1397 = vmatprep.subr.bf16.mxu0 0
        %1398 = vmatpush1.bf16.msra.mxu0 %v1186
        %1399 = vmatprep.subr.bf16.mxu0 0
        %1400 = vmatpush2.bf16.msra.mxu0 0
        %1401 = vmatprep.subr.bf16.mxu0 0
        %1402 = vmatpush2.bf16.msra.mxu0 0
        %1403 = vmatprep.subr.bf16.mxu0 0
        %1404 = vmatpush2.bf16.msra.mxu0 0
        %1405 = vmatprep.subr.bf16.mxu0 0
        %1406 = vmatpush2.bf16.msra.mxu0 0
        %1407 = vmatprep.subr.bf16.mxu0 0
        %1408 = vmatpush2.bf16.msra.mxu0 0
        %1409 = vmatprep.subr.bf16.mxu0 0
        %1410 = vmatpush2.bf16.msra.mxu0 0
        %1411 = vmatprep.subr.bf16.mxu0 0
        %1412 = vmatpush2.bf16.msra.mxu0 0
        %1413 = vmatprep.subr.bf16.mxu0 0
        %1414 = vmatpush2.bf16.msra.mxu0 0
        %1415 = vmatprep.mubr.bf16.mxu0 0
        %1416 = vmatmul.mubr.bf16.gmra.mxu0 %v1192
        %v1417 = vpop.f32.mrf.mxu0
        %v1418 = vadd.f32 0.0, %v1417
        %v1419 = vpop.f32.mrf.mxu0
        %v1420 = vpop.f32.mrf.mxu0
        %v1421 = vadd.f32 0.0, %v1420
        %v1422 = vpop.f32.mrf.mxu0
        %1423 = vmatprep.mubr.bf16.mxu0 0
        %1424 = vmatmul.mubr.bf16.gmra.mxu0 %v1195
        %v1425 = vpop.f32.mrf.mxu0
        %v1426 = vadd.f32 0.0, %v1425
        %v1427 = vpop.f32.mrf.mxu0
        %v1428 = vpop.f32.mrf.mxu0
        %v1429 = vadd.f32 0.0, %v1428
        %v1430 = vpop.f32.mrf.mxu0
        %1431 = vmatprep.mubr.bf16.mxu0 0
        %1432 = vmatmul.mubr.bf16.gmra.mxu0 %v1198
        %v1433 = vpop.f32.mrf.mxu0
        %v1434 = vadd.f32 0.0, %v1433
        %v1435 = vpop.f32.mrf.mxu0
        %v1436 = vpop.f32.mrf.mxu0
        %v1437 = vadd.f32 0.0, %v1436
        %v1438 = vpop.f32.mrf.mxu0
        %1439 = vmatprep.mubr.bf16.mxu0 0
        %1440 = vmatmul.mubr.bf16.gmra.mxu0 %v1201
        %v1441 = vpop.f32.mrf.mxu0
        %v1442 = vadd.f32 0.0, %v1441
        %v1443 = vpop.f32.mrf.mxu0
        %v1444 = vpop.f32.mrf.mxu0
        %v1445 = vadd.f32 0.0, %v1444
        %v1446 = vpop.f32.mrf.mxu0
        %1447 = vmatprep.mubr.bf16.mxu0 0
        %1448 = vmatmul.mubr.bf16.gmra.mxu0 %v1204
        %v1449 = vpop.f32.mrf.mxu0
        %v1450 = vadd.f32 0.0, %v1449
        %v1451 = vpop.f32.mrf.mxu0
        %v1452 = vpop.f32.mrf.mxu0
        %v1453 = vadd.f32 0.0, %v1452
        %v1454 = vpop.f32.mrf.mxu0
        %1455 = vmatprep.mubr.bf16.mxu0 0
        %1456 = vmatmul.mubr.bf16.gmra.mxu0 %v1207
        %v1457 = vpop.f32.mrf.mxu0
        %v1458 = vadd.f32 0.0, %v1457
        %v1459 = vpop.f32.mrf.mxu0
        %v1460 = vpop.f32.mrf.mxu0
        %v1461 = vadd.f32 0.0, %v1460
        %v1462 = vpop.f32.mrf.mxu0
        %1463 = vmatprep.mubr.bf16.mxu0 0
        %1464 = vmatmul.mubr.bf16.gmra.mxu0 %v1210
        %v1465 = vpop.f32.mrf.mxu0
        %v1466 = vadd.f32 0.0, %v1465
        %v1467 = vpop.f32.mrf.mxu0
        %v1468 = vpop.f32.mrf.mxu0
        %v1469 = vadd.f32 0.0, %v1468
        %v1470 = vpop.f32.mrf.mxu0
        %1471 = vmatprep.mubr.bf16.mxu0 0
        %1472 = vmatmul.mubr.bf16.gmra.mxu0 %v1213
        %v1473 = vpop.f32.mrf.mxu0
        %v1474 = vadd.f32 0.0, %v1473
        %v1475 = vpop.f32.mrf.mxu0
        %v1476 = vpop.f32.mrf.mxu0
        %v1477 = vadd.f32 0.0, %v1476
        %v1478 = vpop.f32.mrf.mxu0
        %1479 = vmatprep.mubr.bf16.mxu0 0
        %1480 = vmatmul.mubr.bf16.gmra.mxu0 %v1216
        %v1481 = vpop.f32.mrf.mxu0
        %v1482 = vadd.f32 0.0, %v1481
        %v1483 = vpop.f32.mrf.mxu0
        %v1484 = vpop.f32.mrf.mxu0
        %v1485 = vadd.f32 0.0, %v1484
        %v1486 = vpop.f32.mrf.mxu0
        %1487 = vmatprep.mubr.bf16.mxu0 0
        %1488 = vmatmul.mubr.bf16.gmra.mxu0 %v1219
        %v1489 = vpop.f32.mrf.mxu0
        %v1490 = vadd.f32 0.0, %v1489
        %v1491 = vpop.f32.mrf.mxu0
        %v1492 = vpop.f32.mrf.mxu0
        %v1493 = vadd.f32 0.0, %v1492
        %v1494 = vpop.f32.mrf.mxu0
        %1495 = vmatprep.mubr.bf16.mxu0 0
        %1496 = vmatmul.mubr.bf16.gmra.mxu0 %v1222
        %v1497 = vpop.f32.mrf.mxu0
        %v1498 = vadd.f32 0.0, %v1497
        %v1499 = vpop.f32.mrf.mxu0
        %v1500 = vpop.f32.mrf.mxu0
        %v1501 = vadd.f32 0.0, %v1500
        %v1502 = vpop.f32.mrf.mxu0
        %1503 = vmatprep.mubr.bf16.mxu0 0
        %1504 = vmatmul.mubr.bf16.gmra.mxu0 %v1225
        %v1505 = vpop.f32.mrf.mxu0
        %v1506 = vadd.f32 0.0, %v1505
        %v1507 = vpop.f32.mrf.mxu0
        %v1508 = vpop.f32.mrf.mxu0
        %v1509 = vadd.f32 0.0, %v1508
        %v1510 = vpop.f32.mrf.mxu0
        %1511 = vmatprep.mubr.bf16.mxu0 0
        %1512 = vmatmul.mubr.bf16.gmra.mxu0 %v1228
        %v1513 = vpop.f32.mrf.mxu0
        %v1514 = vadd.f32 0.0, %v1513
        %v1515 = vpop.f32.mrf.mxu0
        %v1516 = vpop.f32.mrf.mxu0
        %v1517 = vadd.f32 0.0, %v1516
        %v1518 = vpop.f32.mrf.mxu0
        %1519 = vmatprep.mubr.bf16.mxu0 0
        %1520 = vmatmul.mubr.bf16.gmra.mxu0 %v1231
        %v1521 = vpop.f32.mrf.mxu0
        %v1522 = vadd.f32 0.0, %v1521
        %v1523 = vpop.f32.mrf.mxu0
        %v1524 = vpop.f32.mrf.mxu0
        %v1525 = vadd.f32 0.0, %v1524
        %v1526 = vpop.f32.mrf.mxu0
        %1527 = vmatprep.mubr.bf16.mxu0 0
        %1528 = vmatmul.mubr.bf16.gmra.mxu0 %v1234
        %v1529 = vpop.f32.mrf.mxu0
        %v1530 = vadd.f32 0.0, %v1529
        %v1531 = vpop.f32.mrf.mxu0
        %v1532 = vpop.f32.mrf.mxu0
        %v1533 = vadd.f32 0.0, %v1532
        %v1534 = vpop.f32.mrf.mxu0
        %1535 = vmatprep.mubr.bf16.mxu0 0
        %1536 = vmatmul.mubr.bf16.gmra.mxu0 %v1237
        %v1537 = vpop.f32.mrf.mxu0
        %v1538 = vadd.f32 0.0, %v1537
        %v1539 = vpop.f32.mrf.mxu0
        %v1540 = vpop.f32.mrf.mxu0
        %v1541 = vadd.f32 0.0, %v1540
        %v1542 = vpop.f32.mrf.mxu0
        %1543 = vmatprep.mubr.bf16.mxu0 0
        %1544 = vmatmul.mubr.bf16.gmra.mxu0 %v1240
        %v1545 = vpop.f32.mrf.mxu0
        %v1546 = vadd.f32 0.0, %v1545
        %v1547 = vpop.f32.mrf.mxu0
        %v1548 = vpop.f32.mrf.mxu0
        %v1549 = vadd.f32 0.0, %v1548
        %v1550 = vpop.f32.mrf.mxu0
        %1551 = vmatprep.mubr.bf16.mxu0 0
        %1552 = vmatmul.mubr.bf16.gmra.mxu0 %v1243
        %v1553 = vpop.f32.mrf.mxu0
        %v1554 = vadd.f32 0.0, %v1553
        %v1555 = vpop.f32.mrf.mxu0
        %v1556 = vpop.f32.mrf.mxu0
        %v1557 = vadd.f32 0.0, %v1556
        %v1558 = vpop.f32.mrf.mxu0
        %1559 = vmatprep.mubr.bf16.mxu0 0
        %1560 = vmatmul.mubr.bf16.gmra.mxu0 %v1246
        %v1561 = vpop.f32.mrf.mxu0
        %v1562 = vadd.f32 0.0, %v1561
        %v1563 = vpop.f32.mrf.mxu0
        %v1564 = vpop.f32.mrf.mxu0
        %v1565 = vadd.f32 0.0, %v1564
        %v1566 = vpop.f32.mrf.mxu0
        %1567 = vmatprep.mubr.bf16.mxu0 0
        %1568 = vmatmul.mubr.bf16.gmra.mxu0 %v1249
        %v1569 = vpop.f32.mrf.mxu0
        %v1570 = vadd.f32 0.0, %v1569
        %v1571 = vpop.f32.mrf.mxu0
        %v1572 = vpop.f32.mrf.mxu0
        %v1573 = vadd.f32 0.0, %v1572
        %v1574 = vpop.f32.mrf.mxu0
        %1575 = vmatprep.mubr.bf16.mxu0 0
        %1576 = vmatmul.mubr.bf16.gmra.mxu0 %v1252
        %v1577 = vpop.f32.mrf.mxu0
        %v1578 = vadd.f32 0.0, %v1577
        %v1579 = vpop.f32.mrf.mxu0
        %v1580 = vpop.f32.mrf.mxu0
        %v1581 = vadd.f32 0.0, %v1580
        %v1582 = vpop.f32.mrf.mxu0
        %1583 = vmatprep.mubr.bf16.mxu0 0
        %1584 = vmatmul.mubr.bf16.gmra.mxu0 %v1255
        %v1585 = vpop.f32.mrf.mxu0
        %v1586 = vadd.f32 0.0, %v1585
        %v1587 = vpop.f32.mrf.mxu0
        %v1588 = vpop.f32.mrf.mxu0
        %v1589 = vadd.f32 0.0, %v1588
        %v1590 = vpop.f32.mrf.mxu0
        %1591 = vmatprep.mubr.bf16.mxu0 0
        %1592 = vmatmul.mubr.bf16.gmra.mxu0 %v1258
        %v1593 = vpop.f32.mrf.mxu0
        %v1594 = vadd.f32 0.0, %v1593
        %v1595 = vpop.f32.mrf.mxu0
        %v1596 = vpop.f32.mrf.mxu0
        %v1597 = vadd.f32 0.0, %v1596
        %v1598 = vpop.f32.mrf.mxu0
        %1599 = vmatprep.mubr.bf16.mxu0 0
        %1600 = vmatmul.mubr.bf16.gmra.mxu0 %v1261
        %v1601 = vpop.f32.mrf.mxu0
        %v1602 = vadd.f32 0.0, %v1601
        %v1603 = vpop.f32.mrf.mxu0
        %v1604 = vpop.f32.mrf.mxu0
        %v1605 = vadd.f32 0.0, %v1604
        %v1606 = vpop.f32.mrf.mxu0
        %1607 = vmatprep.mubr.bf16.mxu0 0
        %1608 = vmatmul.mubr.bf16.gmra.mxu0 %v1264
        %v1609 = vpop.f32.mrf.mxu0
        %v1610 = vadd.f32 0.0, %v1609
        %v1611 = vpop.f32.mrf.mxu0
        %v1612 = vpop.f32.mrf.mxu0
        %v1613 = vadd.f32 0.0, %v1612
        %v1614 = vpop.f32.mrf.mxu0
        %1615 = vmatprep.mubr.bf16.mxu0 0
        %1616 = vmatmul.mubr.bf16.gmra.mxu0 %v1267
        %v1617 = vpop.f32.mrf.mxu0
        %v1618 = vadd.f32 0.0, %v1617
        %v1619 = vpop.f32.mrf.mxu0
        %v1620 = vpop.f32.mrf.mxu0
        %v1621 = vadd.f32 0.0, %v1620
        %v1622 = vpop.f32.mrf.mxu0
        %1623 = vmatprep.mubr.bf16.mxu0 0
        %1624 = vmatmul.mubr.bf16.gmra.mxu0 %v1270
        %v1625 = vpop.f32.mrf.mxu0
        %v1626 = vadd.f32 0.0, %v1625
        %v1627 = vpop.f32.mrf.mxu0
        %v1628 = vpop.f32.mrf.mxu0
        %v1629 = vadd.f32 0.0, %v1628
        %v1630 = vpop.f32.mrf.mxu0
        %1631 = vmatprep.mubr.bf16.mxu0 0
        %1632 = vmatmul.mubr.bf16.gmra.mxu0 %v1273
        %v1633 = vpop.f32.mrf.mxu0
        %v1634 = vadd.f32 0.0, %v1633
        %v1635 = vpop.f32.mrf.mxu0
        %v1636 = vpop.f32.mrf.mxu0
        %v1637 = vadd.f32 0.0, %v1636
        %v1638 = vpop.f32.mrf.mxu0
        %1639 = vmatprep.mubr.bf16.mxu0 0
        %1640 = vmatmul.mubr.bf16.gmra.mxu0 %v1276
        %v1641 = vpop.f32.mrf.mxu0
        %v1642 = vadd.f32 0.0, %v1641
        %v1643 = vpop.f32.mrf.mxu0
        %v1644 = vpop.f32.mrf.mxu0
        %v1645 = vadd.f32 0.0, %v1644
        %v1646 = vpop.f32.mrf.mxu0
        %1647 = vmatprep.mubr.bf16.mxu0 0
        %1648 = vmatmul.mubr.bf16.gmra.mxu0 %v1279
        %v1649 = vpop.f32.mrf.mxu0
        %v1650 = vadd.f32 0.0, %v1649
        %v1651 = vpop.f32.mrf.mxu0
        %v1652 = vpop.f32.mrf.mxu0
        %v1653 = vadd.f32 0.0, %v1652
        %v1654 = vpop.f32.mrf.mxu0
        %1655 = vmatprep.mubr.bf16.mxu0 0
        %1656 = vmatmul.mubr.bf16.gmra.mxu0 %v1282
        %v1657 = vpop.f32.mrf.mxu0
        %v1658 = vadd.f32 0.0, %v1657
        %v1659 = vpop.f32.mrf.mxu0
        %v1660 = vpop.f32.mrf.mxu0
        %v1661 = vadd.f32 0.0, %v1660
        %v1662 = vpop.f32.mrf.mxu0
        %1663 = vmatprep.mubr.bf16.mxu0 0
        %1664 = vmatmul.mubr.bf16.gmra.mxu0 %v1285
        %v1665 = vpop.f32.mrf.mxu0
        %v1666 = vadd.f32 0.0, %v1665
        %v1667 = vpop.f32.mrf.mxu0
        %v1668 = vpop.f32.mrf.mxu0
        %v1669 = vadd.f32 0.0, %v1668
        %v1670 = vpop.f32.mrf.mxu0
        %1671 = vmatprep.mubr.bf16.mxu0 0
        %1672 = vmatmul.mubr.bf16.gmra.mxu0 %v1288
        %v1673 = vpop.f32.mrf.mxu0
        %v1674 = vadd.f32 0.0, %v1673
        %v1675 = vpop.f32.mrf.mxu0
        %v1676 = vpop.f32.mrf.mxu0
        %v1677 = vadd.f32 0.0, %v1676
        %v1678 = vpop.f32.mrf.mxu0
        %1679 = vmatprep.mubr.bf16.mxu0 0
        %1680 = vmatmul.mubr.bf16.gmra.mxu0 %v1291
        %v1681 = vpop.f32.mrf.mxu0
        %v1682 = vadd.f32 0.0, %v1681
        %v1683 = vpop.f32.mrf.mxu0
        %v1684 = vpop.f32.mrf.mxu0
        %v1685 = vadd.f32 0.0, %v1684
        %v1686 = vpop.f32.mrf.mxu0
        %1687 = vmatprep.mubr.bf16.mxu0 0
        %1688 = vmatmul.mubr.bf16.gmra.mxu0 %v1294
        %v1689 = vpop.f32.mrf.mxu0
        %v1690 = vadd.f32 0.0, %v1689
        %v1691 = vpop.f32.mrf.mxu0
        %v1692 = vpop.f32.mrf.mxu0
        %v1693 = vadd.f32 0.0, %v1692
        %v1694 = vpop.f32.mrf.mxu0
        %1695 = vmatprep.mubr.bf16.mxu0 0
        %1696 = vmatmul.mubr.bf16.gmra.mxu0 %v1297
        %v1697 = vpop.f32.mrf.mxu0
        %v1698 = vadd.f32 0.0, %v1697
        %v1699 = vpop.f32.mrf.mxu0
        %v1700 = vpop.f32.mrf.mxu0
        %v1701 = vadd.f32 0.0, %v1700
        %v1702 = vpop.f32.mrf.mxu0
        %1703 = vmatprep.mubr.bf16.mxu0 0
        %1704 = vmatmul.mubr.bf16.gmra.mxu0 %v1300
        %v1705 = vpop.f32.mrf.mxu0
        %v1706 = vadd.f32 0.0, %v1705
        %v1707 = vpop.f32.mrf.mxu0
        %v1708 = vpop.f32.mrf.mxu0
        %v1709 = vadd.f32 0.0, %v1708
        %v1710 = vpop.f32.mrf.mxu0
        %1711 = vmatprep.mubr.bf16.mxu0 0
        %1712 = vmatmul.mubr.bf16.gmra.mxu0 %v1303
        %v1713 = vpop.f32.mrf.mxu0
        %v1714 = vadd.f32 0.0, %v1713
        %v1715 = vpop.f32.mrf.mxu0
        %v1716 = vpop.f32.mrf.mxu0
        %v1717 = vadd.f32 0.0, %v1716
        %v1718 = vpop.f32.mrf.mxu0
        %1719 = vmatprep.mubr.bf16.mxu0 0
        %1720 = vmatmul.mubr.bf16.gmra.mxu0 %v1306
        %v1721 = vpop.f32.mrf.mxu0
        %v1722 = vadd.f32 0.0, %v1721
        %v1723 = vpop.f32.mrf.mxu0
        %v1724 = vpop.f32.mrf.mxu0
        %v1725 = vadd.f32 0.0, %v1724
        %v1726 = vpop.f32.mrf.mxu0
        %1727 = vmatprep.mubr.bf16.mxu0 0
        %1728 = vmatmul.mubr.bf16.gmra.mxu0 %v1309
        %v1729 = vpop.f32.mrf.mxu0
        %v1730 = vadd.f32 0.0, %v1729
        %v1731 = vpop.f32.mrf.mxu0
        %v1732 = vpop.f32.mrf.mxu0
        %v1733 = vadd.f32 0.0, %v1732
        %v1734 = vpop.f32.mrf.mxu0
        %1735 = vmatprep.mubr.bf16.mxu0 0
        %1736 = vmatmul.mubr.bf16.gmra.mxu0 %v1312
        %v1737 = vpop.f32.mrf.mxu0
        %v1738 = vadd.f32 0.0, %v1737
        %v1739 = vpop.f32.mrf.mxu0
        %v1740 = vpop.f32.mrf.mxu0
        %v1741 = vadd.f32 0.0, %v1740
        %v1742 = vpop.f32.mrf.mxu0
        %1743 = vmatprep.mubr.bf16.mxu0 0
        %1744 = vmatmul.mubr.bf16.gmra.mxu0 %v1315
        %v1745 = vpop.f32.mrf.mxu0
        %v1746 = vadd.f32 0.0, %v1745
        %v1747 = vpop.f32.mrf.mxu0
        %v1748 = vpop.f32.mrf.mxu0
        %v1749 = vadd.f32 0.0, %v1748
        %v1750 = vpop.f32.mrf.mxu0
        %1751 = vmatprep.mubr.bf16.mxu0 0
        %1752 = vmatmul.mubr.bf16.gmra.mxu0 %v1318
        %v1753 = vpop.f32.mrf.mxu0
        %v1754 = vadd.f32 0.0, %v1753
        %v1755 = vpop.f32.mrf.mxu0
        %v1756 = vpop.f32.mrf.mxu0
        %v1757 = vadd.f32 0.0, %v1756
        %v1758 = vpop.f32.mrf.mxu0
        %1759 = vmatprep.mubr.bf16.mxu0 0
        %1760 = vmatmul.mubr.bf16.gmra.mxu0 %v1321
        %v1761 = vpop.f32.mrf.mxu0
        %v1762 = vadd.f32 0.0, %v1761
        %v1763 = vpop.f32.mrf.mxu0
        %v1764 = vpop.f32.mrf.mxu0
        %v1765 = vadd.f32 0.0, %v1764
        %v1766 = vpop.f32.mrf.mxu0
        %1767 = vmatprep.mubr.bf16.mxu0 0
        %1768 = vmatmul.mubr.bf16.gmra.mxu0 %v1324
        %v1769 = vpop.f32.mrf.mxu0
        %v1770 = vadd.f32 0.0, %v1769
        %v1771 = vpop.f32.mrf.mxu0
        %v1772 = vpop.f32.mrf.mxu0
        %v1773 = vadd.f32 0.0, %v1772
        %v1774 = vpop.f32.mrf.mxu0
        %1775 = vmatprep.mubr.bf16.mxu0 0
        %1776 = vmatmul.mubr.bf16.gmra.mxu0 %v1327
        %v1777 = vpop.f32.mrf.mxu0
        %v1778 = vadd.f32 0.0, %v1777
        %v1779 = vpop.f32.mrf.mxu0
        %v1780 = vpop.f32.mrf.mxu0
        %v1781 = vadd.f32 0.0, %v1780
        %v1782 = vpop.f32.mrf.mxu0
        %1783 = vmatprep.mubr.bf16.mxu0 0
        %1784 = vmatmul.mubr.bf16.gmra.mxu0 %v1330
        %v1785 = vpop.f32.mrf.mxu0
        %v1786 = vadd.f32 0.0, %v1785
        %v1787 = vpop.f32.mrf.mxu0
        %v1788 = vpop.f32.mrf.mxu0
        %v1789 = vadd.f32 0.0, %v1788
        %v1790 = vpop.f32.mrf.mxu0
        %1791 = vmatprep.mubr.bf16.mxu0 0
        %1792 = vmatmul.mubr.bf16.gmra.mxu0 %v1333
        %v1793 = vpop.f32.mrf.mxu0
        %v1794 = vadd.f32 0.0, %v1793
        %v1795 = vpop.f32.mrf.mxu0
        %v1796 = vpop.f32.mrf.mxu0
        %v1797 = vadd.f32 0.0, %v1796
        %v1798 = vpop.f32.mrf.mxu0
        %1799 = vmatprep.mubr.bf16.mxu0 0
        %1800 = vmatmul.mubr.bf16.gmra.mxu0 %v1336
        %v1801 = vpop.f32.mrf.mxu0
        %v1802 = vadd.f32 0.0, %v1801
        %v1803 = vpop.f32.mrf.mxu0
        %v1804 = vpop.f32.mrf.mxu0
        %v1805 = vadd.f32 0.0, %v1804
        %v1806 = vpop.f32.mrf.mxu0
        %1807 = vmatprep.mubr.bf16.mxu0 0
        %1808 = vmatmul.mubr.bf16.gmra.mxu0 %v1339
        %v1809 = vpop.f32.mrf.mxu0
        %v1810 = vadd.f32 0.0, %v1809
        %v1811 = vpop.f32.mrf.mxu0
        %v1812 = vpop.f32.mrf.mxu0
        %v1813 = vadd.f32 0.0, %v1812
        %v1814 = vpop.f32.mrf.mxu0
        %1815 = vmatprep.mubr.bf16.mxu0 0
        %1816 = vmatmul.mubr.bf16.gmra.mxu0 %v1342
        %v1817 = vpop.f32.mrf.mxu0
        %v1818 = vadd.f32 0.0, %v1817
        %v1819 = vpop.f32.mrf.mxu0
        %v1820 = vpop.f32.mrf.mxu0
        %v1821 = vadd.f32 0.0, %v1820
        %v1822 = vpop.f32.mrf.mxu0
        %1823 = vmatprep.mubr.bf16.mxu0 0
        %1824 = vmatmul.mubr.bf16.gmra.mxu0 %v1345
        %v1825 = vpop.f32.mrf.mxu0
        %v1826 = vadd.f32 0.0, %v1825
        %v1827 = vpop.f32.mrf.mxu0
        %v1828 = vpop.f32.mrf.mxu0
        %v1829 = vadd.f32 0.0, %v1828
        %v1830 = vpop.f32.mrf.mxu0
        %1831 = vmatprep.mubr.bf16.mxu0 0
        %1832 = vmatmul.mubr.bf16.gmra.mxu0 %v1348
        %v1833 = vpop.f32.mrf.mxu0
        %v1834 = vadd.f32 0.0, %v1833
        %v1835 = vpop.f32.mrf.mxu0
        %v1836 = vpop.f32.mrf.mxu0
        %v1837 = vadd.f32 0.0, %v1836
        %v1838 = vpop.f32.mrf.mxu0
        %1839 = vmatprep.mubr.bf16.mxu0 0
        %1840 = vmatmul.mubr.bf16.gmra.mxu0 %v1351
        %v1841 = vpop.f32.mrf.mxu0
        %v1842 = vadd.f32 0.0, %v1841
        %v1843 = vpop.f32.mrf.mxu0
        %v1844 = vpop.f32.mrf.mxu0
        %v1845 = vadd.f32 0.0, %v1844
        %v1846 = vpop.f32.mrf.mxu0
        %1847 = vmatprep.mubr.bf16.mxu0 0
        %1848 = vmatmul.mubr.bf16.gmra.mxu0 %v1354
        %v1849 = vpop.f32.mrf.mxu0
        %v1850 = vadd.f32 0.0, %v1849
        %v1851 = vpop.f32.mrf.mxu0
        %v1852 = vpop.f32.mrf.mxu0
        %v1853 = vadd.f32 0.0, %v1852
        %v1854 = vpop.f32.mrf.mxu0
        %1855 = vmatprep.mubr.bf16.mxu0 0
        %1856 = vmatmul.mubr.bf16.gmra.mxu0 %v1357
        %v1857 = vpop.f32.mrf.mxu0
        %v1858 = vadd.f32 0.0, %v1857
        %v1859 = vpop.f32.mrf.mxu0
        %v1860 = vpop.f32.mrf.mxu0
        %v1861 = vadd.f32 0.0, %v1860
        %v1862 = vpop.f32.mrf.mxu0
        %1863 = vmatprep.mubr.bf16.mxu0 0
        %1864 = vmatmul.mubr.bf16.gmra.mxu0 %v1360
        %v1865 = vpop.f32.mrf.mxu0
        %v1866 = vadd.f32 0.0, %v1865
        %v1867 = vpop.f32.mrf.mxu0
        %v1868 = vpop.f32.mrf.mxu0
        %v1869 = vadd.f32 0.0, %v1868
        %v1870 = vpop.f32.mrf.mxu0
        %1871 = vmatprep.mubr.bf16.mxu0 0
        %1872 = vmatmul.mubr.bf16.gmra.mxu0 %v1363
        %v1873 = vpop.f32.mrf.mxu0
        %v1874 = vadd.f32 0.0, %v1873
        %v1875 = vpop.f32.mrf.mxu0
        %v1876 = vpop.f32.mrf.mxu0
        %v1877 = vadd.f32 0.0, %v1876
        %v1878 = vpop.f32.mrf.mxu0
        %1879 = vmatprep.mubr.bf16.mxu0 0
        %1880 = vmatmul.mubr.bf16.gmra.mxu0 %v1366
        %v1881 = vpop.f32.mrf.mxu0
        %v1882 = vadd.f32 0.0, %v1881
        %v1883 = vpop.f32.mrf.mxu0
        %v1884 = vpop.f32.mrf.mxu0
        %v1885 = vadd.f32 0.0, %v1884
        %v1886 = vpop.f32.mrf.mxu0
        %1887 = vmatprep.mubr.bf16.mxu0 0
        %1888 = vmatmul.mubr.bf16.gmra.mxu0 %v1369
        %v1889 = vpop.f32.mrf.mxu0
        %v1890 = vadd.f32 0.0, %v1889
        %v1891 = vpop.f32.mrf.mxu0
        %v1892 = vpop.f32.mrf.mxu0
        %v1893 = vadd.f32 0.0, %v1892
        %v1894 = vpop.f32.mrf.mxu0
        %1895 = vmatprep.mubr.bf16.mxu0 0
        %1896 = vmatmul.mubr.bf16.gmra.mxu0 %v1372
        %v1897 = vpop.f32.mrf.mxu0
        %v1898 = vadd.f32 0.0, %v1897
        %v1899 = vpop.f32.mrf.mxu0
        %v1900 = vpop.f32.mrf.mxu0
        %v1901 = vadd.f32 0.0, %v1900
        %v1902 = vpop.f32.mrf.mxu0
        %1903 = vmatprep.mubr.bf16.mxu0 0
        %1904 = vmatmul.mubr.bf16.gmra.mxu0 %v1375
        %v1905 = vpop.f32.mrf.mxu0
        %v1906 = vadd.f32 0.0, %v1905
        %v1907 = vpop.f32.mrf.mxu0
        %v1908 = vpop.f32.mrf.mxu0
        %v1909 = vadd.f32 0.0, %v1908
        %v1910 = vpop.f32.mrf.mxu0
        %1911 = vmatprep.mubr.bf16.mxu0 0
        %1912 = vmatmul.mubr.bf16.gmra.mxu0 %v1378
        %v1913 = vpop.f32.mrf.mxu0
        %v1914 = vadd.f32 0.0, %v1913
        %v1915 = vpop.f32.mrf.mxu0
        %v1916 = vpop.f32.mrf.mxu0
        %v1917 = vadd.f32 0.0, %v1916
        %v1918 = vpop.f32.mrf.mxu0
        %1919 = vmatprep.mubr.bf16.mxu0 0
        %1920 = vmatmul.mubr.bf16.gmra.mxu0 %v1381
        %v1921 = vpop.f32.mrf.mxu0
        %v1922 = vadd.f32 0.0, %v1921
        %v1923 = vpop.f32.mrf.mxu0
        %v1924 = vpop.f32.mrf.mxu0
        %v1925 = vadd.f32 0.0, %v1924
        %v1926 = vpop.f32.mrf.mxu0
        %1927 = vdwg.mxu0
        %v1928 = vmax.f32 %v1418, %v1546
        %v1929 = vmax.f32 %v1421, %v1549
        %v1930 = vmax.f32 %v1426, %v1554
        %v1931 = vmax.f32 %v1429, %v1557
        %v1932 = vmax.f32 %v1434, %v1562
        %v1933 = vmax.f32 %v1437, %v1565
        %v1934 = vmax.f32 %v1442, %v1570
        %v1935 = vmax.f32 %v1445, %v1573
        %v1936 = vmax.f32 %v1450, %v1578
        %v1937 = vmax.f32 %v1453, %v1581
        %v1938 = vmax.f32 %v1458, %v1586
        %v1939 = vmax.f32 %v1461, %v1589
        %v1940 = vmax.f32 %v1466, %v1594
        %v1941 = vmax.f32 %v1469, %v1597
        %v1942 = vmax.f32 %v1474, %v1602
        %v1943 = vmax.f32 %v1477, %v1605
        %v1944 = vmax.f32 %v1482, %v1610
        %v1945 = vmax.f32 %v1485, %v1613
        %v1946 = vmax.f32 %v1490, %v1618
        %v1947 = vmax.f32 %v1493, %v1621
        %v1948 = vmax.f32 %v1498, %v1626
        %v1949 = vmax.f32 %v1501, %v1629
        %v1950 = vmax.f32 %v1506, %v1634
        %v1951 = vmax.f32 %v1509, %v1637
        %v1952 = vmax.f32 %v1514, %v1642
        %v1953 = vmax.f32 %v1517, %v1645
        %v1954 = vmax.f32 %v1522, %v1650
        %v1955 = vmax.f32 %v1525, %v1653
        %v1956 = vmax.f32 %v1530, %v1658
        %v1957 = vmax.f32 %v1533, %v1661
        %v1958 = vmax.f32 %v1538, %v1666
        %v1959 = vmax.f32 %v1541, %v1669
        %v1960 = vmax.f32 %v1674, %v1802
        %v1961 = vmax.f32 %v1677, %v1805
        %v1962 = vmax.f32 %v1682, %v1810
        %v1963 = vmax.f32 %v1685, %v1813
        %v1964 = vmax.f32 %v1690, %v1818
        %v1965 = vmax.f32 %v1693, %v1821
        %v1966 = vmax.f32 %v1698, %v1826
        %v1967 = vmax.f32 %v1701, %v1829
        %v1968 = vmax.f32 %v1706, %v1834
        %v1969 = vmax.f32 %v1709, %v1837
        %v1970 = vmax.f32 %v1714, %v1842
        %v1971 = vmax.f32 %v1717, %v1845
        %v1972 = vmax.f32 %v1722, %v1850
        %v1973 = vmax.f32 %v1725, %v1853
        %v1974 = vmax.f32 %v1730, %v1858
        %v1975 = vmax.f32 %v1733, %v1861
        %v1976 = vmax.f32 %v1738, %v1866
        %v1977 = vmax.f32 %v1741, %v1869
        %v1978 = vmax.f32 %v1746, %v1874
        %v1979 = vmax.f32 %v1749, %v1877
        %v1980 = vmax.f32 %v1754, %v1882
        %v1981 = vmax.f32 %v1757, %v1885
        %v1982 = vmax.f32 %v1762, %v1890
        %v1983 = vmax.f32 %v1765, %v1893
        %v1984 = vmax.f32 %v1770, %v1898
        %v1985 = vmax.f32 %v1773, %v1901
        %v1986 = vmax.f32 %v1778, %v1906
        %v1987 = vmax.f32 %v1781, %v1909
        %v1988 = vmax.f32 %v1786, %v1914
        %v1989 = vmax.f32 %v1789, %v1917
        %v1990 = vmax.f32 %v1794, %v1922
        %v1991 = vmax.f32 %v1797, %v1925
        %v1992 = vmax.f32 %v1928, %v1960
        %v1993 = vmax.f32 %v1929, %v1961
        %v1994 = vmax.f32 %v1930, %v1962
        %v1995 = vmax.f32 %v1931, %v1963
        %v1996 = vmax.f32 %v1932, %v1964
        %v1997 = vmax.f32 %v1933, %v1965
        %v1998 = vmax.f32 %v1934, %v1966
        %v1999 = vmax.f32 %v1935, %v1967
        %v2000 = vmax.f32 %v1936, %v1968
        %v2001 = vmax.f32 %v1937, %v1969
        %v2002 = vmax.f32 %v1938, %v1970
        %v2003 = vmax.f32 %v1939, %v1971
        %v2004 = vmax.f32 %v1940, %v1972
        %v2005 = vmax.f32 %v1941, %v1973
        %v2006 = vmax.f32 %v1942, %v1974
        %v2007 = vmax.f32 %v1943, %v1975
        %v2008 = vmax.f32 %v1944, %v1976
        %v2009 = vmax.f32 %v1945, %v1977
        %v2010 = vmax.f32 %v1946, %v1978
        %v2011 = vmax.f32 %v1947, %v1979
        %v2012 = vmax.f32 %v1948, %v1980
        %v2013 = vmax.f32 %v1949, %v1981
        %v2014 = vmax.f32 %v1950, %v1982
        %v2015 = vmax.f32 %v1951, %v1983
        %v2016 = vmax.f32 %v1952, %v1984
        %v2017 = vmax.f32 %v1953, %v1985
        %v2018 = vmax.f32 %v1954, %v1986
        %v2019 = vmax.f32 %v1955, %v1987
        %v2020 = vmax.f32 %v1956, %v1988
        %v2021 = vmax.f32 %v1957, %v1989
        %v2022 = vmax.f32 %v1958, %v1990
        %v2023 = vmax.f32 %v1959, %v1991
        %v2024 = vld [vmem:[%s2] sm:$0x1]
        %v2026 = vlaneseq
        %v2027 = vshrl.u32 %v2026, 7
        %v2028 = vsub.s32 0, %v2027
        %v2029 = vrot.slane %v2024, %v2028
        %v2031 = vadd.f32 %v1992, %v2029
        %v2032 = vadd.f32 %v1993, %v2029
        %v2033 = vadd.f32 %v1994, %v2029
        %v2034 = vadd.f32 %v1995, %v2029
        %v2035 = vadd.f32 %v1996, %v2029
        %v2036 = vadd.f32 %v1997, %v2029
        %v2037 = vadd.f32 %v1998, %v2029
        %v2038 = vadd.f32 %v1999, %v2029
        %v2039 = vadd.f32 %v2000, %v2029
        %v2040 = vadd.f32 %v2001, %v2029
        %v2041 = vadd.f32 %v2002, %v2029
        %v2042 = vadd.f32 %v2003, %v2029
        %v2043 = vadd.f32 %v2004, %v2029
        %v2044 = vadd.f32 %v2005, %v2029
        %v2045 = vadd.f32 %v2006, %v2029
        %v2046 = vadd.f32 %v2007, %v2029
        %v2047 = vadd.f32 %v2008, %v2029
        %v2048 = vadd.f32 %v2009, %v2029
        %v2049 = vadd.f32 %v2010, %v2029
        %v2050 = vadd.f32 %v2011, %v2029
        %v2051 = vadd.f32 %v2012, %v2029
        %v2052 = vadd.f32 %v2013, %v2029
        %v2053 = vadd.f32 %v2014, %v2029
        %v2054 = vadd.f32 %v2015, %v2029
        %v2055 = vadd.f32 %v2016, %v2029
        %v2056 = vadd.f32 %v2017, %v2029
        %v2057 = vadd.f32 %v2018, %v2029
        %v2058 = vadd.f32 %v2019, %v2029
        %v2059 = vadd.f32 %v2020, %v2029
        %v2060 = vadd.f32 %v2021, %v2029
        %v2061 = vadd.f32 %v2022, %v2029
        %v2062 = vadd.f32 %v2023, %v2029
        %v2063 = vmax.f32 %v2031, 0.0
        %v2064 = vmax.f32 %v2032, 0.0
        %v2065 = vmax.f32 %v2033, 0.0
        %v2066 = vmax.f32 %v2034, 0.0
        %v2067 = vmax.f32 %v2035, 0.0
        %v2068 = vmax.f32 %v2036, 0.0
        %v2069 = vmax.f32 %v2037, 0.0
        %v2070 = vmax.f32 %v2038, 0.0
        %v2071 = vmax.f32 %v2039, 0.0
        %v2072 = vmax.f32 %v2040, 0.0
        %v2073 = vmax.f32 %v2041, 0.0
        %v2074 = vmax.f32 %v2042, 0.0
        %v2075 = vmax.f32 %v2043, 0.0
        %v2076 = vmax.f32 %v2044, 0.0
        %v2077 = vmax.f32 %v2045, 0.0
        %v2078 = vmax.f32 %v2046, 0.0
        %v2079 = vmax.f32 %v2047, 0.0
        %v2080 = vmax.f32 %v2048, 0.0
        %v2081 = vmax.f32 %v2049, 0.0
        %v2082 = vmax.f32 %v2050, 0.0
        %v2083 = vmax.f32 %v2051, 0.0
        %v2084 = vmax.f32 %v2052, 0.0
        %v2085 = vmax.f32 %v2053, 0.0
        %v2086 = vmax.f32 %v2054, 0.0
        %v2087 = vmax.f32 %v2055, 0.0
        %v2088 = vmax.f32 %v2056, 0.0
        %v2089 = vmax.f32 %v2057, 0.0
        %v2090 = vmax.f32 %v2058, 0.0
        %v2091 = vmax.f32 %v2059, 0.0
        %v2092 = vmax.f32 %v2060, 0.0
        %v2093 = vmax.f32 %v2061, 0.0
        %v2094 = vmax.f32 %v2062, 0.0
        %v2095 = vpack.c.bf16 %v2064, %v2063
        %v2096 = vpack.c.bf16 %v2066, %v2065
        %v2097 = vpack.c.bf16 %v2068, %v2067
        %v2098 = vpack.c.bf16 %v2070, %v2069
        %v2099 = vpack.c.bf16 %v2072, %v2071
        %v2100 = vpack.c.bf16 %v2074, %v2073
        %v2101 = vpack.c.bf16 %v2076, %v2075
        %v2102 = vpack.c.bf16 %v2078, %v2077
        %v2103 = vpack.c.bf16 %v2080, %v2079
        %v2104 = vpack.c.bf16 %v2082, %v2081
        %v2105 = vpack.c.bf16 %v2084, %v2083
        %v2106 = vpack.c.bf16 %v2086, %v2085
        %v2107 = vpack.c.bf16 %v2088, %v2087
        %v2108 = vpack.c.bf16 %v2090, %v2089
        %v2109 = vpack.c.bf16 %v2092, %v2091
        %v2110 = vpack.c.bf16 %v2094, %v2093
        %v2127 = vunpack.c.l.b16 %v2095
        %v2128 = vunpack.c.h.b16 %v2095
        %v2129 = vunpack.c.l.b16 %v2096
        %v2130 = vunpack.c.h.b16 %v2096
        %v2131 = vunpack.c.l.b16 %v2097
        %v2132 = vunpack.c.h.b16 %v2097
        %v2133 = vunpack.c.l.b16 %v2098
        %v2134 = vunpack.c.h.b16 %v2098
        %v2135 = vunpack.c.l.b16 %v2099
        %v2136 = vunpack.c.h.b16 %v2099
        %v2137 = vunpack.c.l.b16 %v2100
        %v2138 = vunpack.c.h.b16 %v2100
        %v2139 = vunpack.c.l.b16 %v2101
        %v2140 = vunpack.c.h.b16 %v2101
        %v2141 = vunpack.c.l.b16 %v2102
        %v2142 = vunpack.c.h.b16 %v2102
        %v2143 = vunpack.c.l.b16 %v2103
        %v2144 = vunpack.c.h.b16 %v2103
        %v2145 = vunpack.c.l.b16 %v2104
        %v2146 = vunpack.c.h.b16 %v2104
        %v2147 = vunpack.c.l.b16 %v2105
        %v2148 = vunpack.c.h.b16 %v2105
        %v2149 = vunpack.c.l.b16 %v2106
        %v2150 = vunpack.c.h.b16 %v2106
        %v2151 = vunpack.c.l.b16 %v2107
        %v2152 = vunpack.c.h.b16 %v2107
        %v2153 = vunpack.c.l.b16 %v2108
        %v2154 = vunpack.c.h.b16 %v2108
        %v2155 = vunpack.c.l.b16 %v2109
        %v2156 = vunpack.c.h.b16 %v2109
        %v2157 = vunpack.c.l.b16 %v2110
        %v2158 = vunpack.c.h.b16 %v2110
        %v2159 = vpack.c.b16 %v2127, %v2127
        %v2160 = vpack.c.b16 %v2128, %v2128
        %v2161 = vpack.c.b16 %v2129, %v2129
        %v2162 = vpack.c.b16 %v2130, %v2130
        %v2163 = vpack.c.b16 %v2131, %v2131
        %v2164 = vpack.c.b16 %v2132, %v2132
        %v2165 = vpack.c.b16 %v2133, %v2133
        %v2166 = vpack.c.b16 %v2134, %v2134
        %v2167 = vpack.c.b16 %v2135, %v2135
        %v2168 = vpack.c.b16 %v2136, %v2136
        %v2169 = vpack.c.b16 %v2137, %v2137
        %v2170 = vpack.c.b16 %v2138, %v2138
        %v2171 = vpack.c.b16 %v2139, %v2139
        %v2172 = vpack.c.b16 %v2140, %v2140
        %v2173 = vpack.c.b16 %v2141, %v2141
        %v2174 = vpack.c.b16 %v2142, %v2142
        %v2175 = vpack.c.b16 %v2143, %v2143
        %v2176 = vpack.c.b16 %v2144, %v2144
        %v2177 = vpack.c.b16 %v2145, %v2145
        %v2178 = vpack.c.b16 %v2146, %v2146
        %v2179 = vpack.c.b16 %v2147, %v2147
        %v2180 = vpack.c.b16 %v2148, %v2148
        %v2181 = vpack.c.b16 %v2149, %v2149
        %v2182 = vpack.c.b16 %v2150, %v2150
        %v2183 = vpack.c.b16 %v2151, %v2151
        %v2184 = vpack.c.b16 %v2152, %v2152
        %v2185 = vpack.c.b16 %v2153, %v2153
        %v2186 = vpack.c.b16 %v2154, %v2154
        %v2187 = vpack.c.b16 %v2155, %v2155
        %v2188 = vpack.c.b16 %v2156, %v2156
        %v2189 = vpack.c.b16 %v2157, %v2157
        %v2190 = vpack.c.b16 %v2158, %v2158
        %2223 = vst [vmem:[%s723] sm:$0xf] %v2159
        %2224 = vst [vmem:[%s723 + $0x4] sm:$0xf] %v2160
        %2225 = vst [vmem:[%s723 + $0x8] sm:$0xf] %v2161
        %2226 = vst [vmem:[%s723 + $0xc] sm:$0xf] %v2162
        %2227 = vst [vmem:[%s723 + $0x10] sm:$0xf] %v2163
        %2228 = vst [vmem:[%s723 + $0x14] sm:$0xf] %v2164
        %2229 = vst [vmem:[%s723 + $0x18] sm:$0xf] %v2165
        %2230 = vst [vmem:[%s723 + $0x1c] sm:$0xf] %v2166
        %2231 = vst [vmem:[%s723 + $0x20] sm:$0xf] %v2167
        %2232 = vst [vmem:[%s723 + $0x24] sm:$0xf] %v2168
        %2233 = vst [vmem:[%s723 + $0x28] sm:$0xf] %v2169
        %2234 = vst [vmem:[%s723 + $0x2c] sm:$0xf] %v2170
        %2235 = vst [vmem:[%s723 + $0x30] sm:$0xf] %v2171
        %2236 = vst [vmem:[%s723 + $0x34] sm:$0xf] %v2172
        %2237 = vst [vmem:[%s723 + $0x38] sm:$0xf] %v2173
        %2238 = vst [vmem:[%s723 + $0x3c] sm:$0xf] %v2174
        %2239 = vst [vmem:[%s723 + $0x40] sm:$0xf] %v2175
        %2240 = vst [vmem:[%s723 + $0x44] sm:$0xf] %v2176
        %2241 = vst [vmem:[%s723 + $0x48] sm:$0xf] %v2177
        %2242 = vst [vmem:[%s723 + $0x4c] sm:$0xf] %v2178
        %2243 = vst [vmem:[%s723 + $0x50] sm:$0xf] %v2179
        %2244 = vst [vmem:[%s723 + $0x54] sm:$0xf] %v2180
        %2245 = vst [vmem:[%s723 + $0x58] sm:$0xf] %v2181
        %2246 = vst [vmem:[%s723 + $0x5c] sm:$0xf] %v2182
        %2247 = vst [vmem:[%s723 + $0x60] sm:$0xf] %v2183
        %2248 = vst [vmem:[%s723 + $0x64] sm:$0xf] %v2184
        %2249 = vst [vmem:[%s723 + $0x68] sm:$0xf] %v2185
        %2250 = vst [vmem:[%s723 + $0x6c] sm:$0xf] %v2186
        %2251 = vst [vmem:[%s723 + $0x70] sm:$0xf] %v2187
        %2252 = vst [vmem:[%s723 + $0x74] sm:$0xf] %v2188
        %2253 = vst [vmem:[%s723 + $0x78] sm:$0xf] %v2189
        %2254 = vst [vmem:[%s723 + $0x7c] sm:$0xf] %v2190
        %s2255 = smul.u32 32, %s14
        %p2256 = scmp.lt.s32.totalorder %s2255, 63
        %s2257 = scalar_select %p2256, %s2255, 63
        %s2258 = smul.addr %s2257, 4
        %s2259 = scalar_lea.vmem %s3, %s2258
        // Predicated region
        $region74: #{vgg4_forward.4} parent=68 // pred_check
          %p2260 = pneg %p100
        $region75: #{vgg4_forward.4} parent=68 // pred_check_branch
          %2262 = sbr.rel (%p2260) target = $region77
        $region76: #{vgg4_forward.4} parent=68 // pred_region
          %s2263 = smul.u32 32, %s14
        $region77: #{vgg4_forward.4} parent=68 // pred_fallthru
          _
      $region69: #{vgg4_forward.4} parent=5 // pred_fallthru
        _
      %p2264 = scmp.le.s32.totalorder 2, %s9
      // Predicated region
      $region78: #{vgg4_forward.4} parent=5 // pred_check
        %p2265 = pneg %p2264
      $region79: #{vgg4_forward.4} parent=5 // pred_check_branch
        %2267 = sbr.rel (%p2265) target = $region81
      $region80: #{vgg4_forward.4} parent=5 // pred_region
        %s2268 = ssub.s32 %s9, 2
        // Predicated region
        $region82: #{vgg4_forward.4} parent=80 // pred_check
          %p2269 = pneg %p106
        $region83: #{vgg4_forward.4} parent=80 // pred_check_branch
          %2271 = sbr.rel (%p2269) target = $region85
        $region84: #{vgg4_forward.4} parent=80 // pred_region
          %s2272 = smul.u32 32, %s15
          %p2273 = scmp.lt.s32.totalorder %s2272, 63
          %s2274 = scalar_select %p2273, %s2272, 63
          %s2275 = smul.addr %s2274, 4
          %s2276 = scalar_lea.vmem %s3, %s2275
        $region85: #{vgg4_forward.4} parent=80 // pred_fallthru
          _
      $region81: #{vgg4_forward.4} parent=5 // pred_fallthru
        _
    $region6: #{vgg4_forward.4} parent=1 // loop_footer
      %s13 = sadd.s32 1, %s9
    $region7: #{vgg4_forward.4} parent=1 // loop_footer_branch
      %8 = sbr.rel target = $region3
    $region8: #{vgg4_forward.4} parent=1 // loop_exit
      _

// kernel: vgg4_forward.5
$region0: #{vgg4_forward.5}
  #allocation0 [shape = 'u32[]', space=smem, size = 0x4, offset = 0x4, fixed_abs, tag = 'smem constant byte address 0x4 - core index']
  #allocation1 [shape = 'u32[144,128]{1,0:T(1,128)}', space=vmem, size = 0x12000, scoped, tag = 'internal scratch']
  %s0 = inlined_call_operand.vmem [shape: bf16[4,128,144], index: 0, kind: input, shape index: {}]
  %s1 = inlined_call_operand.vmem [shape: bf16[144,128], index: 1, kind: input, shape index: {}]
  %s2 = inlined_call_operand.vmem [shape: f32[1,128], index: 2, kind: input, shape index: {}]
  %s3 = inlined_call_operand.vmem [shape: bf16[128,128], index: 3, kind: output, shape index: {}]
  %s4 = sld [smem:[#allocation0]]
  $region83: #{vgg4_forward.5} parent=0
    _
  %s6 = ssub.s32 1, %s4
  %s7 = scalar_select 0, %s6, %s4
  $region1: #{vgg4_forward.5} parent=0
    #allocation2 [shape = 'u8[262144]{0}', space=vmem, size = 0x40000, scoped, tag = 'input window, operand 0']
    loop: start=0, step=1, limit=4
    $region2: #{vgg4_forward.5} parent=1 // loop_pre_header
      _
    $region3: #{vgg4_forward.5} parent=1 // loop_header
      %s9 = sphi 0, %s13
      %p10 = scmp.ge.s32.totalorder %s9, 4
      %s19 = sphi 0, %s21
      %s22 = sphi 0, %s19
      %s23 = sphi 0, %s22
      %s39 = sphi 0, %s23
      %s43 = sphi 0, %s43
      %s45 = sphi 0, %s43
      %s46 = sphi 0, %s45
      %s60 = sphi 0, %s46
      %s64 = sphi 0, %s64
      %s66 = sphi 0, %s64
      %s67 = sphi 0, %s66
      %s81 = sphi 0, %s67
      %s87 = sphi 0, %s89
      %s90 = sphi 0, %s87
      %s91 = sphi 0, %s90
      %s107 = sphi 0, %s91
    $region4: #{vgg4_forward.5} parent=1 // loop_header_branch
      %12 = sbr.rel (%p10) target = $region8
    $region5: #{vgg4_forward.5} parent=1 // loop_body
      %s14 = ssub.s32 %s9, 1
      %s15 = ssub.s32 %s9, 2
      %s16 = sadd.s32 %s9, 1
      %s17 = ssub.s32 %s9, %s16
      %p18 = scmp.eq.s32.totalorder %s17, 0
      %s20 = sadd.s32 %s19, 1
      %s21 = scalar_select %p18, %s19, %s20
      %p24 = pneg %p18
      %p25 = scmp.eq.s32.totalorder %s9, 1
      %p26 = por %p24, %p25
      %p27 = scmp.ne.s32.totalorder %s19, %s22
      %p28 = scmp.eq.s32.totalorder %s9, 0
      %p29 = por %p27, %p28
      %p30 = scmp.ne.s32.totalorder %s19, %s22
      %p31 = scmp.eq.s32.totalorder %s14, 1
      %p32 = por %p30, %p31
      %p33 = scmp.ne.s32.totalorder %s22, %s23
      %p34 = scmp.eq.s32.totalorder %s14, 0
      %p35 = por %p33, %p34
      %p36 = scmp.ne.s32.totalorder %s22, %s23
      %p37 = scmp.eq.s32.totalorder %s15, 1
      %p38 = por %p36, %p37
      %p40 = scmp.ne.s32.totalorder %s23, %s39
      %p41 = scmp.eq.s32.totalorder %s15, 0
      %p42 = por %p40, %p41
      %s44 = sadd.s32 %s43, 1
      %p47 = scmp.eq.s32.totalorder %s9, 1
      %p48 = scmp.ne.s32.totalorder %s43, %s45
      %p49 = scmp.eq.s32.totalorder %s9, 0
      %p50 = por %p48, %p49
      %p51 = scmp.ne.s32.totalorder %s43, %s45
      %p52 = scmp.eq.s32.totalorder %s14, 1
      %p53 = por %p51, %p52
      %p54 = scmp.ne.s32.totalorder %s45, %s46
      %p55 = scmp.eq.s32.totalorder %s14, 0
      %p56 = por %p54, %p55
      %p57 = scmp.ne.s32.totalorder %s45, %s46
      %p58 = scmp.eq.s32.totalorder %s15, 1
      %p59 = por %p57, %p58
      %p61 = scmp.ne.s32.totalorder %s46, %s60
      %p62 = scmp.eq.s32.totalorder %s15, 0
      %p63 = por %p61, %p62
      %s65 = sadd.s32 %s64, 1
      %p68 = scmp.eq.s32.totalorder %s9, 1
      %p69 = scmp.ne.s32.totalorder %s64, %s66
      %p70 = scmp.eq.s32.totalorder %s9, 0
      %p71 = por %p69, %p70
      %p72 = scmp.ne.s32.totalorder %s64, %s66
      %p73 = scmp.eq.s32.totalorder %s14, 1
      %p74 = por %p72, %p73
      %p75 = scmp.ne.s32.totalorder %s66, %s67
      %p76 = scmp.eq.s32.totalorder %s14, 0
      %p77 = por %p75, %p76
      %p78 = scmp.ne.s32.totalorder %s66, %s67
      %p79 = scmp.eq.s32.totalorder %s15, 1
      %p80 = por %p78, %p79
      %p82 = scmp.ne.s32.totalorder %s67, %s81
      %p83 = scmp.eq.s32.totalorder %s15, 0
      %p84 = por %p82, %p83
      %s85 = ssub.s32 %s9, %s16
      %p86 = scmp.eq.s32.totalorder %s85, 0
      %s88 = sadd.s32 %s87, 1
      %s89 = scalar_select %p86, %s87, %s88
      %p92 = pneg %p86
      %p93 = scmp.eq.s32.totalorder %s9, 1
      %p94 = por %p92, %p93
      %p95 = scmp.ne.s32.totalorder %s87, %s90
      %p96 = scmp.eq.s32.totalorder %s9, 0
      %p97 = por %p95, %p96
      %p98 = scmp.ne.s32.totalorder %s87, %s90
      %p99 = scmp.eq.s32.totalorder %s14, 1
      %p100 = por %p98, %p99
      %p101 = scmp.ne.s32.totalorder %s90, %s91
      %p102 = scmp.eq.s32.totalorder %s14, 0
      %p103 = por %p101, %p102
      %p104 = scmp.ne.s32.totalorder %s90, %s91
      %p105 = scmp.eq.s32.totalorder %s15, 1
      %p106 = por %p104, %p105
      %p108 = scmp.ne.s32.totalorder %s91, %s107
      %p109 = scmp.eq.s32.totalorder %s15, 0
      %p110 = por %p108, %p109
      %p111 = scmp.le.s32.totalorder 1, %s9
      %p112 = scmp.lt.s32.totalorder %s9, 3
      %p113 = pnand %p111, %p112
      %p114 = pneg %p113
      // Predicated region
      $region9: #{vgg4_forward.5} parent=5 // pred_check
        _
      $region10: #{vgg4_forward.5} parent=5 // pred_check_branch
        %116 = sbr.rel (%p113) target = $region12
      $region11: #{vgg4_forward.5} parent=5 // pred_region
        %s117 = ssub.s32 %s9, 1
        // Predicated region
        $region13: #{vgg4_forward.5} parent=11 // pred_check
          %p118 = pneg %p56
        $region14: #{vgg4_forward.5} parent=11 // pred_check_branch
          %120 = sbr.rel (%p118) target = $region16
        $region15: #{vgg4_forward.5} parent=11 // pred_region
          _
        $region16: #{vgg4_forward.5} parent=11 // pred_fallthru
          _
        // Predicated region
        $region17: #{vgg4_forward.5} parent=11 // pred_check
          %p121 = pneg %p77
        $region18: #{vgg4_forward.5} parent=11 // pred_check_branch
          %123 = sbr.rel (%p121) target = $region20
        $region19: #{vgg4_forward.5} parent=11 // pred_region
          _
        $region20: #{vgg4_forward.5} parent=11 // pred_fallthru
          _
      $region12: #{vgg4_forward.5} parent=5 // pred_fallthru
        _
      %p124 = scmp.lt.s32.totalorder %s9, 2
      // Predicated region
      $region21: #{vgg4_forward.5} parent=5 // pred_check
        %p125 = pneg %p124
      $region22: #{vgg4_forward.5} parent=5 // pred_check_branch
        %127 = sbr.rel (%p125) target = $region24
      $region23: #{vgg4_forward.5} parent=5 // pred_region
        // Predicated region
        $region25: #{vgg4_forward.5} parent=23 // pred_check
          %p128 = pneg %p29
        $region26: #{vgg4_forward.5} parent=23 // pred_check_branch
          %130 = sbr.rel (%p128) target = $region28
        $region27: #{vgg4_forward.5} parent=23 // pred_region
          %s131 = sand.u32 %s19, 1
          %s132 = sand.u32 %s19, 1
          %s133 = smul.addr %s132, 256
          %s134 = scalar_lea.vmem [#allocation2], %s133
          %s135 = smul.u32 8, %s9
          %s136 = smul.addr %s135, 2
          %s137 = smul.addr %s136, 4
          %s138 = scalar_lea.vmem %s0, %s137
          // Predicated region
          $region29: #{vgg4_forward.5} parent=27 // pred_check
            _
          $region30: #{vgg4_forward.5} parent=27 // pred_check_branch
            %140 = sbr.rel (0) target = $region32
          $region31: #{vgg4_forward.5} parent=27 // pred_region
            // Predicated region
            $region33: #{vgg4_forward.5} parent=31 // pred_check
              _
            $region34: #{vgg4_forward.5} parent=31 // pred_check_branch
              %142 = sbr.rel (0) target = $region36
            $region35: #{vgg4_forward.5} parent=31 // pred_region
              // Predicated region
              $region48: #{vgg4_forward.5} parent=35 // pred_check
                _
              $region49: #{vgg4_forward.5} parent=35 // pred_check_branch
                %220 = sbr.rel (0) target = $region51
              $region50: #{vgg4_forward.5} parent=35 // pred_region
                loop: start=0, step=1, limit=1
                $region52: #{vgg4_forward.5} parent=50 // loop_pre_header
                  _
                $region53: #{vgg4_forward.5} parent=50 // loop_header
                  %s222 = sphi 0, %s226
                  %p223 = scmp.ge.s32.totalorder %s222, 1
                  %s227 = sphi %s138, %s138
                  %s228 = sphi %s134, %s134
                $region54: #{vgg4_forward.5} parent=50 // loop_header_branch
                  %225 = sbr.rel (%p223) target = $region58
                $region55: #{vgg4_forward.5} parent=50 // loop_body
                  %v229 = vld [vmem:[%s227] sm:$0xff]
                  %230 = vst [vmem:[%s228] sm:$0xff] %v229
                  %v231 = vld [vmem:[%s227 + $0x8] sm:$0xff]
                  %232 = vst [vmem:[%s228 + $0x8] sm:$0xff] %v231
                  %v233 = vld [vmem:[%s227 + $0x10] sm:$0xff]
                  %234 = vst [vmem:[%s228 + $0x10] sm:$0xff] %v233
                  %v235 = vld [vmem:[%s227 + $0x18] sm:$0xff]
                  %236 = vst [vmem:[%s228 + $0x18] sm:$0xff] %v235
                  %v237 = vld [vmem:[%s227 + $0x20] sm:$0xff]
                  %238 = vst [vmem:[%s228 + $0x20] sm:$0xff] %v237
                  %v239 = vld [vmem:[%s227 + $0x28] sm:$0xff]
                  %240 = vst [vmem:[%s228 + $0x28] sm:$0xff] %v239
                  %v241 = vld [vmem:[%s227 + $0x30] sm:$0xff]
                  %242 = vst [vmem:[%s228 + $0x30] sm:$0xff] %v241
                  %v243 = vld [vmem:[%s227 + $0x38] sm:$0xff]
                  %244 = vst [vmem:[%s228 + $0x38] sm:$0xff] %v243
                  %v245 = vld [vmem:[%s227 + $0x80] sm:$0xff]
                  %246 = vst [vmem:[%s228 + $0x40] sm:$0xff] %v245
                  %v247 = vld [vmem:[%s227 + $0x88] sm:$0xff]
                  %248 = vst [vmem:[%s228 + $0x48] sm:$0xff] %v247
                  %v249 = vld [vmem:[%s227 + $0x90] sm:$0xff]
                  %250 = vst [vmem:[%s228 + $0x50] sm:$0xff] %v249
                  %v251 = vld [vmem:[%s227 + $0x98] sm:$0xff]
                  %252 = vst [vmem:[%s228 + $0x58] sm:$0xff] %v251
                  %v253 = vld [vmem:[%s227 + $0xa0] sm:$0xff]
                  %254 = vst [vmem:[%s228 + $0x60] sm:$0xff] %v253
                  %v255 = vld [vmem:[%s227 + $0xa8] sm:$0xff]
                  %256 = vst [vmem:[%s228 + $0x68] sm:$0xff] %v255
                  %v257 = vld [vmem:[%s227 + $0xb0] sm:$0xff]
                  %258 = vst [vmem:[%s228 + $0x70] sm:$0xff] %v257
                  %v259 = vld [vmem:[%s227 + $0xb8] sm:$0xff]
                  %260 = vst [vmem:[%s228 + $0x78] sm:$0xff] %v259
                  %v261 = vld [vmem:[%s227 + $0x100] sm:$0xff]
                  %262 = vst [vmem:[%s228 + $0x80] sm:$0xff] %v261
                  %v263 = vld [vmem:[%s227 + $0x108] sm:$0xff]
                  %264 = vst [vmem:[%s228 + $0x88] sm:$0xff] %v263
                  %v265 = vld [vmem:[%s227 + $0x110] sm:$0xff]
                  %266 = vst [vmem:[%s228 + $0x90] sm:$0xff] %v265
                  %v267 = vld [vmem:[%s227 + $0x118] sm:$0xff]
                  %268 = vst [vmem:[%s228 + $0x98] sm:$0xff] %v267
                  %v269 = vld [vmem:[%s227 + $0x120] sm:$0xff]
                  %270 = vst [vmem:[%s228 + $0xa0] sm:$0xff] %v269
                  %v271 = vld [vmem:[%s227 + $0x128] sm:$0xff]
                  %272 = vst [vmem:[%s228 + $0xa8] sm:$0xff] %v271
                  %v273 = vld [vmem:[%s227 + $0x130] sm:$0xff]
                  %274 = vst [vmem:[%s228 + $0xb0] sm:$0xff] %v273
                  %v275 = vld [vmem:[%s227 + $0x138] sm:$0xff]
                  %276 = vst [vmem:[%s228 + $0xb8] sm:$0xff] %v275
                  %v277 = vld [vmem:[%s227 + $0x180] sm:$0xff]
                  %278 = vst [vmem:[%s228 + $0xc0] sm:$0xff] %v277
                  %v279 = vld [vmem:[%s227 + $0x188] sm:$0xff]
                  %280 = vst [vmem:[%s228 + $0xc8] sm:$0xff] %v279
                  %v281 = vld [vmem:[%s227 + $0x190] sm:$0xff]
                  %282 = vst [vmem:[%s228 + $0xd0] sm:$0xff] %v281
                  %v283 = vld [vmem:[%s227 + $0x198] sm:$0xff]
                  %284 = vst [vmem:[%s228 + $0xd8] sm:$0xff] %v283
                  %v285 = vld [vmem:[%s227 + $0x1a0] sm:$0xff]
                  %286 = vst [vmem:[%s228 + $0xe0] sm:$0xff] %v285
                  %v287 = vld [vmem:[%s227 + $0x1a8] sm:$0xff]
                  %288 = vst [vmem:[%s228 + $0xe8] sm:$0xff] %v287
                  %v289 = vld [vmem:[%s227 + $0x1b0] sm:$0xff]
                  %290 = vst [vmem:[%s228 + $0xf0] sm:$0xff] %v289
                  %v291 = vld [vmem:[%s227 + $0x1b8] sm:$0xff]
                  %292 = vst [vmem:[%s228 + $0xf8] sm:$0xff] %v291
                $region56: #{vgg4_forward.5} parent=50 // loop_footer
                  %s226 = sadd.s32 1, %s222
                $region57: #{vgg4_forward.5} parent=50 // loop_footer_branch
                  %221 = sbr.rel target = $region53
                $region58: #{vgg4_forward.5} parent=50 // loop_exit
                  _
              $region51: #{vgg4_forward.5} parent=35 // pred_fallthru
                _
              // Predicated region
              $region59: #{vgg4_forward.5} parent=35 // pred_check
                _
              $region60: #{vgg4_forward.5} parent=35 // pred_check_branch
                %294 = sbr.rel target = $region62
              $region61: #{vgg4_forward.5} parent=35 // pred_region
                _
              $region62: #{vgg4_forward.5} parent=35 // pred_fallthru
                _
            $region36: #{vgg4_forward.5} parent=31 // pred_fallthru
              _
            // Predicated region
            $region37: #{vgg4_forward.5} parent=31 // pred_check
              _
            $region38: #{vgg4_forward.5} parent=31 // pred_check_branch
              %144 = sbr.rel target = $region40
            $region39: #{vgg4_forward.5} parent=31 // pred_region
              %s146 = ssub.s32 256, 1
              loop: start=0, step=1, limit=1
              $region41: #{vgg4_forward.5} parent=39 // loop_pre_header
                _
              $region42: #{vgg4_forward.5} parent=39 // loop_header
                %s148 = sphi 0, %s152
                %p149 = scmp.ge.s32.totalorder %s148, 1
                %s153 = sphi %s138, %s138
                %s154 = sphi %s134, %s134
              $region43: #{vgg4_forward.5} parent=39 // loop_header_branch
                %151 = sbr.rel (%p149) target = $region47
              $region44: #{vgg4_forward.5} parent=39 // loop_body
                %v155 = vld [vmem:[%s153] sm:%s146]
                %156 = vst [vmem:[%s154] sm:%s146] %v155
                %v157 = vld [vmem:[%s153 + $0x8] sm:%s146]
                %158 = vst [vmem:[%s154 + $0x8] sm:%s146] %v157
                %v159 = vld [vmem:[%s153 + $0x10] sm:%s146]
                %160 = vst [vmem:[%s154 + $0x10] sm:%s146] %v159
                %v161 = vld [vmem:[%s153 + $0x18] sm:%s146]
                %162 = vst [vmem:[%s154 + $0x18] sm:%s146] %v161
                %v163 = vld [vmem:[%s153 + $0x20] sm:%s146]
                %164 = vst [vmem:[%s154 + $0x20] sm:%s146] %v163
                %v165 = vld [vmem:[%s153 + $0x28] sm:%s146]
                %166 = vst [vmem:[%s154 + $0x28] sm:%s146] %v165
                %v167 = vld [vmem:[%s153 + $0x30] sm:%s146]
                %168 = vst [vmem:[%s154 + $0x30] sm:%s146] %v167
                %v169 = vld [vmem:[%s153 + $0x38] sm:%s146]
                %170 = vst [vmem:[%s154 + $0x38] sm:%s146] %v169
                %v171 = vld [vmem:[%s153 + $0x80] sm:%s146]
                %172 = vst [vmem:[%s154 + $0x40] sm:%s146] %v171
                %v173 = vld [vmem:[%s153 + $0x88] sm:%s146]
                %174 = vst [vmem:[%s154 + $0x48] sm:%s146] %v173
                %v175 = vld [vmem:[%s153 + $0x90] sm:%s146]
                %176 = vst [vmem:[%s154 + $0x50] sm:%s146] %v175
                %v177 = vld [vmem:[%s153 + $0x98] sm:%s146]
                %178 = vst [vmem:[%s154 + $0x58] sm:%s146] %v177
                %v179 = vld [vmem:[%s153 + $0xa0] sm:%s146]
                %180 = vst [vmem:[%s154 + $0x60] sm:%s146] %v179
                %v181 = vld [vmem:[%s153 + $0xa8] sm:%s146]
                %182 = vst [vmem:[%s154 + $0x68] sm:%s146] %v181
                %v183 = vld [vmem:[%s153 + $0xb0] sm:%s146]
                %184 = vst [vmem:[%s154 + $0x70] sm:%s146] %v183
                %v185 = vld [vmem:[%s153 + $0xb8] sm:%s146]
                %186 = vst [vmem:[%s154 + $0x78] sm:%s146] %v185
                %v187 = vld [vmem:[%s153 + $0x100] sm:%s146]
                %188 = vst [vmem:[%s154 + $0x80] sm:%s146] %v187
                %v189 = vld [vmem:[%s153 + $0x108] sm:%s146]
                %190 = vst [vmem:[%s154 + $0x88] sm:%s146] %v189
                %v191 = vld [vmem:[%s153 + $0x110] sm:%s146]
                %192 = vst [vmem:[%s154 + $0x90] sm:%s146] %v191
                %v193 = vld [vmem:[%s153 + $0x118] sm:%s146]
                %194 = vst [vmem:[%s154 + $0x98] sm:%s146] %v193
                %v195 = vld [vmem:[%s153 + $0x120] sm:%s146]
                %196 = vst [vmem:[%s154 + $0xa0] sm:%s146] %v195
                %v197 = vld [vmem:[%s153 + $0x128] sm:%s146]
                %198 = vst [vmem:[%s154 + $0xa8] sm:%s146] %v197
                %v199 = vld [vmem:[%s153 + $0x130] sm:%s146]
                %200 = vst [vmem:[%s154 + $0xb0] sm:%s146] %v199
                %v201 = vld [vmem:[%s153 + $0x138] sm:%s146]
                %202 = vst [vmem:[%s154 + $0xb8] sm:%s146] %v201
                %v203 = vld [vmem:[%s153 + $0x180] sm:%s146]
                %204 = vst [vmem:[%s154 + $0xc0] sm:%s146] %v203
                %v205 = vld [vmem:[%s153 + $0x188] sm:%s146]
                %206 = vst [vmem:[%s154 + $0xc8] sm:%s146] %v205
                %v207 = vld [vmem:[%s153 + $0x190] sm:%s146]
                %208 = vst [vmem:[%s154 + $0xd0] sm:%s146] %v207
                %v209 = vld [vmem:[%s153 + $0x198] sm:%s146]
                %210 = vst [vmem:[%s154 + $0xd8] sm:%s146] %v209
                %v211 = vld [vmem:[%s153 + $0x1a0] sm:%s146]
                %212 = vst [vmem:[%s154 + $0xe0] sm:%s146] %v211
                %v213 = vld [vmem:[%s153 + $0x1a8] sm:%s146]
                %214 = vst [vmem:[%s154 + $0xe8] sm:%s146] %v213
                %v215 = vld [vmem:[%s153 + $0x1b0] sm:%s146]
                %216 = vst [vmem:[%s154 + $0xf0] sm:%s146] %v215
                %v217 = vld [vmem:[%s153 + $0x1b8] sm:%s146]
                %218 = vst [vmem:[%s154 + $0xf8] sm:%s146] %v217
              $region45: #{vgg4_forward.5} parent=39 // loop_footer
                %s152 = sadd.s32 1, %s148
              $region46: #{vgg4_forward.5} parent=39 // loop_footer_branch
                %147 = sbr.rel target = $region42
              $region47: #{vgg4_forward.5} parent=39 // loop_exit
                _
            $region40: #{vgg4_forward.5} parent=31 // pred_fallthru
              _
          $region32: #{vgg4_forward.5} parent=27 // pred_fallthru
            _
          %295 = vnop
        $region28: #{vgg4_forward.5} parent=23 // pred_fallthru
          _
      $region24: #{vgg4_forward.5} parent=5 // pred_fallthru
        _
      %p296 = scmp.le.s32.totalorder 1, %s9
      %p297 = scmp.lt.s32.totalorder %s9, 3
      %p298 = pnand %p296, %p297
      %p299 = pneg %p298
      // Predicated region
      $region63: #{vgg4_forward.5} parent=5 // pred_check
        _
      $region64: #{vgg4_forward.5} parent=5 // pred_check_branch
        %301 = sbr.rel (%p298) target = $region66
      $region65: #{vgg4_forward.5} parent=5 // pred_region
        %s302 = ssub.s32 %s9, 1
        %s303 = sand.u32 %s22, 1
        %s304 = sand.u32 %s22, 1
        %s305 = smul.addr %s304, 256
        %s306 = scalar_lea.vmem [#allocation2], %s305
        // Predicated region
        $region67: #{vgg4_forward.5} parent=65 // pred_check
          %p307 = pneg %p35
        $region68: #{vgg4_forward.5} parent=65 // pred_check_branch
          %309 = sbr.rel (%p307) target = $region70
        $region69: #{vgg4_forward.5} parent=65 // pred_region
          _
        $region70: #{vgg4_forward.5} parent=65 // pred_fallthru
          _
        %s310 = sand.u32 %s22, 1
        %s311 = sand.u32 %s22, 1
        %s312 = smul.addr %s311, 256
        %s313 = scalar_lea.vmem [#allocation2], %s312
        %p314 = pneg %p35
        %p315 = pneg %p32
        %p316 = pneg %p56
        %p317 = pneg %p53
        %p318 = pneg %p77
        %p319 = pneg %p74
        %p320 = pneg %p103
        %p321 = pneg %p100
        %s322 = smul.u32 8, %s14
        %p323 = scmp.lt.s32.totalorder %s322, 15
        %s324 = scalar_select %p323, %s322, 15
        %s325 = smul.addr %s324, 4
        %s326 = scalar_lea.vmem %s3, %s325
        %s327 = smul.u32 8, %s14
        %s328 = smul.u32 8, %s14
        %p329 = scmp.lt.s32.totalorder %s328, 15
        %s330 = scalar_select %p329, %s328, 15
        %s331 = smul.addr %s330, 4
        %s332 = scalar_lea.vmem %s3, %s331
        %s333 = smul.u32 8, %s14
        %v335 = vld [vmem:[%s306] sm:$0xff]
        %v336 = vld [vmem:[%s306 + $0x8] sm:$0xff]
        %v337 = vld [vmem:[%s306 + $0x10] sm:$0xff]
        %v338 = vld [vmem:[%s306 + $0x18] sm:$0xff]
        %v339 = vld [vmem:[%s306 + $0x20] sm:$0xff]
        %v340 = vld [vmem:[%s306 + $0x28] sm:$0xff]
        %v341 = vld [vmem:[%s306 + $0x30] sm:$0xff]
        %v342 = vld [vmem:[%s306 + $0x38] sm:$0xff]
        %v343 = vld [vmem:[%s306 + $0x40] sm:$0xff]
        %v344 = vld [vmem:[%s306 + $0x48] sm:$0xff]
        %v345 = vld [vmem:[%s306 + $0x50] sm:$0xff]
        %v346 = vld [vmem:[%s306 + $0x58] sm:$0xff]
        %v347 = vld [vmem:[%s306 + $0x60] sm:$0xff]
        %v348 = vld [vmem:[%s306 + $0x68] sm:$0xff]
        %v349 = vld [vmem:[%s306 + $0x70] sm:$0xff]
        %v350 = vld [vmem:[%s306 + $0x78] sm:$0xff]
        %v351 = vld [vmem:[%s306 + $0x80] sm:$0xff]
        %v352 = vld [vmem:[%s306 + $0x88] sm:$0xff]
        %v353 = vld [vmem:[%s306 + $0x90] sm:$0xff]
        %v354 = vld [vmem:[%s306 + $0x98] sm:$0xff]
        %v355 = vld [vmem:[%s306 + $0xa0] sm:$0xff]
        %v356 = vld [vmem:[%s306 + $0xa8] sm:$0xff]
        %v357 = vld [vmem:[%s306 + $0xb0] sm:$0xff]
        %v358 = vld [vmem:[%s306 + $0xb8] sm:$0xff]
        %v359 = vld [vmem:[%s306 + $0xc0] sm:$0xff]
        %v360 = vld [vmem:[%s306 + $0xc8] sm:$0xff]
        %v361 = vld [vmem:[%s306 + $0xd0] sm:$0xff]
        %v362 = vld [vmem:[%s306 + $0xd8] sm:$0xff]
        %v363 = vld [vmem:[%s306 + $0xe0] sm:$0xff]
        %v364 = vld [vmem:[%s306 + $0xe8] sm:$0xff]
        %v365 = vld [vmem:[%s306 + $0xf0] sm:$0xff]
        %v366 = vld [vmem:[%s306 + $0xf8] sm:$0xff]
        %v367 = vld [vmem:[%s1] sm:$0xf]
        %v368 = vld [vmem:[%s1 + $0x4] sm:$0xf]
        %v369 = vld [vmem:[%s1 + $0x8] sm:$0xf]
        %v370 = vld [vmem:[%s1 + $0xc] sm:$0xf]
        %v371 = vld [vmem:[%s1 + $0x10] sm:$0xf]
        %v372 = vld [vmem:[%s1 + $0x14] sm:$0xf]
        %v373 = vld [vmem:[%s1 + $0x18] sm:$0xf]
        %v374 = vld [vmem:[%s1 + $0x1c] sm:$0xf]
        %v375 = vld [vmem:[%s1 + $0x20] sm:$0xf]
        %v376 = vld [vmem:[%s1 + $0x24] sm:$0xf]
        %v377 = vld [vmem:[%s1 + $0x28] sm:$0xf]
        %v378 = vld [vmem:[%s1 + $0x2c] sm:$0xf]
        %v379 = vld [vmem:[%s1 + $0x30] sm:$0xf]
        %v380 = vld [vmem:[%s1 + $0x34] sm:$0xf]
        %v381 = vld [vmem:[%s1 + $0x38] sm:$0xf]
        %v382 = vld [vmem:[%s1 + $0x3c] sm:$0xf]
        %v383 = vld [vmem:[%s1 + $0x40] sm:$0xf]
        %v384 = vld [vmem:[%s1 + $0x44] sm:$0xf]
        %v417 = vunpack.c.l.b16 %v335
        %v418 = vunpack.c.h.b16 %v335
        %v419 = vunpack.c.l.b16 %v336
        %v420 = vunpack.c.h.b16 %v336
        %v421 = vunpack.c.l.b16 %v337
        %v422 = vunpack.c.h.b16 %v337
        %v423 = vunpack.c.l.b16 %v338
        %v424 = vunpack.c.h.b16 %v338
        %v425 = vunpack.c.l.b16 %v339
        %v426 = vunpack.c.h.b16 %v339
        %v427 = vunpack.c.l.b16 %v340
        %v428 = vunpack.c.h.b16 %v340
        %v429 = vunpack.c.l.b16 %v341
        %v430 = vunpack.c.h.b16 %v341
        %v431 = vunpack.c.l.b16 %v342
        %v432 = vunpack.c.h.b16 %v342
        %v433 = vunpack.c.l.b16 %v343
        %v434 = vunpack.c.h.b16 %v343
        %v435 = vunpack.c.l.b16 %v344
        %v436 = vunpack.c.h.b16 %v344
        %v437 = vunpack.c.l.b16 %v345
        %v438 = vunpack.c.h.b16 %v345
        %v439 = vunpack.c.l.b16 %v346
        %v440 = vunpack.c.h.b16 %v346
        %v441 = vunpack.c.l.b16 %v347
        %v442 = vunpack.c.h.b16 %v347
        %v443 = vunpack.c.l.b16 %v348
        %v444 = vunpack.c.h.b16 %v348
        %v445 = vunpack.c.l.b16 %v349
        %v446 = vunpack.c.h.b16 %v349
        %v447 = vunpack.c.l.b16 %v350
        %v448 = vunpack.c.h.b16 %v350
        %v449 = vunpack.c.l.b16 %v351
        %v450 = vunpack.c.h.b16 %v351
        %v451 = vunpack.c.l.b16 %v352
        %v452 = vunpack.c.h.b16 %v352
        %v453 = vunpack.c.l.b16 %v353
        %v454 = vunpack.c.h.b16 %v353
        %v455 = vunpack.c.l.b16 %v354
        %v456 = vunpack.c.h.b16 %v354
        %v457 = vunpack.c.l.b16 %v355
        %v458 = vunpack.c.h.b16 %v355
        %v459 = vunpack.c.l.b16 %v356
        %v460 = vunpack.c.h.b16 %v356
        %v461 = vunpack.c.l.b16 %v357
        %v462 = vunpack.c.h.b16 %v357
        %v463 = vunpack.c.l.b16 %v358
        %v464 = vunpack.c.h.b16 %v358
        %v465 = vunpack.c.l.b16 %v359
        %v466 = vunpack.c.h.b16 %v359
        %v467 = vunpack.c.l.b16 %v360
        %v468 = vunpack.c.h.b16 %v360
        %v469 = vunpack.c.l.b16 %v361
        %v470 = vunpack.c.h.b16 %v361
        %v471 = vunpack.c.l.b16 %v362
        %v472 = vunpack.c.h.b16 %v362
        %v473 = vunpack.c.l.b16 %v363
        %v474 = vunpack.c.h.b16 %v363
        %v475 = vunpack.c.l.b16 %v364
        %v476 = vunpack.c.h.b16 %v364
        %v477 = vunpack.c.l.b16 %v365
        %v478 = vunpack.c.h.b16 %v365
        %v479 = vunpack.c.l.b16 %v366
        %v480 = vunpack.c.h.b16 %v366
        %v481 = vpack.c.b16 %v419, %v417
        %v482 = vpack.c.b16 %v420, %v418
        %v483 = vpack.c.b16 %v423, %v421
        %v484 = vpack.c.b16 %v424, %v422
        %v485 = vpack.c.b16 %v427, %v425
        %v486 = vpack.c.b16 %v428, %v426
        %v487 = vpack.c.b16 %v431, %v429
        %v488 = vpack.c.b16 %v432, %v430
        %v489 = vpack.c.b16 %v435, %v433
        %v490 = vpack.c.b16 %v436, %v434
        %v491 = vpack.c.b16 %v439, %v437
        %v492 = vpack.c.b16 %v440, %v438
        %v493 = vpack.c.b16 %v443, %v441
        %v494 = vpack.c.b16 %v444, %v442
        %v495 = vpack.c.b16 %v447, %v445
        %v496 = vpack.c.b16 %v448, %v446
        %v497 = vpack.c.b16 %v451, %v449
        %v498 = vpack.c.b16 %v452, %v450
        %v499 = vpack.c.b16 %v455, %v453
        %v500 = vpack.c.b16 %v456, %v454
        %v501 = vpack.c.b16 %v459, %v457
        %v502 = vpack.c.b16 %v460, %v458
        %v503 = vpack.c.b16 %v463, %v461
        %v504 = vpack.c.b16 %v464, %v462
        %v505 = vpack.c.b16 %v467, %v465
        %v506 = vpack.c.b16 %v468, %v466
        %v507 = vpack.c.b16 %v471, %v469
        %v508 = vpack.c.b16 %v472, %v470
        %v509 = vpack.c.b16 %v475, %v473
        %v510 = vpack.c.b16 %v476, %v474
        %v511 = vpack.c.b16 %v479, %v477
        %v512 = vpack.c.b16 %v480, %v478
        %v547 = vunpack.c.l.b16 %v367
        %v548 = vunpack.c.l.b16 %v368
        %v549 = vunpack.c.l.b16 %v369
        %v550 = vunpack.c.l.b16 %v370
        %v551 = vunpack.c.l.b16 %v371
        %v552 = vunpack.c.l.b16 %v372
        %v553 = vunpack.c.l.b16 %v373
        %v554 = vunpack.c.l.b16 %v374
        %v555 = vunpack.c.l.b16 %v375
        %v556 = vunpack.c.l.b16 %v376
        %v557 = vunpack.c.l.b16 %v377
        %v558 = vunpack.c.l.b16 %v378
        %v559 = vunpack.c.l.b16 %v379
        %v560 = vunpack.c.l.b16 %v380
        %v561 = vunpack.c.l.b16 %v381
        %v562 = vunpack.c.l.b16 %v382
        %v563 = vunpack.c.l.b16 %v383
        %v564 = vunpack.c.l.b16 %v384
        %v565 = vpack.c.b16 %v548, %v547
        %v566 = vpack.c.b16 %v550, %v549
        %v567 = vpack.c.b16 %v552, %v551
        %v568 = vpack.c.b16 %v554, %v553
        %v569 = vpack.c.b16 %v556, %v555
        %v570 = vpack.c.b16 %v558, %v557
        %v571 = vpack.c.b16 %v560, %v559
        %v572 = vpack.c.b16 %v562, %v561
        %v573 = vpack.c.b16 %v564, %v563
        %vm583 = vcmask 130048
        %v585 = vsel %vm583, %v482, 0
        %v588 = vsel %vm583, %v484, 0
        %v591 = vsel %vm583, %v486, 0
        %v594 = vsel %vm583, %v488, 0
        %v597 = vsel %vm583, %v490, 0
        %v600 = vsel %vm583, %v492, 0
        %v603 = vsel %vm583, %v494, 0
        %v606 = vsel %vm583, %v496, 0
        %v609 = vsel %vm583, %v498, 0
        %v612 = vsel %vm583, %v500, 0
        %v615 = vsel %vm583, %v502, 0
        %v618 = vsel %vm583, %v504, 0
        %v621 = vsel %vm583, %v506, 0
        %v624 = vsel %vm583, %v508, 0
        %v627 = vsel %vm583, %v510, 0
        %v630 = vsel %vm583, %v512, 0
        %632 = vmatprep.subr.bf16.mxu0 0
        %633 = vmatpush1.bf16.msra.mxu0 %v572
        %634 = vmatprep.subr.bf16.mxu0 0
        %635 = vmatpush1.bf16.msra.mxu0 %v571
        %636 = vmatprep.subr.bf16.mxu0 0
        %637 = vmatpush1.bf16.msra.mxu0 %v570
        %638 = vmatprep.subr.bf16.mxu0 0
        %639 = vmatpush1.bf16.msra.mxu0 %v569
        %640 = vmatprep.subr.bf16.mxu0 0
        %641 = vmatpush1.bf16.msra.mxu0 %v568
        %642 = vmatprep.subr.bf16.mxu0 0
        %643 = vmatpush1.bf16.msra.mxu0 %v567
        %644 = vmatprep.subr.bf16.mxu0 0
        %645 = vmatpush1.bf16.msra.mxu0 %v566
        %646 = vmatprep.subr.bf16.mxu0 0
        %647 = vmatpush1.bf16.msra.mxu0 %v565
        %648 = vmatprep.subr.bf16.mxu0 0
        %649 = vmatpush2.bf16.msra.mxu0 0
        %650 = vmatprep.subr.bf16.mxu0 0
        %651 = vmatpush2.bf16.msra.mxu0 0
        %652 = vmatprep.subr.bf16.mxu0 0
        %653 = vmatpush2.bf16.msra.mxu0 0
        %654 = vmatprep.subr.bf16.mxu0 0
        %655 = vmatpush2.bf16.msra.mxu0 0
        %656 = vmatprep.subr.bf16.mxu0 0
        %657 = vmatpush2.bf16.msra.mxu0 0
        %658 = vmatprep.subr.bf16.mxu0 0
        %659 = vmatpush2.bf16.msra.mxu0 0
        %660 = vmatprep.subr.bf16.mxu0 0
        %661 = vmatpush2.bf16.msra.mxu0 0
        %662 = vmatprep.subr.bf16.mxu0 0
        %663 = vmatpush2.bf16.msra.mxu0 %v573
        %664 = vmatprep.mubr.bf16.mxu0 %v585
        %665 = vmatmul.mubr.bf16.gmra.mxu0 %v481
        %v666 = vpop.f32.mrf.mxu0
        %v667 = vadd.f32 0.0, %v666
        %v668 = vpop.f32.mrf.mxu0
        %v669 = vpop.f32.mrf.mxu0
        %v670 = vadd.f32 0.0, %v669
        %v671 = vpop.f32.mrf.mxu0
        %672 = vmatprep.mubr.bf16.mxu0 %v588
        %673 = vmatmul.mubr.bf16.gmra.mxu0 %v483
        %v674 = vpop.f32.mrf.mxu0
        %v675 = vadd.f32 0.0, %v674
        %v676 = vpop.f32.mrf.mxu0
        %v677 = vpop.f32.mrf.mxu0
        %v678 = vadd.f32 0.0, %v677
        %v679 = vpop.f32.mrf.mxu0
        %680 = vmatprep.mubr.bf16.mxu0 %v591
        %681 = vmatmul.mubr.bf16.gmra.mxu0 %v485
        %v682 = vpop.f32.mrf.mxu0
        %v683 = vadd.f32 0.0, %v682
        %v684 = vpop.f32.mrf.mxu0
        %v685 = vpop.f32.mrf.mxu0
        %v686 = vadd.f32 0.0, %v685
        %v687 = vpop.f32.mrf.mxu0
        %688 = vmatprep.mubr.bf16.mxu0 %v594
        %689 = vmatmul.mubr.bf16.gmra.mxu0 %v487
        %v690 = vpop.f32.mrf.mxu0
        %v691 = vadd.f32 0.0, %v690
        %v692 = vpop.f32.mrf.mxu0
        %v693 = vpop.f32.mrf.mxu0
        %v694 = vadd.f32 0.0, %v693
        %v695 = vpop.f32.mrf.mxu0
        %696 = vmatprep.mubr.bf16.mxu0 %v597
        %697 = vmatmul.mubr.bf16.gmra.mxu0 %v489
        %v698 = vpop.f32.mrf.mxu0
        %v699 = vadd.f32 0.0, %v698
        %v700 = vpop.f32.mrf.mxu0
        %v701 = vpop.f32.mrf.mxu0
        %v702 = vadd.f32 0.0, %v701
        %v703 = vpop.f32.mrf.mxu0
        %704 = vmatprep.mubr.bf16.mxu0 %v600
        %705 = vmatmul.mubr.bf16.gmra.mxu0 %v491
        %v706 = vpop.f32.mrf.mxu0
        %v707 = vadd.f32 0.0, %v706
        %v708 = vpop.f32.mrf.mxu0
        %v709 = vpop.f32.mrf.mxu0
        %v710 = vadd.f32 0.0, %v709
        %v711 = vpop.f32.mrf.mxu0
        %712 = vmatprep.mubr.bf16.mxu0 %v603
        %713 = vmatmul.mubr.bf16.gmra.mxu0 %v493
        %v714 = vpop.f32.mrf.mxu0
        %v715 = vadd.f32 0.0, %v714
        %v716 = vpop.f32.mrf.mxu0
        %v717 = vpop.f32.mrf.mxu0
        %v718 = vadd.f32 0.0, %v717
        %v719 = vpop.f32.mrf.mxu0
        %720 = vmatprep.mubr.bf16.mxu0 %v606
        %721 = vmatmul.mubr.bf16.gmra.mxu0 %v495
        %v722 = vpop.f32.mrf.mxu0
        %v723 = vadd.f32 0.0, %v722
        %v724 = vpop.f32.mrf.mxu0
        %v725 = vpop.f32.mrf.mxu0
        %v726 = vadd.f32 0.0, %v725
        %v727 = vpop.f32.mrf.mxu0
        %728 = vmatprep.mubr.bf16.mxu0 %v609
        %729 = vmatmul.mubr.bf16.gmra.mxu0 %v497
        %v730 = vpop.f32.mrf.mxu0
        %v731 = vadd.f32 0.0, %v730
        %v732 = vpop.f32.mrf.mxu0
        %v733 = vpop.f32.mrf.mxu0
        %v734 = vadd.f32 0.0, %v733
        %v735 = vpop.f32.mrf.mxu0
        %736 = vmatprep.mubr.bf16.mxu0 %v612
        %737 = vmatmul.mubr.bf16.gmra.mxu0 %v499
        %v738 = vpop.f32.mrf.mxu0
        %v739 = vadd.f32 0.0, %v738
        %v740 = vpop.f32.mrf.mxu0
        %v741 = vpop.f32.mrf.mxu0
        %v742 = vadd.f32 0.0, %v741
        %v743 = vpop.f32.mrf.mxu0
        %744 = vmatprep.mubr.bf16.mxu0 %v615
        %745 = vmatmul.mubr.bf16.gmra.mxu0 %v501
        %v746 = vpop.f32.mrf.mxu0
        %v747 = vadd.f32 0.0, %v746
        %v748 = vpop.f32.mrf.mxu0
        %v749 = vpop.f32.mrf.mxu0
        %v750 = vadd.f32 0.0, %v749
        %v751 = vpop.f32.mrf.mxu0
        %752 = vmatprep.mubr.bf16.mxu0 %v618
        %753 = vmatmul.mubr.bf16.gmra.mxu0 %v503
        %v754 = vpop.f32.mrf.mxu0
        %v755 = vadd.f32 0.0, %v754
        %v756 = vpop.f32.mrf.mxu0
        %v757 = vpop.f32.mrf.mxu0
        %v758 = vadd.f32 0.0, %v757
        %v759 = vpop.f32.mrf.mxu0
        %760 = vmatprep.mubr.bf16.mxu0 %v621
        %761 = vmatmul.mubr.bf16.gmra.mxu0 %v505
        %v762 = vpop.f32.mrf.mxu0
        %v763 = vadd.f32 0.0, %v762
        %v764 = vpop.f32.mrf.mxu0
        %v765 = vpop.f32.mrf.mxu0
        %v766 = vadd.f32 0.0, %v765
        %v767 = vpop.f32.mrf.mxu0
        %768 = vmatprep.mubr.bf16.mxu0 %v624
        %769 = vmatmul.mubr.bf16.gmra.mxu0 %v507
        %v770 = vpop.f32.mrf.mxu0
        %v771 = vadd.f32 0.0, %v770
        %v772 = vpop.f32.mrf.mxu0
        %v773 = vpop.f32.mrf.mxu0
        %v774 = vadd.f32 0.0, %v773
        %v775 = vpop.f32.mrf.mxu0
        %776 = vmatprep.mubr.bf16.mxu0 %v627
        %777 = vmatmul.mubr.bf16.gmra.mxu0 %v509
        %v778 = vpop.f32.mrf.mxu0
        %v779 = vadd.f32 0.0, %v778
        %v780 = vpop.f32.mrf.mxu0
        %v781 = vpop.f32.mrf.mxu0
        %v782 = vadd.f32 0.0, %v781
        %v783 = vpop.f32.mrf.mxu0
        %784 = vmatprep.mubr.bf16.mxu0 %v630
        %785 = vmatmul.mubr.bf16.gmra.mxu0 %v511
        %v786 = vpop.f32.mrf.mxu0
        %v787 = vadd.f32 0.0, %v786
        %v788 = vpop.f32.mrf.mxu0
        %v789 = vpop.f32.mrf.mxu0
        %v790 = vadd.f32 0.0, %v789
        %v791 = vpop.f32.mrf.mxu0
        %792 = vdwg.mxu0
        %v793 = vmax.f32 %v667, %v699
        %v794 = vmax.f32 %v670, %v702
        %v795 = vmax.f32 %v675, %v707
        %v796 = vmax.f32 %v678, %v710
        %v797 = vmax.f32 %v683, %v715
        %v798 = vmax.f32 %v686, %v718
        %v799 = vmax.f32 %v691, %v723
        %v800 = vmax.f32 %v694, %v726
        %v801 = vmax.f32 %v731, %v763
        %v802 = vmax.f32 %v734, %v766
        %v803 = vmax.f32 %v739, %v771
        %v804 = vmax.f32 %v742, %v774
        %v805 = vmax.f32 %v747, %v779
        %v806 = vmax.f32 %v750, %v782
        %v807 = vmax.f32 %v755, %v787
        %v808 = vmax.f32 %v758, %v790
        %v809 = vmax.f32 %v793, %v801
        %v810 = vmax.f32 %v794, %v802
        %v811 = vmax.f32 %v795, %v803
        %v812 = vmax.f32 %v796, %v804
        %v813 = vmax.f32 %v797, %v805
        %v814 = vmax.f32 %v798, %v806
        %v815 = vmax.f32 %v799, %v807
        %v816 = vmax.f32 %v800, %v808
        %v817 = vld [vmem:[%s2] sm:$0x1]
        %v819 = vlaneseq
        %v820 = vshrl.u32 %v819, 7
        %v821 = vsub.s32 0, %v820
        %v822 = vrot.slane %v817, %v821
        %v824 = vadd.f32 %v809, %v822
        %v825 = vadd.f32 %v810, %v822
        %v826 = vadd.f32 %v811, %v822
        %v827 = vadd.f32 %v812, %v822
        %v828 = vadd.f32 %v813, %v822
        %v829 = vadd.f32 %v814, %v822
        %v830 = vadd.f32 %v815, %v822
        %v831 = vadd.f32 %v816, %v822
        %v832 = vmax.f32 %v824, 0.0
        %v833 = vmax.f32 %v825, 0.0
        %v834 = vmax.f32 %v826, 0.0
        %v835 = vmax.f32 %v827, 0.0
        %v836 = vmax.f32 %v828, 0.0
        %v837 = vmax.f32 %v829, 0.0
        %v838 = vmax.f32 %v830, 0.0
        %v839 = vmax.f32 %v831, 0.0
        %v840 = vpack.c.bf16 %v833, %v832
        %v841 = vpack.c.bf16 %v835, %v834
        %v842 = vpack.c.bf16 %v837, %v836
        %v843 = vpack.c.bf16 %v839, %v838
        %v848 = vunpack.c.l.b16 %v840
        %v849 = vunpack.c.h.b16 %v840
        %v850 = vunpack.c.l.b16 %v841
        %v851 = vunpack.c.h.b16 %v841
        %v852 = vunpack.c.l.b16 %v842
        %v853 = vunpack.c.h.b16 %v842
        %v854 = vunpack.c.l.b16 %v843
        %v855 = vunpack.c.h.b16 %v843
        %v856 = vpack.c.b16 %v848, %v848
        %v857 = vpack.c.b16 %v849, %v849
        %v858 = vpack.c.b16 %v850, %v850
        %v859 = vpack.c.b16 %v851, %v851
        %v860 = vpack.c.b16 %v852, %v852
        %v861 = vpack.c.b16 %v853, %v853
        %v862 = vpack.c.b16 %v854, %v854
        %v863 = vpack.c.b16 %v855, %v855
        %872 = vst [vmem:[%s332] sm:$0xf] %v856
        %873 = vst [vmem:[%s332 + $0x4] sm:$0xf] %v857
        %874 = vst [vmem:[%s332 + $0x8] sm:$0xf] %v858
        %875 = vst [vmem:[%s332 + $0xc] sm:$0xf] %v859
        %876 = vst [vmem:[%s332 + $0x10] sm:$0xf] %v860
        %877 = vst [vmem:[%s332 + $0x14] sm:$0xf] %v861
        %878 = vst [vmem:[%s332 + $0x18] sm:$0xf] %v862
        %879 = vst [vmem:[%s332 + $0x1c] sm:$0xf] %v863
        %s880 = smul.u32 8, %s14
        %p881 = scmp.lt.s32.totalorder %s880, 15
        %s882 = scalar_select %p881, %s880, 15
        %s883 = smul.addr %s882, 4
        %s884 = scalar_lea.vmem %s3, %s883
        // Predicated region
        $region71: #{vgg4_forward.5} parent=65 // pred_check
          %p885 = pneg %p100
        $region72: #{vgg4_forward.5} parent=65 // pred_check_branch
          %887 = sbr.rel (%p885) target = $region74
        $region73: #{vgg4_forward.5} parent=65 // pred_region
          %s888 = smul.u32 8, %s14
        $region74: #{vgg4_forward.5} parent=65 // pred_fallthru
          _
      $region66: #{vgg4_forward.5} parent=5 // pred_fallthru
        _
      %p889 = scmp.le.s32.totalorder 2, %s9
      // Predicated region
      $region75: #{vgg4_forward.5} parent=5 // pred_check
        %p890 = pneg %p889
      $region76: #{vgg4_forward.5} parent=5 // pred_check_branch
        %892 = sbr.rel (%p890) target = $region78
      $region77: #{vgg4_forward.5} parent=5 // pred_region
        %s893 = ssub.s32 %s9, 2
        // Predicated region
        $region79: #{vgg4_forward.5} parent=77 // pred_check
          %p894 = pneg %p106
        $region80: #{vgg4_forward.5} parent=77 // pred_check_branch
          %896 = sbr.rel (%p894) target = $region82
        $region81: #{vgg4_forward.5} parent=77 // pred_region
          %s897 = smul.u32 8, %s15
          %p898 = scmp.lt.s32.totalorder %s897, 15
          %s899 = scalar_select %p898, %s897, 15
          %s900 = smul.addr %s899, 4
          %s901 = scalar_lea.vmem %s3, %s900
        $region82: #{vgg4_forward.5} parent=77 // pred_fallthru
          _
      $region78: #{vgg4_forward.5} parent=5 // pred_fallthru
        _
    $region6: #{vgg4_forward.5} parent=1 // loop_footer
      %s13 = sadd.s32 1, %s9
    $region7: #{vgg4_forward.5} parent=1 // loop_footer_branch
      %8 = sbr.rel target = $region3
    $region8: #{vgg4_forward.5} parent=1 // loop_exit
      _

// kernel: vgg4_forward.6
$region0: #{vgg4_forward.6}
  #allocation0 [shape = 'u32[]', space=smem, size = 0x4, offset = 0x4, fixed_abs, tag = 'smem constant byte address 0x4 - core index']
  #allocation1 [shape = 'u32[144,128]{1,0:T(1,128)}', space=vmem, size = 0x12000, scoped, tag = 'internal scratch']
  %s0 = inlined_call_operand.vmem [shape: bf16[4,32,288], index: 0, kind: input, shape index: {}]
  %s1 = inlined_call_operand.vmem [shape: bf16[288,128], index: 1, kind: input, shape index: {}]
  %s2 = inlined_call_operand.vmem [shape: f32[1,128], index: 2, kind: input, shape index: {}]
  %s3 = inlined_call_operand.vmem [shape: bf16[32,128], index: 3, kind: output, shape index: {}]
  %s4 = sld [smem:[#allocation0]]
  $region71: #{vgg4_forward.6} parent=0
    _
  %s6 = ssub.s32 1, %s4
  %s7 = scalar_select 0, %s6, %s4
  $region1: #{vgg4_forward.6} parent=0
    #allocation2 [shape = 'u8[98304]{0}', space=vmem, size = 0x18000, scoped, tag = 'input window, operand 0']
    loop: start=0, step=1, limit=4
    $region2: #{vgg4_forward.6} parent=1 // loop_pre_header
      _
    $region3: #{vgg4_forward.6} parent=1 // loop_header
      %s9 = sphi 0, %s13
      %p10 = scmp.ge.s32.totalorder %s9, 4
      %s19 = sphi 0, %s21
      %s22 = sphi 0, %s19
      %s23 = sphi 0, %s22
      %s39 = sphi 0, %s23
      %s43 = sphi 0, %s43
      %s45 = sphi 0, %s43
      %s46 = sphi 0, %s45
      %s60 = sphi 0, %s46
      %s64 = sphi 0, %s64
      %s66 = sphi 0, %s64
      %s67 = sphi 0, %s66
      %s81 = sphi 0, %s67
      %s87 = sphi 0, %s89
      %s90 = sphi 0, %s87
      %s91 = sphi 0, %s90
      %s107 = sphi 0, %s91
    $region4: #{vgg4_forward.6} parent=1 // loop_header_branch
      %12 = sbr.rel (%p10) target = $region8
    $region5: #{vgg4_forward.6} parent=1 // loop_body
      %s14 = ssub.s32 %s9, 1
      %s15 = ssub.s32 %s9, 2
      %s16 = sadd.s32 %s9, 1
      %s17 = ssub.s32 %s9, %s16
      %p18 = scmp.eq.s32.totalorder %s17, 0
      %s20 = sadd.s32 %s19, 1
      %s21 = scalar_select %p18, %s19, %s20
      %p24 = pneg %p18
      %p25 = scmp.eq.s32.totalorder %s9, 1
      %p26 = por %p24, %p25
      %p27 = scmp.ne.s32.totalorder %s19, %s22
      %p28 = scmp.eq.s32.totalorder %s9, 0
      %p29 = por %p27, %p28
      %p30 = scmp.ne.s32.totalorder %s19, %s22
      %p31 = scmp.eq.s32.totalorder %s14, 1
      %p32 = por %p30, %p31
      %p33 = scmp.ne.s32.totalorder %s22, %s23
      %p34 = scmp.eq.s32.totalorder %s14, 0
      %p35 = por %p33, %p34
      %p36 = scmp.ne.s32.totalorder %s22, %s23
      %p37 = scmp.eq.s32.totalorder %s15, 1
      %p38 = por %p36, %p37
      %p40 = scmp.ne.s32.totalorder %s23, %s39
      %p41 = scmp.eq.s32.totalorder %s15, 0
      %p42 = por %p40, %p41
      %s44 = sadd.s32 %s43, 1
      %p47 = scmp.eq.s32.totalorder %s9, 1
      %p48 = scmp.ne.s32.totalorder %s43, %s45
      %p49 = scmp.eq.s32.totalorder %s9, 0
      %p50 = por %p48, %p49
      %p51 = scmp.ne.s32.totalorder %s43, %s45
      %p52 = scmp.eq.s32.totalorder %s14, 1
      %p53 = por %p51, %p52
      %p54 = scmp.ne.s32.totalorder %s45, %s46
      %p55 = scmp.eq.s32.totalorder %s14, 0
      %p56 = por %p54, %p55
      %p57 = scmp.ne.s32.totalorder %s45, %s46
      %p58 = scmp.eq.s32.totalorder %s15, 1
      %p59 = por %p57, %p58
      %p61 = scmp.ne.s32.totalorder %s46, %s60
      %p62 = scmp.eq.s32.totalorder %s15, 0
      %p63 = por %p61, %p62
      %s65 = sadd.s32 %s64, 1
      %p68 = scmp.eq.s32.totalorder %s9, 1
      %p69 = scmp.ne.s32.totalorder %s64, %s66
      %p70 = scmp.eq.s32.totalorder %s9, 0
      %p71 = por %p69, %p70
      %p72 = scmp.ne.s32.totalorder %s64, %s66
      %p73 = scmp.eq.s32.totalorder %s14, 1
      %p74 = por %p72, %p73
      %p75 = scmp.ne.s32.totalorder %s66, %s67
      %p76 = scmp.eq.s32.totalorder %s14, 0
      %p77 = por %p75, %p76
      %p78 = scmp.ne.s32.totalorder %s66, %s67
      %p79 = scmp.eq.s32.totalorder %s15, 1
      %p80 = por %p78, %p79
      %p82 = scmp.ne.s32.totalorder %s67, %s81
      %p83 = scmp.eq.s32.totalorder %s15, 0
      %p84 = por %p82, %p83
      %s85 = ssub.s32 %s9, %s16
      %p86 = scmp.eq.s32.totalorder %s85, 0
      %s88 = sadd.s32 %s87, 1
      %s89 = scalar_select %p86, %s87, %s88
      %p92 = pneg %p86
      %p93 = scmp.eq.s32.totalorder %s9, 1
      %p94 = por %p92, %p93
      %p95 = scmp.ne.s32.totalorder %s87, %s90
      %p96 = scmp.eq.s32.totalorder %s9, 0
      %p97 = por %p95, %p96
      %p98 = scmp.ne.s32.totalorder %s87, %s90
      %p99 = scmp.eq.s32.totalorder %s14, 1
      %p100 = por %p98, %p99
      %p101 = scmp.ne.s32.totalorder %s90, %s91
      %p102 = scmp.eq.s32.totalorder %s14, 0
      %p103 = por %p101, %p102
      %p104 = scmp.ne.s32.totalorder %s90, %s91
      %p105 = scmp.eq.s32.totalorder %s15, 1
      %p106 = por %p104, %p105
      %p108 = scmp.ne.s32.totalorder %s91, %s107
      %p109 = scmp.eq.s32.totalorder %s15, 0
      %p110 = por %p108, %p109
      %p111 = scmp.le.s32.totalorder 1, %s9
      %p112 = scmp.lt.s32.totalorder %s9, 3
      %p113 = pnand %p111, %p112
      %p114 = pneg %p113
      // Predicated region
      $region9: #{vgg4_forward.6} parent=5 // pred_check
        _
      $region10: #{vgg4_forward.6} parent=5 // pred_check_branch
        %116 = sbr.rel (%p113) target = $region12
      $region11: #{vgg4_forward.6} parent=5 // pred_region
        %s117 = ssub.s32 %s9, 1
        // Predicated region
        $region13: #{vgg4_forward.6} parent=11 // pred_check
          %p118 = pneg %p56
        $region14: #{vgg4_forward.6} parent=11 // pred_check_branch
          %120 = sbr.rel (%p118) target = $region16
        $region15: #{vgg4_forward.6} parent=11 // pred_region
          _
        $region16: #{vgg4_forward.6} parent=11 // pred_fallthru
          _
        // Predicated region
        $region17: #{vgg4_forward.6} parent=11 // pred_check
          %p121 = pneg %p77
        $region18: #{vgg4_forward.6} parent=11 // pred_check_branch
          %123 = sbr.rel (%p121) target = $region20
        $region19: #{vgg4_forward.6} parent=11 // pred_region
          _
        $region20: #{vgg4_forward.6} parent=11 // pred_fallthru
          _
      $region12: #{vgg4_forward.6} parent=5 // pred_fallthru
        _
      %p124 = scmp.lt.s32.totalorder %s9, 2
      // Predicated region
      $region21: #{vgg4_forward.6} parent=5 // pred_check
        %p125 = pneg %p124
      $region22: #{vgg4_forward.6} parent=5 // pred_check_branch
        %127 = sbr.rel (%p125) target = $region24
      $region23: #{vgg4_forward.6} parent=5 // pred_region
        // Predicated region
        $region25: #{vgg4_forward.6} parent=23 // pred_check
          %p128 = pneg %p29
        $region26: #{vgg4_forward.6} parent=23 // pred_check_branch
          %130 = sbr.rel (%p128) target = $region28
        $region27: #{vgg4_forward.6} parent=23 // pred_region
          %s131 = sand.u32 %s19, 1
          %s132 = sand.u32 %s19, 1
          %s133 = smul.addr %s132, 96
          %s134 = scalar_lea.vmem [#allocation2], %s133
          %s135 = smul.u32 2, %s9
          %s136 = smul.addr %s135, 3
          %s137 = smul.addr %s136, 4
          %s138 = scalar_lea.vmem %s0, %s137
          // Predicated region
          $region29: #{vgg4_forward.6} parent=27 // pred_check
            _
          $region30: #{vgg4_forward.6} parent=27 // pred_check_branch
            %140 = sbr.rel (0) target = $region32
          $region31: #{vgg4_forward.6} parent=27 // pred_region
            // Predicated region
            $region33: #{vgg4_forward.6} parent=31 // pred_check
              _
            $region34: #{vgg4_forward.6} parent=31 // pred_check_branch
              %142 = sbr.rel (0) target = $region36
            $region35: #{vgg4_forward.6} parent=31 // pred_region
              %s143 = scalar_lea.vmem %s138, 8
              %s144 = scalar_lea.vmem %s134, 8 [#allocation2]
              loop: start=0, step=1, limit=1
              $region37: #{vgg4_forward.6} parent=35 // loop_pre_header
                _
              $region38: #{vgg4_forward.6} parent=35 // loop_header
                %s146 = sphi 0, %s150
                %p147 = scmp.ge.s32.totalorder %s146, 1
                %s151 = sphi %s138, %s138
                %s152 = sphi %s134, %s134
              $region39: #{vgg4_forward.6} parent=35 // loop_header_branch
                %149 = sbr.rel (%p147) target = $region43
              $region40: #{vgg4_forward.6} parent=35 // loop_body
                %v153 = vld [vmem:[%s151] sm:$0xff]
                %154 = vst [vmem:[%s152] sm:$0xff] %v153
                %v155 = vld [vmem:[%s151 + $0xc] sm:$0xff]
                %156 = vst [vmem:[%s152 + $0xc] sm:$0xff] %v155
                %v157 = vld [vmem:[%s151 + $0x30] sm:$0xff]
                %158 = vst [vmem:[%s152 + $0x18] sm:$0xff] %v157
                %v159 = vld [vmem:[%s151 + $0x3c] sm:$0xff]
                %160 = vst [vmem:[%s152 + $0x24] sm:$0xff] %v159
                %v161 = vld [vmem:[%s151 + $0x60] sm:$0xff]
                %162 = vst [vmem:[%s152 + $0x30] sm:$0xff] %v161
                %v163 = vld [vmem:[%s151 + $0x6c] sm:$0xff]
                %164 = vst [vmem:[%s152 + $0x3c] sm:$0xff] %v163
                %v165 = vld [vmem:[%s151 + $0x90] sm:$0xff]
                %166 = vst [vmem:[%s152 + $0x48] sm:$0xff] %v165
                %v167 = vld [vmem:[%s151 + $0x9c] sm:$0xff]
                %168 = vst [vmem:[%s152 + $0x54] sm:$0xff] %v167
              $region41: #{vgg4_forward.6} parent=35 // loop_footer
                %s150 = sadd.s32 1, %s146
              $region42: #{vgg4_forward.6} parent=35 // loop_footer_branch
                %145 = sbr.rel target = $region38
              $region43: #{vgg4_forward.6} parent=35 // loop_exit
                _
              %s170 = ssub.s32 16, 1
              loop: start=0, step=1, limit=1
              $region44: #{vgg4_forward.6} parent=35 // loop_pre_header
                _
              $region45: #{vgg4_forward.6} parent=35 // loop_header
                %s172 = sphi 0, %s176
                %p173 = scmp.ge.s32.totalorder %s172, 1
                %s177 = sphi %s143, %s143
                %s178 = sphi %s144, %s144
              $region46: #{vgg4_forward.6} parent=35 // loop_header_branch
                %175 = sbr.rel (%p173) target = $region50
              $region47: #{vgg4_forward.6} parent=35 // loop_body
                %v179 = vld [vmem:[%s177] sm:%s170]
                %180 = vst [vmem:[%s178] sm:%s170] %v179
                %v181 = vld [vmem:[%s177 + $0xc] sm:%s170]
                %182 = vst [vmem:[%s178 + $0xc] sm:%s170] %v181
                %v183 = vld [vmem:[%s177 + $0x30] sm:%s170]
                %184 = vst [vmem:[%s178 + $0x18] sm:%s170] %v183
                %v185 = vld [vmem:[%s177 + $0x3c] sm:%s170]
                %186 = vst [vmem:[%s178 + $0x24] sm:%s170] %v185
                %v187 = vld [vmem:[%s177 + $0x60] sm:%s170]
                %188 = vst [vmem:[%s178 + $0x30] sm:%s170] %v187
                %v189 = vld [vmem:[%s177 + $0x6c] sm:%s170]
                %190 = vst [vmem:[%s178 + $0x3c] sm:%s170] %v189
                %v191 = vld [vmem:[%s177 + $0x90] sm:%s170]
                %192 = vst [vmem:[%s178 + $0x48] sm:%s170] %v191
                %v193 = vld [vmem:[%s177 + $0x9c] sm:%s170]
                %194 = vst [vmem:[%s178 + $0x54] sm:%s170] %v193
              $region48: #{vgg4_forward.6} parent=35 // loop_footer
                %s176 = sadd.s32 1, %s172
              $region49: #{vgg4_forward.6} parent=35 // loop_footer_branch
                %171 = sbr.rel target = $region45
              $region50: #{vgg4_forward.6} parent=35 // loop_exit
                _
            $region36: #{vgg4_forward.6} parent=31 // pred_fallthru
              _
          $region32: #{vgg4_forward.6} parent=27 // pred_fallthru
            _
          %195 = vnop
        $region28: #{vgg4_forward.6} parent=23 // pred_fallthru
          _
      $region24: #{vgg4_forward.6} parent=5 // pred_fallthru
        _
      %p196 = scmp.le.s32.totalorder 1, %s9
      %p197 = scmp.lt.s32.totalorder %s9, 3
      %p198 = pnand %p196, %p197
      %p199 = pneg %p198
      // Predicated region
      $region51: #{vgg4_forward.6} parent=5 // pred_check
        _
      $region52: #{vgg4_forward.6} parent=5 // pred_check_branch
        %201 = sbr.rel (%p198) target = $region54
      $region53: #{vgg4_forward.6} parent=5 // pred_region
        %s202 = ssub.s32 %s9, 1
        %s203 = sand.u32 %s22, 1
        %s204 = sand.u32 %s22, 1
        %s205 = smul.addr %s204, 96
        %s206 = scalar_lea.vmem [#allocation2], %s205
        // Predicated region
        $region55: #{vgg4_forward.6} parent=53 // pred_check
          %p207 = pneg %p35
        $region56: #{vgg4_forward.6} parent=53 // pred_check_branch
          %209 = sbr.rel (%p207) target = $region58
        $region57: #{vgg4_forward.6} parent=53 // pred_region
          _
        $region58: #{vgg4_forward.6} parent=53 // pred_fallthru
          _
        %s210 = sand.u32 %s22, 1
        %s211 = sand.u32 %s22, 1
        %s212 = smul.addr %s211, 96
        %s213 = scalar_lea.vmem [#allocation2], %s212
        %p214 = pneg %p35
        %p215 = pneg %p32
        %p216 = pneg %p56
        %p217 = pneg %p53
        %p218 = pneg %p77
        %p219 = pneg %p74
        %p220 = pneg %p103
        %p221 = pneg %p100
        %s222 = smul.u32 2, %s14
        %p223 = scmp.lt.s32.totalorder %s222, 3
        %s224 = scalar_select %p223, %s222, 3
        %s225 = smul.addr %s224, 4
        %s226 = scalar_lea.vmem %s3, %s225
        %s227 = smul.u32 2, %s14
        %s228 = smul.u32 2, %s14
        %p229 = scmp.lt.s32.totalorder %s228, 3
        %s230 = scalar_select %p229, %s228, 3
        %s231 = smul.addr %s230, 4
        %s232 = scalar_lea.vmem %s3, %s231
        %s233 = smul.u32 2, %s14
        %v235 = vld [vmem:[%s206] sm:$0xff]
        %v236 = vld [vmem:[%s206 + $0x8] sm:$0xf]
        %v237 = vld [vmem:[%s206 + $0xc] sm:$0xff]
        %v238 = vld [vmem:[%s206 + $0x14] sm:$0xf]
        %v239 = vld [vmem:[%s206 + $0x18] sm:$0xff]
        %v240 = vld [vmem:[%s206 + $0x20] sm:$0xf]
        %v241 = vld [vmem:[%s206 + $0x24] sm:$0xff]
        %v242 = vld [vmem:[%s206 + $0x2c] sm:$0xf]
        %v243 = vld [vmem:[%s206 + $0x30] sm:$0xff]
        %v244 = vld [vmem:[%s206 + $0x38] sm:$0xf]
        %v245 = vld [vmem:[%s206 + $0x3c] sm:$0xff]
        %v246 = vld [vmem:[%s206 + $0x44] sm:$0xf]
        %v247 = vld [vmem:[%s206 + $0x48] sm:$0xff]
        %v248 = vld [vmem:[%s206 + $0x50] sm:$0xf]
        %v249 = vld [vmem:[%s206 + $0x54] sm:$0xff]
        %v250 = vld [vmem:[%s206 + $0x5c] sm:$0xf]
        %v251 = vld [vmem:[%s1] sm:$0xf]
        %v252 = vld [vmem:[%s1 + $0x4] sm:$0xf]
        %v253 = vld [vmem:[%s1 + $0x8] sm:$0xf]
        %v254 = vld [vmem:[%s1 + $0xc] sm:$0xf]
        %v255 = vld [vmem:[%s1 + $0x10] sm:$0xf]
        %v256 = vld [vmem:[%s1 + $0x14] sm:$0xf]
        %v257 = vld [vmem:[%s1 + $0x18] sm:$0xf]
        %v258 = vld [vmem:[%s1 + $0x1c] sm:$0xf]
        %v259 = vld [vmem:[%s1 + $0x20] sm:$0xf]
        %v260 = vld [vmem:[%s1 + $0x24] sm:$0xf]
        %v261 = vld [vmem:[%s1 + $0x28] sm:$0xf]
        %v262 = vld [vmem:[%s1 + $0x2c] sm:$0xf]
        %v263 = vld [vmem:[%s1 + $0x30] sm:$0xf]
        %v264 = vld [vmem:[%s1 + $0x34] sm:$0xf]
        %v265 = vld [vmem:[%s1 + $0x38] sm:$0xf]
        %v266 = vld [vmem:[%s1 + $0x3c] sm:$0xf]
        %v267 = vld [vmem:[%s1 + $0x40] sm:$0xf]
        %v268 = vld [vmem:[%s1 + $0x44] sm:$0xf]
        %v269 = vld [vmem:[%s1 + $0x48] sm:$0xf]
        %v270 = vld [vmem:[%s1 + $0x4c] sm:$0xf]
        %v271 = vld [vmem:[%s1 + $0x50] sm:$0xf]
        %v272 = vld [vmem:[%s1 + $0x54] sm:$0xf]
        %v273 = vld [vmem:[%s1 + $0x58] sm:$0xf]
        %v274 = vld [vmem:[%s1 + $0x5c] sm:$0xf]
        %v275 = vld [vmem:[%s1 + $0x60] sm:$0xf]
        %v276 = vld [vmem:[%s1 + $0x64] sm:$0xf]
        %v277 = vld [vmem:[%s1 + $0x68] sm:$0xf]
        %v278 = vld [vmem:[%s1 + $0x6c] sm:$0xf]
        %v279 = vld [vmem:[%s1 + $0x70] sm:$0xf]
        %v280 = vld [vmem:[%s1 + $0x74] sm:$0xf]
        %v281 = vld [vmem:[%s1 + $0x78] sm:$0xf]
        %v282 = vld [vmem:[%s1 + $0x7c] sm:$0xf]
        %v283 = vld [vmem:[%s1 + $0x80] sm:$0xf]
        %v284 = vld [vmem:[%s1 + $0x84] sm:$0xf]
        %v285 = vld [vmem:[%s1 + $0x88] sm:$0xf]
        %v286 = vld [vmem:[%s1 + $0x8c] sm:$0xf]
        %v303 = vunpack.c.l.b16 %v235
        %v304 = vunpack.c.h.b16 %v235
        %v305 = vunpack.c.l.b16 %v236
        %v306 = vunpack.c.l.b16 %v237
        %v307 = vunpack.c.h.b16 %v237
        %v308 = vunpack.c.l.b16 %v238
        %v309 = vunpack.c.l.b16 %v239
        %v310 = vunpack.c.h.b16 %v239
        %v311 = vunpack.c.l.b16 %v240
        %v312 = vunpack.c.l.b16 %v241
        %v313 = vunpack.c.h.b16 %v241
        %v314 = vunpack.c.l.b16 %v242
        %v315 = vunpack.c.l.b16 %v243
        %v316 = vunpack.c.h.b16 %v243
        %v317 = vunpack.c.l.b16 %v244
        %v318 = vunpack.c.l.b16 %v245
        %v319 = vunpack.c.h.b16 %v245
        %v320 = vunpack.c.l.b16 %v246
        %v321 = vunpack.c.l.b16 %v247
        %v322 = vunpack.c.h.b16 %v247
        %v323 = vunpack.c.l.b16 %v248
        %v324 = vunpack.c.l.b16 %v249
        %v325 = vunpack.c.h.b16 %v249
        %v326 = vunpack.c.l.b16 %v250
        %v327 = vpack.c.b16 %v306, %v303
        %v328 = vpack.c.b16 %v307, %v304
        %v329 = vpack.c.b16 %v308, %v305
        %v330 = vpack.c.b16 %v312, %v309
        %v331 = vpack.c.b16 %v313, %v310
        %v332 = vpack.c.b16 %v314, %v311
        %v333 = vpack.c.b16 %v318, %v315
        %v334 = vpack.c.b16 %v319, %v316
        %v335 = vpack.c.b16 %v320, %v317
        %v336 = vpack.c.b16 %v324, %v321
        %v337 = vpack.c.b16 %v325, %v322
        %v338 = vpack.c.b16 %v326, %v323
        %v383 = vunpack.c.l.b16 %v251
        %v384 = vunpack.c.l.b16 %v252
        %v385 = vunpack.c.l.b16 %v253
        %v386 = vunpack.c.l.b16 %v254
        %v387 = vunpack.c.l.b16 %v255
        %v388 = vunpack.c.l.b16 %v256
        %v389 = vunpack.c.l.b16 %v257
        %v390 = vunpack.c.l.b16 %v258
        %v391 = vunpack.c.l.b16 %v259
        %v392 = vunpack.c.l.b16 %v260
        %v393 = vunpack.c.l.b16 %v261
        %v394 = vunpack.c.l.b16 %v262
        %v395 = vunpack.c.l.b16 %v263
        %v396 = vunpack.c.l.b16 %v264
        %v397 = vunpack.c.l.b16 %v265
        %v398 = vunpack.c.l.b16 %v266
        %v399 = vunpack.c.l.b16 %v267
        %v400 = vunpack.c.l.b16 %v268
        %v401 = vunpack.c.l.b16 %v269
        %v402 = vunpack.c.l.b16 %v270
        %v403 = vunpack.c.l.b16 %v271
        %v404 = vunpack.c.l.b16 %v272
        %v405 = vunpack.c.l.b16 %v273
        %v406 = vunpack.c.l.b16 %v274
        %v407 = vunpack.c.l.b16 %v275
        %v408 = vunpack.c.l.b16 %v276
        %v409 = vunpack.c.l.b16 %v277
        %v410 = vunpack.c.l.b16 %v278
        %v411 = vunpack.c.l.b16 %v279
        %v412 = vunpack.c.l.b16 %v280
        %v413 = vunpack.c.l.b16 %v281
        %v414 = vunpack.c.l.b16 %v282
        %v415 = vunpack.c.l.b16 %v283
        %v416 = vunpack.c.l.b16 %v284
        %v417 = vunpack.c.l.b16 %v285
        %v418 = vunpack.c.l.b16 %v286
        %v419 = vpack.c.b16 %v384, %v383
        %v420 = vpack.c.b16 %v386, %v385
        %v421 = vpack.c.b16 %v388, %v387
        %v422 = vpack.c.b16 %v390, %v389
        %v423 = vpack.c.b16 %v392, %v391
        %v424 = vpack.c.b16 %v394, %v393
        %v425 = vpack.c.b16 %v396, %v395
        %v426 = vpack.c.b16 %v398, %v397
        %v427 = vpack.c.b16 %v400, %v399
        %v428 = vpack.c.b16 %v402, %v401
        %v429 = vpack.c.b16 %v404, %v403
        %v430 = vpack.c.b16 %v406, %v405
        %v431 = vpack.c.b16 %v408, %v407
        %v432 = vpack.c.b16 %v410, %v409
        %v433 = vpack.c.b16 %v412, %v411
        %v434 = vpack.c.b16 %v414, %v413
        %v435 = vpack.c.b16 %v416, %v415
        %v436 = vpack.c.b16 %v418, %v417
        %vm455 = vcmask 261120
        %v457 = vsel %vm455, %v329, 0
        %v460 = vsel %vm455, %v332, 0
        %v463 = vsel %vm455, %v335, 0
        %v466 = vsel %vm455, %v338, 0
        %468 = vmatprep.subr.bf16.mxu0 0
        %469 = vmatpush1.bf16.msra.mxu0 %v426
        %470 = vmatprep.subr.bf16.mxu0 0
        %471 = vmatpush1.bf16.msra.mxu0 %v425
        %472 = vmatprep.subr.bf16.mxu0 0
        %473 = vmatpush1.bf16.msra.mxu0 %v424
        %474 = vmatprep.subr.bf16.mxu0 0
        %475 = vmatpush1.bf16.msra.mxu0 %v423
        %476 = vmatprep.subr.bf16.mxu0 0
        %477 = vmatpush1.bf16.msra.mxu0 %v422
        %478 = vmatprep.subr.bf16.mxu0 0
        %479 = vmatpush1.bf16.msra.mxu0 %v421
        %480 = vmatprep.subr.bf16.mxu0 0
        %481 = vmatpush1.bf16.msra.mxu0 %v420
        %482 = vmatprep.subr.bf16.mxu0 0
        %483 = vmatpush1.bf16.msra.mxu0 %v419
        %484 = vmatprep.subr.bf16.mxu0 0
        %485 = vmatpush2.bf16.msra.mxu0 %v434
        %486 = vmatprep.subr.bf16.mxu0 0
        %487 = vmatpush2.bf16.msra.mxu0 %v433
        %488 = vmatprep.subr.bf16.mxu0 0
        %489 = vmatpush2.bf16.msra.mxu0 %v432
        %490 = vmatprep.subr.bf16.mxu0 0
        %491 = vmatpush2.bf16.msra.mxu0 %v431
        %492 = vmatprep.subr.bf16.mxu0 0
        %493 = vmatpush2.bf16.msra.mxu0 %v430
        %494 = vmatprep.subr.bf16.mxu0 0
        %495 = vmatpush2.bf16.msra.mxu0 %v429
        %496 = vmatprep.subr.bf16.mxu0 0
        %497 = vmatpush2.bf16.msra.mxu0 %v428
        %498 = vmatprep.subr.bf16.mxu0 0
        %499 = vmatpush2.bf16.msra.mxu0 %v427
        %500 = vmatprep.mubr.bf16.mxu0 %v328
        %501 = vmatmul.mubr.bf16.gmra.mxu0 %v327
        %v502 = vpop.f32.mrf.mxu0
        %v503 = vadd.f32 0.0, %v502
        %v504 = vpop.f32.mrf.mxu0
        %v505 = vpop.f32.mrf.mxu0
        %v506 = vadd.f32 0.0, %v505
        %v507 = vpop.f32.mrf.mxu0
        %508 = vmatprep.mubr.bf16.mxu0 %v331
        %509 = vmatmul.mubr.bf16.gmra.mxu0 %v330
        %v510 = vpop.f32.mrf.mxu0
        %v511 = vadd.f32 0.0, %v510
        %v512 = vpop.f32.mrf.mxu0
        %v513 = vpop.f32.mrf.mxu0
        %v514 = vadd.f32 0.0, %v513
        %v515 = vpop.f32.mrf.mxu0
        %516 = vmatprep.mubr.bf16.mxu0 %v334
        %517 = vmatmul.mubr.bf16.gmra.mxu0 %v333
        %v518 = vpop.f32.mrf.mxu0
        %v519 = vadd.f32 0.0, %v518
        %v520 = vpop.f32.mrf.mxu0
        %v521 = vpop.f32.mrf.mxu0
        %v522 = vadd.f32 0.0, %v521
        %v523 = vpop.f32.mrf.mxu0
        %524 = vmatprep.mubr.bf16.mxu0 %v337
        %525 = vmatmul.mubr.bf16.gmra.mxu0 %v336
        %v526 = vpop.f32.mrf.mxu0
        %v527 = vadd.f32 0.0, %v526
        %v528 = vpop.f32.mrf.mxu0
        %v529 = vpop.f32.mrf.mxu0
        %v530 = vadd.f32 0.0, %v529
        %v531 = vpop.f32.mrf.mxu0
        %532 = vdwg.mxu0
        %533 = vmatprep.subr.bf16.mxu0 0
        %534 = vmatpush1.bf16.msra.mxu0 0
        %535 = vmatprep.subr.bf16.mxu0 0
        %536 = vmatpush1.bf16.msra.mxu0 0
        %537 = vmatprep.subr.bf16.mxu0 0
        %538 = vmatpush1.bf16.msra.mxu0 0
        %539 = vmatprep.subr.bf16.mxu0 0
        %540 = vmatpush1.bf16.msra.mxu0 0
        %541 = vmatprep.subr.bf16.mxu0 0
        %542 = vmatpush1.bf16.msra.mxu0 0
        %543 = vmatprep.subr.bf16.mxu0 0
        %544 = vmatpush1.bf16.msra.mxu0 0
        %545 = vmatprep.subr.bf16.mxu0 0
        %546 = vmatpush1.bf16.msra.mxu0 %v436
        %547 = vmatprep.subr.bf16.mxu0 0
        %548 = vmatpush1.bf16.msra.mxu0 %v435
        %549 = vmatprep.subr.bf16.mxu0 0
        %550 = vmatpush2.bf16.msra.mxu0 0
        %551 = vmatprep.subr.bf16.mxu0 0
        %552 = vmatpush2.bf16.msra.mxu0 0
        %553 = vmatprep.subr.bf16.mxu0 0
        %554 = vmatpush2.bf16.msra.mxu0 0
        %555 = vmatprep.subr.bf16.mxu0 0
        %556 = vmatpush2.bf16.msra.mxu0 0
        %557 = vmatprep.subr.bf16.mxu0 0
        %558 = vmatpush2.bf16.msra.mxu0 0
        %559 = vmatprep.subr.bf16.mxu0 0
        %560 = vmatpush2.bf16.msra.mxu0 0
        %561 = vmatprep.subr.bf16.mxu0 0
        %562 = vmatpush2.bf16.msra.mxu0 0
        %563 = vmatprep.subr.bf16.mxu0 0
        %564 = vmatpush2.bf16.msra.mxu0 0
        %565 = vmatprep.mubr.bf16.mxu0 0
        %566 = vmatmul.mubr.bf16.gmra.mxu0 %v457
        %v567 = vpop.f32.mrf.mxu0
        %v568 = vadd.f32 %v503, %v567
        %v569 = vpop.f32.mrf.mxu0
        %v570 = vpop.f32.mrf.mxu0
        %v571 = vadd.f32 %v506, %v570
        %v572 = vpop.f32.mrf.mxu0
        %573 = vmatprep.mubr.bf16.mxu0 0
        %574 = vmatmul.mubr.bf16.gmra.mxu0 %v460
        %v575 = vpop.f32.mrf.mxu0
        %v576 = vadd.f32 %v511, %v575
        %v577 = vpop.f32.mrf.mxu0
        %v578 = vpop.f32.mrf.mxu0
        %v579 = vadd.f32 %v514, %v578
        %v580 = vpop.f32.mrf.mxu0
        %581 = vmatprep.mubr.bf16.mxu0 0
        %582 = vmatmul.mubr.bf16.gmra.mxu0 %v463
        %v583 = vpop.f32.mrf.mxu0
        %v584 = vadd.f32 %v519, %v583
        %v585 = vpop.f32.mrf.mxu0
        %v586 = vpop.f32.mrf.mxu0
        %v587 = vadd.f32 %v522, %v586
        %v588 = vpop.f32.mrf.mxu0
        %589 = vmatprep.mubr.bf16.mxu0 0
        %590 = vmatmul.mubr.bf16.gmra.mxu0 %v466
        %v591 = vpop.f32.mrf.mxu0
        %v592 = vadd.f32 %v527, %v591
        %v593 = vpop.f32.mrf.mxu0
        %v594 = vpop.f32.mrf.mxu0
        %v595 = vadd.f32 %v530, %v594
        %v596 = vpop.f32.mrf.mxu0
        %597 = vdwg.mxu0
        %v598 = vmax.f32 %v568, %v576
        %v599 = vmax.f32 %v571, %v579
        %v600 = vmax.f32 %v584, %v592
        %v601 = vmax.f32 %v587, %v595
        %v602 = vmax.f32 %v598, %v600
        %v603 = vmax.f32 %v599, %v601
        %v604 = vld [vmem:[%s2] sm:$0x1]
        %v606 = vlaneseq
        %v607 = vshrl.u32 %v606, 7
        %v608 = vsub.s32 0, %v607
        %v609 = vrot.slane %v604, %v608
        %v611 = vadd.f32 %v602, %v609
        %v612 = vadd.f32 %v603, %v609
        %v613 = vmax.f32 %v611, 0.0
        %v614 = vmax.f32 %v612, 0.0
        %v615 = vpack.c.bf16 %v614, %v613
        %v617 = vunpack.c.l.b16 %v615
        %v618 = vunpack.c.h.b16 %v615
        %v619 = vpack.c.b16 %v617, %v617
        %v620 = vpack.c.b16 %v618, %v618
        %623 = vst [vmem:[%s232] sm:$0xf] %v619
        %624 = vst [vmem:[%s232 + $0x4] sm:$0xf] %v620
        %s625 = smul.u32 2, %s14
        %p626 = scmp.lt.s32.totalorder %s625, 3
        %s627 = scalar_select %p626, %s625, 3
        %s628 = smul.addr %s627, 4
        %s629 = scalar_lea.vmem %s3, %s628
        // Predicated region
        $region59: #{vgg4_forward.6} parent=53 // pred_check
          %p630 = pneg %p100
        $region60: #{vgg4_forward.6} parent=53 // pred_check_branch
          %632 = sbr.rel (%p630) target = $region62
        $region61: #{vgg4_forward.6} parent=53 // pred_region
          %s633 = smul.u32 2, %s14
        $region62: #{vgg4_forward.6} parent=53 // pred_fallthru
          _
      $region54: #{vgg4_forward.6} parent=5 // pred_fallthru
        _
      %p634 = scmp.le.s32.totalorder 2, %s9
      // Predicated region
      $region63: #{vgg4_forward.6} parent=5 // pred_check
        %p635 = pneg %p634
      $region64: #{vgg4_forward.6} parent=5 // pred_check_branch
        %637 = sbr.rel (%p635) target = $region66
      $region65: #{vgg4_forward.6} parent=5 // pred_region
        %s638 = ssub.s32 %s9, 2
        // Predicated region
        $region67: #{vgg4_forward.6} parent=65 // pred_check
          %p639 = pneg %p106
        $region68: #{vgg4_forward.6} parent=65 // pred_check_branch
          %641 = sbr.rel (%p639) target = $region70
        $region69: #{vgg4_forward.6} parent=65 // pred_region
          %s642 = smul.u32 2, %s15
          %p643 = scmp.lt.s32.totalorder %s642, 3
          %s644 = scalar_select %p643, %s642, 3
          %s645 = smul.addr %s644, 4
          %s646 = scalar_lea.vmem %s3, %s645
        $region70: #{vgg4_forward.6} parent=65 // pred_fallthru
          _
      $region66: #{vgg4_forward.6} parent=5 // pred_fallthru
        _
    $region6: #{vgg4_forward.6} parent=1 // loop_footer
      %s13 = sadd.s32 1, %s9
    $region7: #{vgg4_forward.6} parent=1 // loop_footer_branch
      %8 = sbr.rel target = $region3
    $region8: #{vgg4_forward.6} parent=1 // loop_exit
      _

// kernel: vgg4_forward.7
$region0: #{vgg4_forward.7}
  #allocation0 [shape = 'u32[]', space=smem, size = 0x4, offset = 0x4, fixed_abs, tag = 'smem constant byte address 0x4 - core index']
  #allocation1 [shape = 'u32[144,128]{1,0:T(1,128)}', space=vmem, size = 0x12000, scoped, tag = 'internal scratch']
  %s0 = inlined_call_operand.vmem [shape: bf16[32,576], index: 0, kind: input, shape index: {}]
  %s1 = inlined_call_operand.vmem [shape: bf16[576,128], index: 1, kind: input, shape index: {}]
  %s2 = inlined_call_operand.vmem [shape: f32[1,128], index: 2, kind: input, shape index: {}]
  %s3 = inlined_call_operand.vmem [shape: bf16[512,128], index: 3, kind: input, shape index: {}]
  %s4 = inlined_call_operand.vmem [shape: f32[1,128], index: 4, kind: input, shape index: {}]
  %s5 = inlined_call_operand.vmem [shape: bf16[128,128], index: 5, kind: input, shape index: {}]
  %s6 = inlined_call_operand.vmem [shape: f32[1,128], index: 6, kind: input, shape index: {}]
  %s7 = inlined_call_operand.vmem [shape: bf16[128,128], index: 7, kind: input, shape index: {}]
  %s8 = inlined_call_operand.vmem [shape: f32[1,128], index: 8, kind: input, shape index: {}]
  %s9 = inlined_call_operand.hbm [shape: f32[2,128], index: 9, kind: output, shape index: {}]
  %s10 = sld [smem:[#allocation0]]
  $region46: #{vgg4_forward.7} parent=0
    _
  %s12 = ssub.s32 1, %s10
  %s13 = scalar_select 0, %s12, %s10
  $region1: #{vgg4_forward.7} parent=0
    #allocation2 [shape = 'u8[1024]{0}', space=vmem, size = 0x400, scoped, tag = 'output window, operand 0, single buffered']
    #allocation3 [shape = 's32[1]{0}', space=sflag, size = 0x4, scoped, tag = 'scoped memory for vgg4_forward.7']
    %14 = vsyncpa [#allocation3], 0
    // Predicated region
    $region2: #{vgg4_forward.7} parent=1 // pred_check
      _
    $region3: #{vgg4_forward.7} parent=1 // pred_check_branch
      %16 = sbr.rel (0) target = $region5
    $region4: #{vgg4_forward.7} parent=1 // pred_region
      _
    $region5: #{vgg4_forward.7} parent=1 // pred_fallthru
      _
    // Predicated region
    $region6: #{vgg4_forward.7} parent=1 // pred_check
      _
    $region7: #{vgg4_forward.7} parent=1 // pred_check_branch
      %18 = sbr.rel (0) target = $region9
    $region8: #{vgg4_forward.7} parent=1 // pred_region
      _
    $region9: #{vgg4_forward.7} parent=1 // pred_fallthru
      _
    // Predicated region
    $region10: #{vgg4_forward.7} parent=1 // pred_check
      _
    $region11: #{vgg4_forward.7} parent=1 // pred_check_branch
      %20 = sbr.rel (0) target = $region13
    $region12: #{vgg4_forward.7} parent=1 // pred_region
      _
    $region13: #{vgg4_forward.7} parent=1 // pred_fallthru
      _
    // Predicated region
    $region14: #{vgg4_forward.7} parent=1 // pred_check
      _
    $region15: #{vgg4_forward.7} parent=1 // pred_check_branch
      %22 = sbr.rel (0) target = $region17
    $region16: #{vgg4_forward.7} parent=1 // pred_region
      _
    $region17: #{vgg4_forward.7} parent=1 // pred_fallthru
      _
    // Predicated region
    $region18: #{vgg4_forward.7} parent=1 // pred_check
      _
    $region19: #{vgg4_forward.7} parent=1 // pred_check_branch
      %24 = sbr.rel (0) target = $region21
    $region20: #{vgg4_forward.7} parent=1 // pred_region
      _
    $region21: #{vgg4_forward.7} parent=1 // pred_fallthru
      _
    // Predicated region
    $region22: #{vgg4_forward.7} parent=1 // pred_check
      _
    $region23: #{vgg4_forward.7} parent=1 // pred_check_branch
      %26 = sbr.rel (0) target = $region25
    $region24: #{vgg4_forward.7} parent=1 // pred_region
      _
    $region25: #{vgg4_forward.7} parent=1 // pred_fallthru
      _
    // Predicated region
    $region26: #{vgg4_forward.7} parent=1 // pred_check
      _
    $region27: #{vgg4_forward.7} parent=1 // pred_check_branch
      %28 = sbr.rel (0) target = $region29
    $region28: #{vgg4_forward.7} parent=1 // pred_region
      _
    $region29: #{vgg4_forward.7} parent=1 // pred_fallthru
      _
    // Predicated region
    $region30: #{vgg4_forward.7} parent=1 // pred_check
      _
    $region31: #{vgg4_forward.7} parent=1 // pred_check_branch
      %30 = sbr.rel (0) target = $region33
    $region32: #{vgg4_forward.7} parent=1 // pred_region
      _
    $region33: #{vgg4_forward.7} parent=1 // pred_fallthru
      _
    // Predicated region
    $region34: #{vgg4_forward.7} parent=1 // pred_check
      _
    $region35: #{vgg4_forward.7} parent=1 // pred_check_branch
      %32 = sbr.rel (0) target = $region37
    $region36: #{vgg4_forward.7} parent=1 // pred_region
      _
    $region37: #{vgg4_forward.7} parent=1 // pred_fallthru
      _
    %v34 = vld [vmem:[%s0] sm:$0xff]
    %v35 = vld [vmem:[%s0 + $0x8] sm:$0xff]
    %v36 = vld [vmem:[%s0 + $0x10] sm:$0xf]
    %v37 = vld [vmem:[%s0 + $0x14] sm:$0xff]
    %v38 = vld [vmem:[%s0 + $0x1c] sm:$0xff]
    %v39 = vld [vmem:[%s0 + $0x24] sm:$0xf]
    %v40 = vld [vmem:[%s0 + $0x28] sm:$0xff]
    %v41 = vld [vmem:[%s0 + $0x30] sm:$0xff]
    %v42 = vld [vmem:[%s0 + $0x38] sm:$0xf]
    %v43 = vld [vmem:[%s0 + $0x3c] sm:$0xff]
    %v44 = vld [vmem:[%s0 + $0x44] sm:$0xff]
    %v45 = vld [vmem:[%s0 + $0x4c] sm:$0xf]
    %v46 = vld [vmem:[%s1] sm:$0xf]
    %v47 = vld [vmem:[%s1 + $0x4] sm:$0xf]
    %v48 = vld [vmem:[%s1 + $0x8] sm:$0xf]
    %v49 = vld [vmem:[%s1 + $0xc] sm:$0xf]
    %v50 = vld [vmem:[%s1 + $0x10] sm:$0xf]
    %v51 = vld [vmem:[%s1 + $0x14] sm:$0xf]
    %v52 = vld [vmem:[%s1 + $0x18] sm:$0xf]
    %v53 = vld [vmem:[%s1 + $0x1c] sm:$0xf]
    %v54 = vld [vmem:[%s1 + $0x20] sm:$0xf]
    %v55 = vld [vmem:[%s1 + $0x24] sm:$0xf]
    %v56 = vld [vmem:[%s1 + $0x28] sm:$0xf]
    %v57 = vld [vmem:[%s1 + $0x2c] sm:$0xf]
    %v58 = vld [vmem:[%s1 + $0x30] sm:$0xf]
    %v59 = vld [vmem:[%s1 + $0x34] sm:$0xf]
    %v60 = vld [vmem:[%s1 + $0x38] sm:$0xf]
    %v61 = vld [vmem:[%s1 + $0x3c] sm:$0xf]
    %v62 = vld [vmem:[%s1 + $0x40] sm:$0xf]
    %v63 = vld [vmem:[%s1 + $0x44] sm:$0xf]
    %v64 = vld [vmem:[%s1 + $0x48] sm:$0xf]
    %v65 = vld [vmem:[%s1 + $0x4c] sm:$0xf]
    %v66 = vld [vmem:[%s1 + $0x50] sm:$0xf]
    %v67 = vld [vmem:[%s1 + $0x54] sm:$0xf]
    %v68 = vld [vmem:[%s1 + $0x58] sm:$0xf]
    %v69 = vld [vmem:[%s1 + $0x5c] sm:$0xf]
    %v70 = vld [vmem:[%s1 + $0x60] sm:$0xf]
    %v71 = vld [vmem:[%s1 + $0x64] sm:$0xf]
    %v72 = vld [vmem:[%s1 + $0x68] sm:$0xf]
    %v73 = vld [vmem:[%s1 + $0x6c] sm:$0xf]
    %v74 = vld [vmem:[%s1 + $0x70] sm:$0xf]
    %v75 = vld [vmem:[%s1 + $0x74] sm:$0xf]
    %v76 = vld [vmem:[%s1 + $0x78] sm:$0xf]
    %v77 = vld [vmem:[%s1 + $0x7c] sm:$0xf]
    %v78 = vld [vmem:[%s1 + $0x80] sm:$0xf]
    %v79 = vld [vmem:[%s1 + $0x84] sm:$0xf]
    %v80 = vld [vmem:[%s1 + $0x88] sm:$0xf]
    %v81 = vld [vmem:[%s1 + $0x8c] sm:$0xf]
    %v82 = vld [vmem:[%s1 + $0x90] sm:$0xf]
    %v83 = vld [vmem:[%s1 + $0x94] sm:$0xf]
    %v84 = vld [vmem:[%s1 + $0x98] sm:$0xf]
    %v85 = vld [vmem:[%s1 + $0x9c] sm:$0xf]
    %v86 = vld [vmem:[%s1 + $0xa0] sm:$0xf]
    %v87 = vld [vmem:[%s1 + $0xa4] sm:$0xf]
    %v88 = vld [vmem:[%s1 + $0xa8] sm:$0xf]
    %v89 = vld [vmem:[%s1 + $0xac] sm:$0xf]
    %v90 = vld [vmem:[%s1 + $0xb0] sm:$0xf]
    %v91 = vld [vmem:[%s1 + $0xb4] sm:$0xf]
    %v92 = vld [vmem:[%s1 + $0xb8] sm:$0xf]
    %v93 = vld [vmem:[%s1 + $0xbc] sm:$0xf]
    %v94 = vld [vmem:[%s1 + $0xc0] sm:$0xf]
    %v95 = vld [vmem:[%s1 + $0xc4] sm:$0xf]
    %v96 = vld [vmem:[%s1 + $0xc8] sm:$0xf]
    %v97 = vld [vmem:[%s1 + $0xcc] sm:$0xf]
    %v98 = vld [vmem:[%s1 + $0xd0] sm:$0xf]
    %v99 = vld [vmem:[%s1 + $0xd4] sm:$0xf]
    %v100 = vld [vmem:[%s1 + $0xd8] sm:$0xf]
    %v101 = vld [vmem:[%s1 + $0xdc] sm:$0xf]
    %v102 = vld [vmem:[%s1 + $0xe0] sm:$0xf]
    %v103 = vld [vmem:[%s1 + $0xe4] sm:$0xf]
    %v104 = vld [vmem:[%s1 + $0xe8] sm:$0xf]
    %v105 = vld [vmem:[%s1 + $0xec] sm:$0xf]
    %v106 = vld [vmem:[%s1 + $0xf0] sm:$0xf]
    %v107 = vld [vmem:[%s1 + $0xf4] sm:$0xf]
    %v108 = vld [vmem:[%s1 + $0xf8] sm:$0xf]
    %v109 = vld [vmem:[%s1 + $0xfc] sm:$0xf]
    %v110 = vld [vmem:[%s1 + $0x100] sm:$0xf]
    %v111 = vld [vmem:[%s1 + $0x104] sm:$0xf]
    %v112 = vld [vmem:[%s1 + $0x108] sm:$0xf]
    %v113 = vld [vmem:[%s1 + $0x10c] sm:$0xf]
    %v114 = vld [vmem:[%s1 + $0x110] sm:$0xf]
    %v115 = vld [vmem:[%s1 + $0x114] sm:$0xf]
    %v116 = vld [vmem:[%s1 + $0x118] sm:$0xf]
    %v117 = vld [vmem:[%s1 + $0x11c] sm:$0xf]
    %v130 = vunpack.c.l.b16 %v34
    %v131 = vunpack.c.h.b16 %v34
    %v132 = vunpack.c.l.b16 %v35
    %v133 = vunpack.c.h.b16 %v35
    %v134 = vunpack.c.l.b16 %v36
    %v135 = vunpack.c.l.b16 %v37
    %v136 = vunpack.c.h.b16 %v37
    %v137 = vunpack.c.l.b16 %v38
    %v138 = vunpack.c.h.b16 %v38
    %v139 = vunpack.c.l.b16 %v39
    %v140 = vunpack.c.l.b16 %v40
    %v141 = vunpack.c.h.b16 %v40
    %v142 = vunpack.c.l.b16 %v41
    %v143 = vunpack.c.h.b16 %v41
    %v144 = vunpack.c.l.b16 %v42
    %v145 = vunpack.c.l.b16 %v43
    %v146 = vunpack.c.h.b16 %v43
    %v147 = vunpack.c.l.b16 %v44
    %v148 = vunpack.c.h.b16 %v44
    %v149 = vunpack.c.l.b16 %v45
    %v150 = vpack.c.b16 %v135, %v130
    %v151 = vpack.c.b16 %v136, %v131
    %v152 = vpack.c.b16 %v137, %v132
    %v153 = vpack.c.b16 %v138, %v133
    %v154 = vpack.c.b16 %v139, %v134
    %v155 = vpack.c.b16 %v145, %v140
    %v156 = vpack.c.b16 %v146, %v141
    %v157 = vpack.c.b16 %v147, %v142
    %v158 = vpack.c.b16 %v148, %v143
    %v159 = vpack.c.b16 %v149, %v144
    %v240 = vunpack.c.l.b16 %v46
    %v241 = vunpack.c.l.b16 %v47
    %v242 = vunpack.c.l.b16 %v48
    %v243 = vunpack.c.l.b16 %v49
    %v244 = vunpack.c.l.b16 %v50
    %v245 = vunpack.c.l.b16 %v51
    %v246 = vunpack.c.l.b16 %v52
    %v247 = vunpack.c.l.b16 %v53
    %v248 = vunpack.c.l.b16 %v54
    %v249 = vunpack.c.l.b16 %v55
    %v250 = vunpack.c.l.b16 %v56
    %v251 = vunpack.c.l.b16 %v57
    %v252 = vunpack.c.l.b16 %v58
    %v253 = vunpack.c.l.b16 %v59
    %v254 = vunpack.c.l.b16 %v60
    %v255 = vunpack.c.l.b16 %v61
    %v256 = vunpack.c.l.b16 %v62
    %v257 = vunpack.c.l.b16 %v63
    %v258 = vunpack.c.l.b16 %v64
    %v259 = vunpack.c.l.b16 %v65
    %v260 = vunpack.c.l.b16 %v66
    %v261 = vunpack.c.l.b16 %v67
    %v262 = vunpack.c.l.b16 %v68
    %v263 = vunpack.c.l.b16 %v69
    %v264 = vunpack.c.l.b16 %v70
    %v265 = vunpack.c.l.b16 %v71
    %v266 = vunpack.c.l.b16 %v72
    %v267 = vunpack.c.l.b16 %v73
    %v268 = vunpack.c.l.b16 %v74
    %v269 = vunpack.c.l.b16 %v75
    %v270 = vunpack.c.l.b16 %v76
    %v271 = vunpack.c.l.b16 %v77
    %v272 = vunpack.c.l.b16 %v78
    %v273 = vunpack.c.l.b16 %v79
    %v274 = vunpack.c.l.b16 %v80
    %v275 = vunpack.c.l.b16 %v81
    %v276 = vunpack.c.l.b16 %v82
    %v277 = vunpack.c.l.b16 %v83
    %v278 = vunpack.c.l.b16 %v84
    %v279 = vunpack.c.l.b16 %v85
    %v280 = vunpack.c.l.b16 %v86
    %v281 = vunpack.c.l.b16 %v87
    %v282 = vunpack.c.l.b16 %v88
    %v283 = vunpack.c.l.b16 %v89
    %v284 = vunpack.c.l.b16 %v90
    %v285 = vunpack.c.l.b16 %v91
    %v286 = vunpack.c.l.b16 %v92
    %v287 = vunpack.c.l.b16 %v93
    %v288 = vunpack.c.l.b16 %v94
    %v289 = vunpack.c.l.b16 %v95
    %v290 = vunpack.c.l.b16 %v96
    %v291 = vunpack.c.l.b16 %v97
    %v292 = vunpack.c.l.b16 %v98
    %v293 = vunpack.c.l.b16 %v99
    %v294 = vunpack.c.l.b16 %v100
    %v295 = vunpack.c.l.b16 %v101
    %v296 = vunpack.c.l.b16 %v102
    %v297 = vunpack.c.l.b16 %v103
    %v298 = vunpack.c.l.b16 %v104
    %v299 = vunpack.c.l.b16 %v105
    %v300 = vunpack.c.l.b16 %v106
    %v301 = vunpack.c.l.b16 %v107
    %v302 = vunpack.c.l.b16 %v108
    %v303 = vunpack.c.l.b16 %v109
    %v304 = vunpack.c.l.b16 %v110
    %v305 = vunpack.c.l.b16 %v111
    %v306 = vunpack.c.l.b16 %v112
    %v307 = vunpack.c.l.b16 %v113
    %v308 = vunpack.c.l.b16 %v114
    %v309 = vunpack.c.l.b16 %v115
    %v310 = vunpack.c.l.b16 %v116
    %v311 = vunpack.c.l.b16 %v117
    %v312 = vpack.c.b16 %v241, %v240
    %v313 = vpack.c.b16 %v243, %v242
    %v314 = vpack.c.b16 %v245, %v244
    %v315 = vpack.c.b16 %v247, %v246
    %v316 = vpack.c.b16 %v249, %v248
    %v317 = vpack.c.b16 %v251, %v250
    %v318 = vpack.c.b16 %v253, %v252
    %v319 = vpack.c.b16 %v255, %v254
    %v320 = vpack.c.b16 %v257, %v256
    %v321 = vpack.c.b16 %v259, %v258
    %v322 = vpack.c.b16 %v261, %v260
    %v323 = vpack.c.b16 %v263, %v262
    %v324 = vpack.c.b16 %v265, %v264
    %v325 = vpack.c.b16 %v267, %v266
    %v326 = vpack.c.b16 %v269, %v268
    %v327 = vpack.c.b16 %v271, %v270
    %v328 = vpack.c.b16 %v273, %v272
    %v329 = vpack.c.b16 %v275, %v274
    %v330 = vpack.c.b16 %v277, %v276
    %v331 = vpack.c.b16 %v279, %v278
    %v332 = vpack.c.b16 %v281, %v280
    %v333 = vpack.c.b16 %v283, %v282
    %v334 = vpack.c.b16 %v285, %v284
    %v335 = vpack.c.b16 %v287, %v286
    %v336 = vpack.c.b16 %v289, %v288
    %v337 = vpack.c.b16 %v291, %v290
    %v338 = vpack.c.b16 %v293, %v292
    %v339 = vpack.c.b16 %v295, %v294
    %v340 = vpack.c.b16 %v297, %v296
    %v341 = vpack.c.b16 %v299, %v298
    %v342 = vpack.c.b16 %v301, %v300
    %v343 = vpack.c.b16 %v303, %v302
    %v344 = vpack.c.b16 %v305, %v304
    %v345 = vpack.c.b16 %v307, %v306
    %v346 = vpack.c.b16 %v309, %v308
    %v347 = vpack.c.b16 %v311, %v310
    %vm384 = vcmask 523264
    %v386 = vsel %vm384, %v154, 0
    %v389 = vsel %vm384, %v159, 0
    %391 = vmatprep.subr.bf16.mxu0 0
    %392 = vmatpush1.bf16.msra.mxu0 %v319
    %393 = vmatprep.subr.bf16.mxu0 0
    %394 = vmatpush1.bf16.msra.mxu0 %v318
    %395 = vmatprep.subr.bf16.mxu0 0
    %396 = vmatpush1.bf16.msra.mxu0 %v317
    %397 = vmatprep.subr.bf16.mxu0 0
    %398 = vmatpush1.bf16.msra.mxu0 %v316
    %399 = vmatprep.subr.bf16.mxu0 0
    %400 = vmatpush1.bf16.msra.mxu0 %v315
    %401 = vmatprep.subr.bf16.mxu0 0
    %402 = vmatpush1.bf16.msra.mxu0 %v314
    %403 = vmatprep.subr.bf16.mxu0 0
    %404 = vmatpush1.bf16.msra.mxu0 %v313
    %405 = vmatprep.subr.bf16.mxu0 0
    %406 = vmatpush1.bf16.msra.mxu0 %v312
    %407 = vmatprep.subr.bf16.mxu0 0
    %408 = vmatpush2.bf16.msra.mxu0 %v327
    %409 = vmatprep.subr.bf16.mxu0 0
    %410 = vmatpush2.bf16.msra.mxu0 %v326
    %411 = vmatprep.subr.bf16.mxu0 0
    %412 = vmatpush2.bf16.msra.mxu0 %v325
    %413 = vmatprep.subr.bf16.mxu0 0
    %414 = vmatpush2.bf16.msra.mxu0 %v324
    %415 = vmatprep.subr.bf16.mxu0 0
    %416 = vmatpush2.bf16.msra.mxu0 %v323
    %417 = vmatprep.subr.bf16.mxu0 0
    %418 = vmatpush2.bf16.msra.mxu0 %v322
    %419 = vmatprep.subr.bf16.mxu0 0
    %420 = vmatpush2.bf16.msra.mxu0 %v321
    %421 = vmatprep.subr.bf16.mxu0 0
    %422 = vmatpush2.bf16.msra.mxu0 %v320
    %423 = vmatprep.mubr.bf16.mxu0 %v151
    %424 = vmatmul.mubr.bf16.gmra.mxu0 %v150
    %v425 = vpop.f32.mrf.mxu0
    %v426 = vadd.f32 0.0, %v425
    %v427 = vpop.f32.mrf.mxu0
    %v428 = vpop.f32.mrf.mxu0
    %v429 = vadd.f32 0.0, %v428
    %v430 = vpop.f32.mrf.mxu0
    %431 = vmatprep.mubr.bf16.mxu0 %v156
    %432 = vmatmul.mubr.bf16.gmra.mxu0 %v155
    %v433 = vpop.f32.mrf.mxu0
    %v434 = vadd.f32 0.0, %v433
    %v435 = vpop.f32.mrf.mxu0
    %v436 = vpop.f32.mrf.mxu0
    %v437 = vadd.f32 0.0, %v436
    %v438 = vpop.f32.mrf.mxu0
    %439 = vdwg.mxu0
    %440 = vmatprep.subr.bf16.mxu0 0
    %441 = vmatpush1.bf16.msra.mxu0 %v335
    %442 = vmatprep.subr.bf16.mxu0 0
    %443 = vmatpush1.bf16.msra.mxu0 %v334
    %444 = vmatprep.subr.bf16.mxu0 0
    %445 = vmatpush1.bf16.msra.mxu0 %v333
    %446 = vmatprep.subr.bf16.mxu0 0
    %447 = vmatpush1.bf16.msra.mxu0 %v332
    %448 = vmatprep.subr.bf16.mxu0 0
    %449 = vmatpush1.bf16.msra.mxu0 %v331
    %450 = vmatprep.subr.bf16.mxu0 0
    %451 = vmatpush1.bf16.msra.mxu0 %v330
    %452 = vmatprep.subr.bf16.mxu0 0
    %453 = vmatpush1.bf16.msra.mxu0 %v329
    %454 = vmatprep.subr.bf16.mxu0 0
    %455 = vmatpush1.bf16.msra.mxu0 %v328
    %456 = vmatprep.subr.bf16.mxu0 0
    %457 = vmatpush2.bf16.msra.mxu0 %v343
    %458 = vmatprep.subr.bf16.mxu0 0
    %459 = vmatpush2.bf16.msra.mxu0 %v342
    %460 = vmatprep.subr.bf16.mxu0 0
    %461 = vmatpush2.bf16.msra.mxu0 %v341
    %462 = vmatprep.subr.bf16.mxu0 0
    %463 = vmatpush2.bf16.msra.mxu0 %v340
    %464 = vmatprep.subr.bf16.mxu0 0
    %465 = vmatpush2.bf16.msra.mxu0 %v339
    %466 = vmatprep.subr.bf16.mxu0 0
    %467 = vmatpush2.bf16.msra.mxu0 %v338
    %468 = vmatprep.subr.bf16.mxu0 0
    %469 = vmatpush2.bf16.msra.mxu0 %v337
    %470 = vmatprep.subr.bf16.mxu0 0
    %471 = vmatpush2.bf16.msra.mxu0 %v336
    %472 = vmatprep.mubr.bf16.mxu0 %v153
    %473 = vmatmul.mubr.bf16.gmra.mxu0 %v152
    %v474 = vpop.f32.mrf.mxu0
    %v475 = vadd.f32 %v426, %v474
    %v476 = vpop.f32.mrf.mxu0
    %v477 = vpop.f32.mrf.mxu0
    %v478 = vadd.f32 %v429, %v477
    %v479 = vpop.f32.mrf.mxu0
    %480 = vmatprep.mubr.bf16.mxu0 %v158
    %481 = vmatmul.mubr.bf16.gmra.mxu0 %v157
    %v482 = vpop.f32.mrf.mxu0
    %v483 = vadd.f32 %v434, %v482
    %v484 = vpop.f32.mrf.mxu0
    %v485 = vpop.f32.mrf.mxu0
    %v486 = vadd.f32 %v437, %v485
    %v487 = vpop.f32.mrf.mxu0
    %488 = vdwg.mxu0
    %489 = vmatprep.subr.bf16.mxu0 0
    %490 = vmatpush1.bf16.msra.mxu0 0
    %491 = vmatprep.subr.bf16.mxu0 0
    %492 = vmatpush1.bf16.msra.mxu0 0
    %493 = vmatprep.subr.bf16.mxu0 0
    %494 = vmatpush1.bf16.msra.mxu0 0
    %495 = vmatprep.subr.bf16.mxu0 0
    %496 = vmatpush1.bf16.msra.mxu0 0
    %497 = vmatprep.subr.bf16.mxu0 0
    %498 = vmatpush1.bf16.msra.mxu0 %v347
    %499 = vmatprep.subr.bf16.mxu0 0
    %500 = vmatpush1.bf16.msra.mxu0 %v346
    %501 = vmatprep.subr.bf16.mxu0 0
    %502 = vmatpush1.bf16.msra.mxu0 %v345
    %503 = vmatprep.subr.bf16.mxu0 0
    %504 = vmatpush1.bf16.msra.mxu0 %v344
    %505 = vmatprep.subr.bf16.mxu0 0
    %506 = vmatpush2.bf16.msra.mxu0 0
    %507 = vmatprep.subr.bf16.mxu0 0
    %508 = vmatpush2.bf16.msra.mxu0 0
    %509 = vmatprep.subr.bf16.mxu0 0
    %510 = vmatpush2.bf16.msra.mxu0 0
    %511 = vmatprep.subr.bf16.mxu0 0
    %512 = vmatpush2.bf16.msra.mxu0 0
    %513 = vmatprep.subr.bf16.mxu0 0
    %514 = vmatpush2.bf16.msra.mxu0 0
    %515 = vmatprep.subr.bf16.mxu0 0
    %516 = vmatpush2.bf16.msra.mxu0 0
    %517 = vmatprep.subr.bf16.mxu0 0
    %518 = vmatpush2.bf16.msra.mxu0 0
    %519 = vmatprep.subr.bf16.mxu0 0
    %520 = vmatpush2.bf16.msra.mxu0 0
    %521 = vmatprep.mubr.bf16.mxu0 0
    %522 = vmatmul.mubr.bf16.gmra.mxu0 %v386
    %v523 = vpop.f32.mrf.mxu0
    %v524 = vadd.f32 %v475, %v523
    %v525 = vpop.f32.mrf.mxu0
    %v526 = vpop.f32.mrf.mxu0
    %v527 = vadd.f32 %v478, %v526
    %v528 = vpop.f32.mrf.mxu0
    %529 = vmatprep.mubr.bf16.mxu0 0
    %530 = vmatmul.mubr.bf16.gmra.mxu0 %v389
    %v531 = vpop.f32.mrf.mxu0
    %v532 = vadd.f32 %v483, %v531
    %v533 = vpop.f32.mrf.mxu0
    %v534 = vpop.f32.mrf.mxu0
    %v535 = vadd.f32 %v486, %v534
    %v536 = vpop.f32.mrf.mxu0
    %537 = vdwg.mxu0
    %v538 = vmax.f32 %v524, %v527
    %v539 = vmax.f32 %v532, %v535
    %v540 = vmax.f32 %v538, %v539
    %v541 = vld [vmem:[%s2] sm:$0x1]
    %v543 = vlaneseq
    %v544 = vshrl.u32 %v543, 7
    %v545 = vsub.s32 0, %v544
    %v546 = vrot.slane %v541, %v545
    %v548 = vadd.f32 %v540, %v546
    %v549 = vmax.f32 %v548, 0.0
    %v550 = vld [vmem:[%s3] sm:$0xf]
    %v551 = vld [vmem:[%s3 + $0x4] sm:$0xf]
    %v552 = vld [vmem:[%s3 + $0x8] sm:$0xf]
    %v553 = vld [vmem:[%s3 + $0xc] sm:$0xf]
    %v554 = vld [vmem:[%s3 + $0x10] sm:$0xf]
    %v555 = vld [vmem:[%s3 + $0x14] sm:$0xf]
    %v556 = vld [vmem:[%s3 + $0x18] sm:$0xf]
    %v557 = vld [vmem:[%s3 + $0x1c] sm:$0xf]
    %v558 = vld [vmem:[%s3 + $0x20] sm:$0xf]
    %v559 = vld [vmem:[%s3 + $0x24] sm:$0xf]
    %v560 = vld [vmem:[%s3 + $0x28] sm:$0xf]
    %v561 = vld [vmem:[%s3 + $0x2c] sm:$0xf]
    %v562 = vld [vmem:[%s3 + $0x30] sm:$0xf]
    %v563 = vld [vmem:[%s3 + $0x34] sm:$0xf]
    %v564 = vld [vmem:[%s3 + $0x38] sm:$0xf]
    %v565 = vld [vmem:[%s3 + $0x3c] sm:$0xf]
    %v566 = vld [vmem:[%s3 + $0x40] sm:$0xf]
    %v567 = vld [vmem:[%s3 + $0x44] sm:$0xf]
    %v568 = vld [vmem:[%s3 + $0x48] sm:$0xf]
    %v569 = vld [vmem:[%s3 + $0x4c] sm:$0xf]
    %v570 = vld [vmem:[%s3 + $0x50] sm:$0xf]
    %v571 = vld [vmem:[%s3 + $0x54] sm:$0xf]
    %v572 = vld [vmem:[%s3 + $0x58] sm:$0xf]
    %v573 = vld [vmem:[%s3 + $0x5c] sm:$0xf]
    %v574 = vld [vmem:[%s3 + $0x60] sm:$0xf]
    %v575 = vld [vmem:[%s3 + $0x64] sm:$0xf]
    %v576 = vld [vmem:[%s3 + $0x68] sm:$0xf]
    %v577 = vld [vmem:[%s3 + $0x6c] sm:$0xf]
    %v578 = vld [vmem:[%s3 + $0x70] sm:$0xf]
    %v579 = vld [vmem:[%s3 + $0x74] sm:$0xf]
    %v580 = vld [vmem:[%s3 + $0x78] sm:$0xf]
    %v581 = vld [vmem:[%s3 + $0x7c] sm:$0xf]
    %v582 = vld [vmem:[%s3 + $0x80] sm:$0xf]
    %v583 = vld [vmem:[%s3 + $0x84] sm:$0xf]
    %v584 = vld [vmem:[%s3 + $0x88] sm:$0xf]
    %v585 = vld [vmem:[%s3 + $0x8c] sm:$0xf]
    %v586 = vld [vmem:[%s3 + $0x90] sm:$0xf]
    %v587 = vld [vmem:[%s3 + $0x94] sm:$0xf]
    %v588 = vld [vmem:[%s3 + $0x98] sm:$0xf]
    %v589 = vld [vmem:[%s3 + $0x9c] sm:$0xf]
    %v590 = vld [vmem:[%s3 + $0xa0] sm:$0xf]
    %v591 = vld [vmem:[%s3 + $0xa4] sm:$0xf]
    %v592 = vld [vmem:[%s3 + $0xa8] sm:$0xf]
    %v593 = vld [vmem:[%s3 + $0xac] sm:$0xf]
    %v594 = vld [vmem:[%s3 + $0xb0] sm:$0xf]
    %v595 = vld [vmem:[%s3 + $0xb4] sm:$0xf]
    %v596 = vld [vmem:[%s3 + $0xb8] sm:$0xf]
    %v597 = vld [vmem:[%s3 + $0xbc] sm:$0xf]
    %v598 = vld [vmem:[%s3 + $0xc0] sm:$0xf]
    %v599 = vld [vmem:[%s3 + $0xc4] sm:$0xf]
    %v600 = vld [vmem:[%s3 + $0xc8] sm:$0xf]
    %v601 = vld [vmem:[%s3 + $0xcc] sm:$0xf]
    %v602 = vld [vmem:[%s3 + $0xd0] sm:$0xf]
    %v603 = vld [vmem:[%s3 + $0xd4] sm:$0xf]
    %v604 = vld [vmem:[%s3 + $0xd8] sm:$0xf]
    %v605 = vld [vmem:[%s3 + $0xdc] sm:$0xf]
    %v606 = vld [vmem:[%s3 + $0xe0] sm:$0xf]
    %v607 = vld [vmem:[%s3 + $0xe4] sm:$0xf]
    %v608 = vld [vmem:[%s3 + $0xe8] sm:$0xf]
    %v609 = vld [vmem:[%s3 + $0xec] sm:$0xf]
    %v610 = vld [vmem:[%s3 + $0xf0] sm:$0xf]
    %v611 = vld [vmem:[%s3 + $0xf4] sm:$0xf]
    %v612 = vld [vmem:[%s3 + $0xf8] sm:$0xf]
    %v613 = vld [vmem:[%s3 + $0xfc] sm:$0xf]
    %v614 = vpack.c.bf16 %v549, %v549
    %v616 = vrot.slane %v614, 1
    %v634 = vunpack.c.l.b16 %v566
    %v635 = vunpack.c.l.b16 %v567
    %v636 = vunpack.c.l.b16 %v568
    %v637 = vunpack.c.l.b16 %v569
    %v638 = vunpack.c.l.b16 %v570
    %v639 = vunpack.c.l.b16 %v571
    %v640 = vunpack.c.l.b16 %v572
    %v641 = vunpack.c.l.b16 %v573
    %v642 = vunpack.c.l.b16 %v574
    %v643 = vunpack.c.l.b16 %v575
    %v644 = vunpack.c.l.b16 %v576
    %v645 = vunpack.c.l.b16 %v577
    %v646 = vunpack.c.l.b16 %v578
    %v647 = vunpack.c.l.b16 %v579
    %v648 = vunpack.c.l.b16 %v580
    %v649 = vunpack.c.l.b16 %v581
    %v650 = vpack.c.b16 %v635, %v634
    %v651 = vpack.c.b16 %v637, %v636
    %v652 = vpack.c.b16 %v639, %v638
    %v653 = vpack.c.b16 %v641, %v640
    %v654 = vpack.c.b16 %v643, %v642
    %v655 = vpack.c.b16 %v645, %v644
    %v656 = vpack.c.b16 %v647, %v646
    %v657 = vpack.c.b16 %v649, %v648
    %666 = vmatprep.subr.bf16.mxu0 0
    %667 = vmatpush1.bf16.msra.mxu0 %v657
    %668 = vmatprep.subr.bf16.mxu0 0
    %669 = vmatpush1.bf16.msra.mxu0 %v656
    %670 = vmatprep.subr.bf16.mxu0 0
    %671 = vmatpush1.bf16.msra.mxu0 %v655
    %672 = vmatprep.subr.bf16.mxu0 0
    %673 = vmatpush1.bf16.msra.mxu0 %v654
    %674 = vmatprep.subr.bf16.mxu0 0
    %675 = vmatpush1.bf16.msra.mxu0 %v653
    %676 = vmatprep.subr.bf16.mxu0 0
    %677 = vmatpush1.bf16.msra.mxu0 %v652
    %678 = vmatprep.subr.bf16.mxu0 0
    %679 = vmatpush1.bf16.msra.mxu0 %v651
    %680 = vmatprep.subr.bf16.mxu0 0
    %681 = vmatpush1.bf16.msra.mxu0 %v650
    %682 = vmatprep.subr.bf16.mxu0 0
    %683 = vmatpush2.bf16.msra.mxu0 0
    %684 = vmatprep.subr.bf16.mxu0 0
    %685 = vmatpush2.bf16.msra.mxu0 0
    %686 = vmatprep.subr.bf16.mxu0 0
    %687 = vmatpush2.bf16.msra.mxu0 0
    %688 = vmatprep.subr.bf16.mxu0 0
    %689 = vmatpush2.bf16.msra.mxu0 0
    %690 = vmatprep.subr.bf16.mxu0 0
    %691 = vmatpush2.bf16.msra.mxu0 0
    %692 = vmatprep.subr.bf16.mxu0 0
    %693 = vmatpush2.bf16.msra.mxu0 0
    %694 = vmatprep.subr.bf16.mxu0 0
    %695 = vmatpush2.bf16.msra.mxu0 0
    %696 = vmatprep.subr.bf16.mxu0 0
    %697 = vmatpush2.bf16.msra.mxu0 0
    %698 = vmatprep.mubr.bf16.mxu0 0
    %699 = vmatmul.mubr.bf16.gmra.mxu0 %v616
    %v700 = vpop.f32.mrf.mxu0
    %v701 = vadd.f32 0.0, %v700
    %v702 = vpop.f32.mrf.mxu0
    %v703 = vpop.f32.mrf.mxu0
    %v704 = vpop.f32.mrf.mxu0
    %705 = vdwg.mxu0
    %v722 = vunpack.c.l.b16 %v550
    %v723 = vunpack.c.l.b16 %v551
    %v724 = vunpack.c.l.b16 %v552
    %v725 = vunpack.c.l.b16 %v553
    %v726 = vunpack.c.l.b16 %v554
    %v727 = vunpack.c.l.b16 %v555
    %v728 = vunpack.c.l.b16 %v556
    %v729 = vunpack.c.l.b16 %v557
    %v730 = vunpack.c.l.b16 %v558
    %v731 = vunpack.c.l.b16 %v559
    %v732 = vunpack.c.l.b16 %v560
    %v733 = vunpack.c.l.b16 %v561
    %v734 = vunpack.c.l.b16 %v562
    %v735 = vunpack.c.l.b16 %v563
    %v736 = vunpack.c.l.b16 %v564
    %v737 = vunpack.c.l.b16 %v565
    %v738 = vpack.c.b16 %v723, %v722
    %v739 = vpack.c.b16 %v725, %v724
    %v740 = vpack.c.b16 %v727, %v726
    %v741 = vpack.c.b16 %v729, %v728
    %v742 = vpack.c.b16 %v731, %v730
    %v743 = vpack.c.b16 %v733, %v732
    %v744 = vpack.c.b16 %v735, %v734
    %v745 = vpack.c.b16 %v737, %v736
    %754 = vmatprep.subr.bf16.mxu0 0
    %755 = vmatpush1.bf16.msra.mxu0 %v745
    %756 = vmatprep.subr.bf16.mxu0 0
    %757 = vmatpush1.bf16.msra.mxu0 %v744
    %758 = vmatprep.subr.bf16.mxu0 0
    %759 = vmatpush1.bf16.msra.mxu0 %v743
    %760 = vmatprep.subr.bf16.mxu0 0
    %761 = vmatpush1.bf16.msra.mxu0 %v742
    %762 = vmatprep.subr.bf16.mxu0 0
    %763 = vmatpush1.bf16.msra.mxu0 %v741
    %764 = vmatprep.subr.bf16.mxu0 0
    %765 = vmatpush1.bf16.msra.mxu0 %v740
    %766 = vmatprep.subr.bf16.mxu0 0
    %767 = vmatpush1.bf16.msra.mxu0 %v739
    %768 = vmatprep.subr.bf16.mxu0 0
    %769 = vmatpush1.bf16.msra.mxu0 %v738
    %770 = vmatprep.subr.bf16.mxu0 0
    %771 = vmatpush2.bf16.msra.mxu0 0
    %772 = vmatprep.subr.bf16.mxu0 0
    %773 = vmatpush2.bf16.msra.mxu0 0
    %774 = vmatprep.subr.bf16.mxu0 0
    %775 = vmatpush2.bf16.msra.mxu0 0
    %776 = vmatprep.subr.bf16.mxu0 0
    %777 = vmatpush2.bf16.msra.mxu0 0
    %778 = vmatprep.subr.bf16.mxu0 0
    %779 = vmatpush2.bf16.msra.mxu0 0
    %780 = vmatprep.subr.bf16.mxu0 0
    %781 = vmatpush2.bf16.msra.mxu0 0
    %782 = vmatprep.subr.bf16.mxu0 0
    %783 = vmatpush2.bf16.msra.mxu0 0
    %784 = vmatprep.subr.bf16.mxu0 0
    %785 = vmatpush2.bf16.msra.mxu0 0
    %786 = vmatprep.mubr.bf16.mxu0 0
    %787 = vmatmul.mubr.bf16.gmra.mxu0 %v614
    %v788 = vpop.f32.mrf.mxu0
    %v789 = vadd.f32 %v701, %v788
    %v790 = vpop.f32.mrf.mxu0
    %v791 = vpop.f32.mrf.mxu0
    %v792 = vpop.f32.mrf.mxu0
    %793 = vdwg.mxu0
    %v794 = vrot.slane %v614, 2
    %v812 = vunpack.c.l.b16 %v582
    %v813 = vunpack.c.l.b16 %v583
    %v814 = vunpack.c.l.b16 %v584
    %v815 = vunpack.c.l.b16 %v585
    %v816 = vunpack.c.l.b16 %v586
    %v817 = vunpack.c.l.b16 %v587
    %v818 = vunpack.c.l.b16 %v588
    %v819 = vunpack.c.l.b16 %v589
    %v820 = vunpack.c.l.b16 %v590
    %v821 = vunpack.c.l.b16 %v591
    %v822 = vunpack.c.l.b16 %v592
    %v823 = vunpack.c.l.b16 %v593
    %v824 = vunpack.c.l.b16 %v594
    %v825 = vunpack.c.l.b16 %v595
    %v826 = vunpack.c.l.b16 %v596
    %v827 = vunpack.c.l.b16 %v597
    %v828 = vpack.c.b16 %v813, %v812
    %v829 = vpack.c.b16 %v815, %v814
    %v830 = vpack.c.b16 %v817, %v816
    %v831 = vpack.c.b16 %v819, %v818
    %v832 = vpack.c.b16 %v821, %v820
    %v833 = vpack.c.b16 %v823, %v822
    %v834 = vpack.c.b16 %v825, %v824
    %v835 = vpack.c.b16 %v827, %v826
    %844 = vmatprep.subr.bf16.mxu0 0
    %845 = vmatpush1.bf16.msra.mxu0 %v835
    %846 = vmatprep.subr.bf16.mxu0 0
    %847 = vmatpush1.bf16.msra.mxu0 %v834
    %848 = vmatprep.subr.bf16.mxu0 0
    %849 = vmatpush1.bf16.msra.mxu0 %v833
    %850 = vmatprep.subr.bf16.mxu0 0
    %851 = vmatpush1.bf16.msra.mxu0 %v832
    %852 = vmatprep.subr.bf16.mxu0 0
    %853 = vmatpush1.bf16.msra.mxu0 %v831
    %854 = vmatprep.subr.bf16.mxu0 0
    %855 = vmatpush1.bf16.msra.mxu0 %v830
    %856 = vmatprep.subr.bf16.mxu0 0
    %857 = vmatpush1.bf16.msra.mxu0 %v829
    %858 = vmatprep.subr.bf16.mxu0 0
    %859 = vmatpush1.bf16.msra.mxu0 %v828
    %860 = vmatprep.subr.bf16.mxu0 0
    %861 = vmatpush2.bf16.msra.mxu0 0
    %862 = vmatprep.subr.bf16.mxu0 0
    %863 = vmatpush2.bf16.msra.mxu0 0
    %864 = vmatprep.subr.bf16.mxu0 0
    %865 = vmatpush2.bf16.msra.mxu0 0
    %866 = vmatprep.subr.bf16.mxu0 0
    %867 = vmatpush2.bf16.msra.mxu0 0
    %868 = vmatprep.subr.bf16.mxu0 0
    %869 = vmatpush2.bf16.msra.mxu0 0
    %870 = vmatprep.subr.bf16.mxu0 0
    %871 = vmatpush2.bf16.msra.mxu0 0
    %872 = vmatprep.subr.bf16.mxu0 0
    %873 = vmatpush2.bf16.msra.mxu0 0
    %874 = vmatprep.subr.bf16.mxu0 0
    %875 = vmatpush2.bf16.msra.mxu0 0
    %876 = vmatprep.mubr.bf16.mxu0 0
    %877 = vmatmul.mubr.bf16.gmra.mxu0 %v794
    %v878 = vpop.f32.mrf.mxu0
    %v879 = vadd.f32 0.0, %v878
    %v880 = vpop.f32.mrf.mxu0
    %v881 = vpop.f32.mrf.mxu0
    %v882 = vpop.f32.mrf.mxu0
    %883 = vdwg.mxu0
    %v884 = vadd.f32 %v789, %v879
    %v885 = vrot.slane %v614, 3
    %v903 = vunpack.c.l.b16 %v598
    %v904 = vunpack.c.l.b16 %v599
    %v905 = vunpack.c.l.b16 %v600
    %v906 = vunpack.c.l.b16 %v601
    %v907 = vunpack.c.l.b16 %v602
    %v908 = vunpack.c.l.b16 %v603
    %v909 = vunpack.c.l.b16 %v604
    %v910 = vunpack.c.l.b16 %v605
    %v911 = vunpack.c.l.b16 %v606
    %v912 = vunpack.c.l.b16 %v607
    %v913 = vunpack.c.l.b16 %v608
    %v914 = vunpack.c.l.b16 %v609
    %v915 = vunpack.c.l.b16 %v610
    %v916 = vunpack.c.l.b16 %v611
    %v917 = vunpack.c.l.b16 %v612
    %v918 = vunpack.c.l.b16 %v613
    %v919 = vpack.c.b16 %v904, %v903
    %v920 = vpack.c.b16 %v906, %v905
    %v921 = vpack.c.b16 %v908, %v907
    %v922 = vpack.c.b16 %v910, %v909
    %v923 = vpack.c.b16 %v912, %v911
    %v924 = vpack.c.b16 %v914, %v913
    %v925 = vpack.c.b16 %v916, %v915
    %v926 = vpack.c.b16 %v918, %v917
    %935 = vmatprep.subr.bf16.mxu0 0
    %936 = vmatpush1.bf16.msra.mxu0 %v926
    %937 = vmatprep.subr.bf16.mxu0 0
    %938 = vmatpush1.bf16.msra.mxu0 %v925
    %939 = vmatprep.subr.bf16.mxu0 0
    %940 = vmatpush1.bf16.msra.mxu0 %v924
    %941 = vmatprep.subr.bf16.mxu0 0
    %942 = vmatpush1.bf16.msra.mxu0 %v923
    %943 = vmatprep.subr.bf16.mxu0 0
    %944 = vmatpush1.bf16.msra.mxu0 %v922
    %945 = vmatprep.subr.bf16.mxu0 0
    %946 = vmatpush1.bf16.msra.mxu0 %v921
    %947 = vmatprep.subr.bf16.mxu0 0
    %948 = vmatpush1.bf16.msra.mxu0 %v920
    %949 = vmatprep.subr.bf16.mxu0 0
    %950 = vmatpush1.bf16.msra.mxu0 %v919
    %951 = vmatprep.subr.bf16.mxu0 0
    %952 = vmatpush2.bf16.msra.mxu0 0
    %953 = vmatprep.subr.bf16.mxu0 0
    %954 = vmatpush2.bf16.msra.mxu0 0
    %955 = vmatprep.subr.bf16.mxu0 0
    %956 = vmatpush2.bf16.msra.mxu0 0
    %957 = vmatprep.subr.bf16.mxu0 0
    %958 = vmatpush2.bf16.msra.mxu0 0
    %959 = vmatprep.subr.bf16.mxu0 0
    %960 = vmatpush2.bf16.msra.mxu0 0
    %961 = vmatprep.subr.bf16.mxu0 0
    %962 = vmatpush2.bf16.msra.mxu0 0
    %963 = vmatprep.subr.bf16.mxu0 0
    %964 = vmatpush2.bf16.msra.mxu0 0
    %965 = vmatprep.subr.bf16.mxu0 0
    %966 = vmatpush2.bf16.msra.mxu0 0
    %967 = vmatprep.mubr.bf16.mxu0 0
    %968 = vmatmul.mubr.bf16.gmra.mxu0 %v885
    %v969 = vpop.f32.mrf.mxu0
    %v970 = vadd.f32 0.0, %v969
    %v971 = vpop.f32.mrf.mxu0
    %v972 = vpop.f32.mrf.mxu0
    %v973 = vpop.f32.mrf.mxu0
    %974 = vdwg.mxu0
    %v975 = vadd.f32 %v884, %v970
    %v976 = vld [vmem:[%s4] sm:$0x1]
    %v978 = vlaneseq
    %v979 = vshrl.u32 %v978, 7
    %v980 = vsub.s32 0, %v979
    %v981 = vrot.slane %v976, %v980
    %v983 = vadd.f32 %v975, %v981
    %v984 = vmax.f32 %v983, 0.0
    %v985 = vpack.c.bf16 %v984, %v984
    %v986 = vld [vmem:[%s5] sm:$0xf]
    %v987 = vld [vmem:[%s5 + $0x4] sm:$0xf]
    %v988 = vld [vmem:[%s5 + $0x8] sm:$0xf]
    %v989 = vld [vmem:[%s5 + $0xc] sm:$0xf]
    %v990 = vld [vmem:[%s5 + $0x10] sm:$0xf]
    %v991 = vld [vmem:[%s5 + $0x14] sm:$0xf]
    %v992 = vld [vmem:[%s5 + $0x18] sm:$0xf]
    %v993 = vld [vmem:[%s5 + $0x1c] sm:$0xf]
    %v994 = vld [vmem:[%s5 + $0x20] sm:$0xf]
    %v995 = vld [vmem:[%s5 + $0x24] sm:$0xf]
    %v996 = vld [vmem:[%s5 + $0x28] sm:$0xf]
    %v997 = vld [vmem:[%s5 + $0x2c] sm:$0xf]
    %v998 = vld [vmem:[%s5 + $0x30] sm:$0xf]
    %v999 = vld [vmem:[%s5 + $0x34] sm:$0xf]
    %v1000 = vld [vmem:[%s5 + $0x38] sm:$0xf]
    %v1001 = vld [vmem:[%s5 + $0x3c] sm:$0xf]
    %v1002 = vld [vmem:[%s6] sm:$0x1]
    %v1004 = vlaneseq
    %v1005 = vshrl.u32 %v1004, 7
    %v1006 = vsub.s32 0, %v1005
    %v1007 = vrot.slane %v1002, %v1006
    %v1025 = vunpack.c.l.b16 %v986
    %v1026 = vunpack.c.l.b16 %v987
    %v1027 = vunpack.c.l.b16 %v988
    %v1028 = vunpack.c.l.b16 %v989
    %v1029 = vunpack.c.l.b16 %v990
    %v1030 = vunpack.c.l.b16 %v991
    %v1031 = vunpack.c.l.b16 %v992
    %v1032 = vunpack.c.l.b16 %v993
    %v1033 = vunpack.c.l.b16 %v994
    %v1034 = vunpack.c.l.b16 %v995
    %v1035 = vunpack.c.l.b16 %v996
    %v1036 = vunpack.c.l.b16 %v997
    %v1037 = vunpack.c.l.b16 %v998
    %v1038 = vunpack.c.l.b16 %v999
    %v1039 = vunpack.c.l.b16 %v1000
    %v1040 = vunpack.c.l.b16 %v1001
    %v1041 = vpack.c.b16 %v1026, %v1025
    %v1042 = vpack.c.b16 %v1028, %v1027
    %v1043 = vpack.c.b16 %v1030, %v1029
    %v1044 = vpack.c.b16 %v1032, %v1031
    %v1045 = vpack.c.b16 %v1034, %v1033
    %v1046 = vpack.c.b16 %v1036, %v1035
    %v1047 = vpack.c.b16 %v1038, %v1037
    %v1048 = vpack.c.b16 %v1040, %v1039
    %1057 = vmatprep.subr.bf16.mxu0 0
    %1058 = vmatpush1.bf16.msra.mxu0 %v1048
    %1059 = vmatprep.subr.bf16.mxu0 0
    %1060 = vmatpush1.bf16.msra.mxu0 %v1047
    %1061 = vmatprep.subr.bf16.mxu0 0
    %1062 = vmatpush1.bf16.msra.mxu0 %v1046
    %1063 = vmatprep.subr.bf16.mxu0 0
    %1064 = vmatpush1.bf16.msra.mxu0 %v1045
    %1065 = vmatprep.subr.bf16.mxu0 0
    %1066 = vmatpush1.bf16.msra.mxu0 %v1044
    %1067 = vmatprep.subr.bf16.mxu0 0
    %1068 = vmatpush1.bf16.msra.mxu0 %v1043
    %1069 = vmatprep.subr.bf16.mxu0 0
    %1070 = vmatpush1.bf16.msra.mxu0 %v1042
    %1071 = vmatprep.subr.bf16.mxu0 0
    %1072 = vmatpush1.bf16.msra.mxu0 %v1041
    %1073 = vmatprep.subr.bf16.mxu0 0
    %1074 = vmatpush2.bf16.msra.mxu0 0
    %1075 = vmatprep.subr.bf16.mxu0 0
    %1076 = vmatpush2.bf16.msra.mxu0 0
    %1077 = vmatprep.subr.bf16.mxu0 0
    %1078 = vmatpush2.bf16.msra.mxu0 0
    %1079 = vmatprep.subr.bf16.mxu0 0
    %1080 = vmatpush2.bf16.msra.mxu0 0
    %1081 = vmatprep.subr.bf16.mxu0 0
    %1082 = vmatpush2.bf16.msra.mxu0 0
    %1083 = vmatprep.subr.bf16.mxu0 0
    %1084 = vmatpush2.bf16.msra.mxu0 0
    %1085 = vmatprep.subr.bf16.mxu0 0
    %1086 = vmatpush2.bf16.msra.mxu0 0
    %1087 = vmatprep.subr.bf16.mxu0 0
    %1088 = vmatpush2.bf16.msra.mxu0 0
    %1089 = vmatprep.mubr.bf16.mxu0 0
    %1090 = vmatmul.mubr.bf16.gmra.mxu0 %v985
    %v1091 = vpop.f32.mrf.mxu0
    %v1092 = vadd.f32 %v1007, %v1091
    %v1093 = vpop.f32.mrf.mxu0
    %v1094 = vpop.f32.mrf.mxu0
    %v1095 = vpop.f32.mrf.mxu0
    %1096 = vdwg.mxu0
    %v1097 = vmax.f32 %v1092, 0.0
    %v1098 = vpack.c.bf16 %v1097, %v1097
    %v1099 = vld [vmem:[%s7] sm:$0xf]
    %v1100 = vld [vmem:[%s7 + $0x4] sm:$0xf]
    %v1101 = vld [vmem:[%s7 + $0x8] sm:$0xf]
    %v1102 = vld [vmem:[%s7 + $0xc] sm:$0xf]
    %v1103 = vld [vmem:[%s7 + $0x10] sm:$0xf]
    %v1104 = vld [vmem:[%s7 + $0x14] sm:$0xf]
    %v1105 = vld [vmem:[%s7 + $0x18] sm:$0xf]
    %v1106 = vld [vmem:[%s7 + $0x1c] sm:$0xf]
    %v1107 = vld [vmem:[%s7 + $0x20] sm:$0xf]
    %v1108 = vld [vmem:[%s7 + $0x24] sm:$0xf]
    %v1109 = vld [vmem:[%s7 + $0x28] sm:$0xf]
    %v1110 = vld [vmem:[%s7 + $0x2c] sm:$0xf]
    %v1111 = vld [vmem:[%s7 + $0x30] sm:$0xf]
    %v1112 = vld [vmem:[%s7 + $0x34] sm:$0xf]
    %v1113 = vld [vmem:[%s7 + $0x38] sm:$0xf]
    %v1114 = vld [vmem:[%s7 + $0x3c] sm:$0xf]
    %v1115 = vld [vmem:[%s8] sm:$0x1]
    %v1117 = vlaneseq
    %v1118 = vshrl.u32 %v1117, 7
    %v1119 = vsub.s32 0, %v1118
    %v1120 = vrot.slane %v1115, %v1119
    %v1138 = vunpack.c.l.b16 %v1099
    %v1139 = vunpack.c.l.b16 %v1100
    %v1140 = vunpack.c.l.b16 %v1101
    %v1141 = vunpack.c.l.b16 %v1102
    %v1142 = vunpack.c.l.b16 %v1103
    %v1143 = vunpack.c.l.b16 %v1104
    %v1144 = vunpack.c.l.b16 %v1105
    %v1145 = vunpack.c.l.b16 %v1106
    %v1146 = vunpack.c.l.b16 %v1107
    %v1147 = vunpack.c.l.b16 %v1108
    %v1148 = vunpack.c.l.b16 %v1109
    %v1149 = vunpack.c.l.b16 %v1110
    %v1150 = vunpack.c.l.b16 %v1111
    %v1151 = vunpack.c.l.b16 %v1112
    %v1152 = vunpack.c.l.b16 %v1113
    %v1153 = vunpack.c.l.b16 %v1114
    %v1154 = vpack.c.b16 %v1139, %v1138
    %v1155 = vpack.c.b16 %v1141, %v1140
    %v1156 = vpack.c.b16 %v1143, %v1142
    %v1157 = vpack.c.b16 %v1145, %v1144
    %v1158 = vpack.c.b16 %v1147, %v1146
    %v1159 = vpack.c.b16 %v1149, %v1148
    %v1160 = vpack.c.b16 %v1151, %v1150
    %v1161 = vpack.c.b16 %v1153, %v1152
    %1170 = vmatprep.subr.bf16.mxu0 0
    %1171 = vmatpush1.bf16.msra.mxu0 %v1161
    %1172 = vmatprep.subr.bf16.mxu0 0
    %1173 = vmatpush1.bf16.msra.mxu0 %v1160
    %1174 = vmatprep.subr.bf16.mxu0 0
    %1175 = vmatpush1.bf16.msra.mxu0 %v1159
    %1176 = vmatprep.subr.bf16.mxu0 0
    %1177 = vmatpush1.bf16.msra.mxu0 %v1158
    %1178 = vmatprep.subr.bf16.mxu0 0
    %1179 = vmatpush1.bf16.msra.mxu0 %v1157
    %1180 = vmatprep.subr.bf16.mxu0 0
    %1181 = vmatpush1.bf16.msra.mxu0 %v1156
    %1182 = vmatprep.subr.bf16.mxu0 0
    %1183 = vmatpush1.bf16.msra.mxu0 %v1155
    %1184 = vmatprep.subr.bf16.mxu0 0
    %1185 = vmatpush1.bf16.msra.mxu0 %v1154
    %1186 = vmatprep.subr.bf16.mxu0 0
    %1187 = vmatpush2.bf16.msra.mxu0 0
    %1188 = vmatprep.subr.bf16.mxu0 0
    %1189 = vmatpush2.bf16.msra.mxu0 0
    %1190 = vmatprep.subr.bf16.mxu0 0
    %1191 = vmatpush2.bf16.msra.mxu0 0
    %1192 = vmatprep.subr.bf16.mxu0 0
    %1193 = vmatpush2.bf16.msra.mxu0 0
    %1194 = vmatprep.subr.bf16.mxu0 0
    %1195 = vmatpush2.bf16.msra.mxu0 0
    %1196 = vmatprep.subr.bf16.mxu0 0
    %1197 = vmatpush2.bf16.msra.mxu0 0
    %1198 = vmatprep.subr.bf16.mxu0 0
    %1199 = vmatpush2.bf16.msra.mxu0 0
    %1200 = vmatprep.subr.bf16.mxu0 0
    %1201 = vmatpush2.bf16.msra.mxu0 0
    %1202 = vmatprep.mubr.bf16.mxu0 0
    %1203 = vmatmul.mubr.bf16.gmra.mxu0 %v1098
    %v1204 = vpop.f32.mrf.mxu0
    %v1205 = vadd.f32 %v1120, %v1204
    %v1206 = vpop.f32.mrf.mxu0
    %v1207 = vpop.f32.mrf.mxu0
    %v1208 = vpop.f32.mrf.mxu0
    %1209 = vdwg.mxu0
    %1210 = vst [vmem:[#allocation2] sm:$0x3] %v1205
    // Predicated region
    $region38: #{vgg4_forward.7} parent=1 // pred_check
      _
    $region39: #{vgg4_forward.7} parent=1 // pred_check_branch
      %1212 = sbr.rel (0) target = $region41
    $region40: #{vgg4_forward.7} parent=1 // pred_region
      %s1214 = ssub.s32 32, 32
      %1215 = vsyncadd [#allocation3], %s1214
      %s1217 = sshll.u32 [#allocation2], 4
      %s1218 = int_to_ptr.vmem [resolvable:$true] %s1217
      %1220 = dma.vmem_to_hbm [thread:$0]  %s1218, 32, %s9, [#allocation3]
    $region41: #{vgg4_forward.7} parent=1 // pred_fallthru
      _
    // Predicated region
    $region42: #{vgg4_forward.7} parent=1 // pred_check
      _
    $region43: #{vgg4_forward.7} parent=1 // pred_check_branch
      %1222 = sbr.rel (0) target = $region45
    $region44: #{vgg4_forward.7} parent=1 // pred_region
      %1223 = dma.done [#allocation3], 32
    $region45: #{vgg4_forward.7} parent=1 // pred_fallthru
      _
    %1224 = vsyncpa [#allocation3], 1

</llo_original>
